<compile_context>
chip_gen: v7x
topology: tpu7x:2x2x1
jax: 0.10.0
libtpu: 0.0.40
codegen_flags: <defaults>
</compile_context>

<pallas_src>
import functools
import math

import jax
import jax.numpy as jnp
import numpy as np
from jax import lax
from jax.experimental import pallas as pl
from jax.experimental.pallas import tpu as pltpu

MFS_DIM = 25   # parity with the torch module's __init__ (unused in forward)
NLV_BCD = 6
_LANE = 128


def _pool_configs(nlv_bcd):
    # nn.MaxPool2d(kernel_size=i+2, stride=(i+2)//2), padding=0, floor mode.
    return [(i + 2, (i + 2) // 2) for i in range(nlv_bcd - 1)]


def _sl(start, size, stride):
    # pl.ds helper: only pass `stride` when it is really strided.
    return pl.ds(start, size) if stride == 1 else pl.ds(start, size, stride=stride)


def _gdcb_kernel(x_ref, o_ref, rowbuf, *, H, W, configs, weights,
                 max_unrolled_rows=64):
    """x_ref: (H, W, TILE_NC) f32; o_ref: (1, TILE_NC) f32; rowbuf: (W, TILE_NC) f32."""
    nc = o_ref.shape[-1]
    out = jnp.zeros((1, nc), jnp.float32)

    for (k, s), w_i in zip(configs, weights):
        oh_n = (H - k) // s + 1
        ow_n = (W - k) // s + 1

        def row_contrib(base, k=k, s=s, ow_n=ow_n):
            # --- max over the k input rows of this pooling window ---
            rm = x_ref[base]                                  # (W, NC)
            for kh in range(1, k):
                rm = jnp.maximum(rm, x_ref[base + kh])
            rowbuf[...] = rm
            # --- column max, vectorized over all OW outputs via strided
            #     sublane loads; then reduce the OW outputs into one row ---
            cm = rowbuf[_sl(0, ow_n, s)]                      # (OW, NC)
            for kw in range(1, k):
                cm = jnp.maximum(cm, rowbuf[_sl(kw, ow_n, s)])
            return jnp.sum(cm, axis=0, keepdims=True)         # (1, NC)

        if oh_n <= max_unrolled_rows:
            total = row_contrib(0)
            for oh in range(1, oh_n):
                total = total + row_contrib(oh * s)
        else:
            # Large spatial dims: bounded trace size / live ranges.
            total = lax.fori_loop(
                0, oh_n,
                lambda oh, acc: acc + row_contrib(oh * s),
                jnp.zeros((1, nc), jnp.float32))

        # y_i = log2(relu(sum) + 1); fold regression weight in directly.
        y_i = jnp.log2(jnp.maximum(total, 0.0) + 1.0)
        out = out + w_i * y_i

    o_ref[...] = out.astype(o_ref.dtype)


@functools.partial(jax.jit, static_argnames=("nlv_bcd",))
def gdcb_forward(x_nchw, nlv_bcd=NLV_BCD):
    N, C, H, W = x_nchw.shape
    configs = _pool_configs(nlv_bcd)

    # Static regression abscissa X_i = -log2(i+2).  sum_i xc_i == 0, so the
    # least-squares slope is sum_i (xc_i / sum_j xc_j^2) * y_i.
    X = [-math.log2(i + 2) for i in range(nlv_bcd - 1)]
    mean_x = sum(X) / len(X)
    xc = [xi - mean_x for xi in X]
    inv_den = 1.0 / sum(c * c for c in xc)
    weights = tuple(c * inv_den for c in xc)

    NC = N * C
    # Lane-dense channel tile: a multiple of 128, sized so the double-buffered
    # input block stays comfortably inside the default scoped-VMEM limit
    # (32 MiB scoped default; v7x physical VMEM is only 64 MiB).
    vmem_budget = 12 * 1024 * 1024
    per_lane_bytes = 2 * H * W * 4                       # 2 pipeline buffers, f32
    tile_cap = max(_LANE, (vmem_budget // per_lane_bytes) // _LANE * _LANE)
    nc_lanes = ((NC + _LANE - 1) // _LANE) * _LANE
    tile_nc = min(nc_lanes, tile_cap)
    nc_pad = ((NC + tile_nc - 1) // tile_nc) * tile_nc
    num_tiles = nc_pad // tile_nc

    # layout: NCHW -> (H, W, N*C), channels on the 128-wide lane axis.
    # TODO(synk): have the producer emit (H, W, N*C) directly to avoid this
    # extra HBM round trip for the transpose.
    x_hwnc = jnp.transpose(x_nchw, (2, 3, 0, 1)).reshape(H, W, NC)
    x_hwnc = x_hwnc.astype(jnp.float32)
    if nc_pad != NC:
        x_hwnc = jnp.pad(x_hwnc, ((0, 0), (0, 0), (0, nc_pad - NC)))

    kernel = functools.partial(
        _gdcb_kernel, H=H, W=W, configs=configs, weights=weights)

    grid_spec = pltpu.PrefetchScalarGridSpec(
        num_scalar_prefetch=0,
        grid=(num_tiles,),
        in_specs=[pl.BlockSpec((H, W, tile_nc), lambda j: (0, 0, j))],
        out_specs=pl.BlockSpec((1, tile_nc), lambda j: (0, j)),
        scratch_shapes=[pltpu.VMEM((W, tile_nc), jnp.float32)],
    )

    out = pl.pallas_call(
        kernel,
        out_shape=jax.ShapeDtypeStruct((1, nc_pad), jnp.float32),
        grid_spec=grid_spec,
        compiler_params=pltpu.CompilerParams(
            dimension_semantics=("parallel",)),
    )(x_hwnc)

    return out[:, :NC].reshape(N, C, 1, 1)


def gdcb_reference(x, nlv_bcd=NLV_BCD):
    # Pure-JAX reference mirroring the torch forward (NCHW).
    ys = []
    for i in range(nlv_bcd - 1):
        k = i + 2
        s = k // 2
        pooled = lax.reduce_window(
            x, -jnp.inf, lax.max, (1, 1, k, k), (1, 1, s, s), "VALID")
        ys.append(jnp.sum(pooled, axis=(2, 3), keepdims=True))
    out = jnp.concatenate(ys, axis=2)                       # (N, C, nlv-1, 1)
    out = jnp.log2(jnp.maximum(out, 0.0) + 1.0)
    X = jnp.array(
        [-math.log2(i + 2) for i in range(nlv_bcd - 1)], jnp.float32
    ).reshape(1, 1, -1, 1)
    mean_x = jnp.mean(X, axis=2, keepdims=True)
    mean_y = jnp.mean(out, axis=2, keepdims=True)
    num = jnp.sum((out - mean_y) * (X - mean_x), axis=2, keepdims=True)
    den = jnp.sum((X - mean_x) ** 2, axis=2, keepdims=True)
    return num / den


if __name__ == "__main__":
    key = jax.random.PRNGKey(0)
    x = jax.random.normal(key, (2, 4, 16, 16), dtype=jnp.float32)

    out = gdcb_forward(x)
    out = jax.block_until_ready(out)

    assert out.shape == (2, 4, 1, 1), out.shape
    ref = gdcb_reference(x)
    np.testing.assert_allclose(np.asarray(out), np.asarray(ref), rtol=1e-4, atol=1e-4)

    print("KERNEL_OK")
</pallas_src>

<mosaic_0001>
module attributes {stable_mosaic.version = 11 : i64} {
  func.func @_gdcb_kernel(%arg0: i32, %arg1: memref<16x16x128xf32, #tpu.memory_space<vmem>>, %arg2: memref<1x128xf32, #tpu.memory_space<vmem>>, %arg3: memref<16x128xf32, #tpu.memory_space<vmem>>) attributes {dimension_semantics = [#tpu.dimension_semantics<parallel>], iteration_bounds = array<i64: 1>, scalar_prefetch = 0 : i64, scratch_operands = 1 : i64, tpu.core_type = #tpu.core_type<tc>, window_params = [{transform_indices = @transform_0, window_bounds = array<i64: 16, 16, 128>}, {transform_indices = @transform_1, window_bounds = array<i64: 1, 128>}]} {
    %cst = arith.constant 0.000000e+00 : f32
    %0 = vector.broadcast %cst : f32 to vector<1x128xf32>
    %c0 = arith.constant 0 : index
    %c0_0 = arith.constant 0 : index
    %c0_1 = arith.constant 0 : index
    %1 = vector.load %arg1[%c0, %c0_0, %c0_1] : memref<16x16x128xf32, #tpu.memory_space<vmem>>, vector<1x16x128xf32>
    %2 = vector.shape_cast %1 : vector<1x16x128xf32> to vector<16x128xf32>
    %c1 = arith.constant 1 : index
    %c0_2 = arith.constant 0 : index
    %c0_3 = arith.constant 0 : index
    %3 = vector.load %arg1[%c1, %c0_2, %c0_3] : memref<16x16x128xf32, #tpu.memory_space<vmem>>, vector<1x16x128xf32>
    %4 = vector.shape_cast %3 : vector<1x16x128xf32> to vector<16x128xf32>
    %5 = arith.maximumf %2, %4 : vector<16x128xf32>
    %c0_4 = arith.constant 0 : index
    %c0_5 = arith.constant 0 : index
    %6 = vector.load %arg3[%c0_4, %c0_5] : memref<16x128xf32, #tpu.memory_space<vmem>>, vector<16x128xf32>
    tpu.vector_store %arg3[%c0_4, %c0_5], %5 {strides = array<i32>} : memref<16x128xf32, #tpu.memory_space<vmem>>, vector<16x128xf32>,
    %c0_6 = arith.constant 0 : index
    %c0_7 = arith.constant 0 : index
    %7 = vector.load %arg3[%c0_6, %c0_7] : memref<16x128xf32, #tpu.memory_space<vmem>>, vector<15x128xf32>
    %c1_8 = arith.constant 1 : index
    %c0_9 = arith.constant 0 : index
    %8 = vector.load %arg3[%c1_8, %c0_9] : memref<16x128xf32, #tpu.memory_space<vmem>>, vector<15x128xf32>
    %9 = arith.maximumf %7, %8 : vector<15x128xf32>
    %cst_10 = arith.constant dense<0.000000e+00> : vector<128xf32>
    %10 = vector.multi_reduction <add>, %9, %cst_10 [0] : vector<15x128xf32> to vector<128xf32>
    %11 = vector.shape_cast %10 : vector<128xf32> to vector<1x128xf32>
    %c1_11 = arith.constant 1 : index
    %c0_12 = arith.constant 0 : index
    %c0_13 = arith.constant 0 : index
    %12 = vector.load %arg1[%c1_11, %c0_12, %c0_13] : memref<16x16x128xf32, #tpu.memory_space<vmem>>, vector<1x16x128xf32>
    %13 = vector.shape_cast %12 : vector<1x16x128xf32> to vector<16x128xf32>
    %c2 = arith.constant 2 : index
    %c0_14 = arith.constant 0 : index
    %c0_15 = arith.constant 0 : index
    %14 = vector.load %arg1[%c2, %c0_14, %c0_15] : memref<16x16x128xf32, #tpu.memory_space<vmem>>, vector<1x16x128xf32>
    %15 = vector.shape_cast %14 : vector<1x16x128xf32> to vector<16x128xf32>
    %16 = arith.maximumf %13, %15 : vector<16x128xf32>
    %c0_16 = arith.constant 0 : index
    %c0_17 = arith.constant 0 : index
    %17 = vector.load %arg3[%c0_16, %c0_17] : memref<16x128xf32, #tpu.memory_space<vmem>>, vector<16x128xf32>
    tpu.vector_store %arg3[%c0_16, %c0_17], %16 {strides = array<i32>} : memref<16x128xf32, #tpu.memory_space<vmem>>, vector<16x128xf32>,
    %c0_18 = arith.constant 0 : index
    %c0_19 = arith.constant 0 : index
    %18 = vector.load %arg3[%c0_18, %c0_19] : memref<16x128xf32, #tpu.memory_space<vmem>>, vector<15x128xf32>
    %c1_20 = arith.constant 1 : index
    %c0_21 = arith.constant 0 : index
    %19 = vector.load %arg3[%c1_20, %c0_21] : memref<16x128xf32, #tpu.memory_space<vmem>>, vector<15x128xf32>
    %20 = arith.maximumf %18, %19 : vector<15x128xf32>
    %cst_22 = arith.constant dense<0.000000e+00> : vector<128xf32>
    %21 = vector.multi_reduction <add>, %20, %cst_22 [0] : vector<15x128xf32> to vector<128xf32>
    %22 = vector.shape_cast %21 : vector<128xf32> to vector<1x128xf32>
    %23 = arith.addf %11, %22 : vector<1x128xf32>
    %c2_23 = arith.constant 2 : index
    %c0_24 = arith.constant 0 : index
    %c0_25 = arith.constant 0 : index
    %24 = vector.load %arg1[%c2_23, %c0_24, %c0_25] : memref<16x16x128xf32, #tpu.memory_space<vmem>>, vector<1x16x128xf32>
    %25 = vector.shape_cast %24 : vector<1x16x128xf32> to vector<16x128xf32>
    %c3 = arith.constant 3 : index
    %c0_26 = arith.constant 0 : index
    %c0_27 = arith.constant 0 : index
    %26 = vector.load %arg1[%c3, %c0_26, %c0_27] : memref<16x16x128xf32, #tpu.memory_space<vmem>>, vector<1x16x128xf32>
    %27 = vector.shape_cast %26 : vector<1x16x128xf32> to vector<16x128xf32>
    %28 = arith.maximumf %25, %27 : vector<16x128xf32>
    %c0_28 = arith.constant 0 : index
    %c0_29 = arith.constant 0 : index
    %29 = vector.load %arg3[%c0_28, %c0_29] : memref<16x128xf32, #tpu.memory_space<vmem>>, vector<16x128xf32>
    tpu.vector_store %arg3[%c0_28, %c0_29], %28 {strides = array<i32>} : memref<16x128xf32, #tpu.memory_space<vmem>>, vector<16x128xf32>,
    %c0_30 = arith.constant 0 : index
    %c0_31 = arith.constant 0 : index
    %30 = vector.load %arg3[%c0_30, %c0_31] : memref<16x128xf32, #tpu.memory_space<vmem>>, vector<15x128xf32>
    %c1_32 = arith.constant 1 : index
    %c0_33 = arith.constant 0 : index
    %31 = vector.load %arg3[%c1_32, %c0_33] : memref<16x128xf32, #tpu.memory_space<vmem>>, vector<15x128xf32>
    %32 = arith.maximumf %30, %31 : vector<15x128xf32>
    %cst_34 = arith.constant dense<0.000000e+00> : vector<128xf32>
    %33 = vector.multi_reduction <add>, %32, %cst_34 [0] : vector<15x128xf32> to vector<128xf32>
    %34 = vector.shape_cast %33 : vector<128xf32> to vector<1x128xf32>
    %35 = arith.addf %23, %34 : vector<1x128xf32>
    %c3_35 = arith.constant 3 : index
    %c0_36 = arith.constant 0 : index
    %c0_37 = arith.constant 0 : index
    %36 = vector.load %arg1[%c3_35, %c0_36, %c0_37] : memref<16x16x128xf32, #tpu.memory_space<vmem>>, vector<1x16x128xf32>
    %37 = vector.shape_cast %36 : vector<1x16x128xf32> to vector<16x128xf32>
    %c4 = arith.constant 4 : index
    %c0_38 = arith.constant 0 : index
    %c0_39 = arith.constant 0 : index
    %38 = vector.load %arg1[%c4, %c0_38, %c0_39] : memref<16x16x128xf32, #tpu.memory_space<vmem>>, vector<1x16x128xf32>
    %39 = vector.shape_cast %38 : vector<1x16x128xf32> to vector<16x128xf32>
    %40 = arith.maximumf %37, %39 : vector<16x128xf32>
    %c0_40 = arith.constant 0 : index
    %c0_41 = arith.constant 0 : index
    %41 = vector.load %arg3[%c0_40, %c0_41] : memref<16x128xf32, #tpu.memory_space<vmem>>, vector<16x128xf32>
    tpu.vector_store %arg3[%c0_40, %c0_41], %40 {strides = array<i32>} : memref<16x128xf32, #tpu.memory_space<vmem>>, vector<16x128xf32>,
    %c0_42 = arith.constant 0 : index
    %c0_43 = arith.constant 0 : index
    %42 = vector.load %arg3[%c0_42, %c0_43] : memref<16x128xf32, #tpu.memory_space<vmem>>, vector<15x128xf32>
    %c1_44 = arith.constant 1 : index
    %c0_45 = arith.constant 0 : index
    %43 = vector.load %arg3[%c1_44, %c0_45] : memref<16x128xf32, #tpu.memory_space<vmem>>, vector<15x128xf32>
    %44 = arith.maximumf %42, %43 : vector<15x128xf32>
    %cst_46 = arith.constant dense<0.000000e+00> : vector<128xf32>
    %45 = vector.multi_reduction <add>, %44, %cst_46 [0] : vector<15x128xf32> to vector<128xf32>
    %46 = vector.shape_cast %45 : vector<128xf32> to vector<1x128xf32>
    %47 = arith.addf %35, %46 : vector<1x128xf32>
    %c4_47 = arith.constant 4 : index
    %c0_48 = arith.constant 0 : index
    %c0_49 = arith.constant 0 : index
    %48 = vector.load %arg1[%c4_47, %c0_48, %c0_49] : memref<16x16x128xf32, #tpu.memory_space<vmem>>, vector<1x16x128xf32>
    %49 = vector.shape_cast %48 : vector<1x16x128xf32> to vector<16x128xf32>
    %c5 = arith.constant 5 : index
    %c0_50 = arith.constant 0 : index
    %c0_51 = arith.constant 0 : index
    %50 = vector.load %arg1[%c5, %c0_50, %c0_51] : memref<16x16x128xf32, #tpu.memory_space<vmem>>, vector<1x16x128xf32>
    %51 = vector.shape_cast %50 : vector<1x16x128xf32> to vector<16x128xf32>
    %52 = arith.maximumf %49, %51 : vector<16x128xf32>
    %c0_52 = arith.constant 0 : index
    %c0_53 = arith.constant 0 : index
    %53 = vector.load %arg3[%c0_52, %c0_53] : memref<16x128xf32, #tpu.memory_space<vmem>>, vector<16x128xf32>
    tpu.vector_store %arg3[%c0_52, %c0_53], %52 {strides = array<i32>} : memref<16x128xf32, #tpu.memory_space<vmem>>, vector<16x128xf32>,
    %c0_54 = arith.constant 0 : index
    %c0_55 = arith.constant 0 : index
    %54 = vector.load %arg3[%c0_54, %c0_55] : memref<16x128xf32, #tpu.memory_space<vmem>>, vector<15x128xf32>
    %c1_56 = arith.constant 1 : index
    %c0_57 = arith.constant 0 : index
    %55 = vector.load %arg3[%c1_56, %c0_57] : memref<16x128xf32, #tpu.memory_space<vmem>>, vector<15x128xf32>
    %56 = arith.maximumf %54, %55 : vector<15x128xf32>
    %cst_58 = arith.constant dense<0.000000e+00> : vector<128xf32>
    %57 = vector.multi_reduction <add>, %56, %cst_58 [0] : vector<15x128xf32> to vector<128xf32>
    %58 = vector.shape_cast %57 : vector<128xf32> to vector<1x128xf32>
    %59 = arith.addf %47, %58 : vector<1x128xf32>
    %c5_59 = arith.constant 5 : index
    %c0_60 = arith.constant 0 : index
    %c0_61 = arith.constant 0 : index
    %60 = vector.load %arg1[%c5_59, %c0_60, %c0_61] : memref<16x16x128xf32, #tpu.memory_space<vmem>>, vector<1x16x128xf32>
    %61 = vector.shape_cast %60 : vector<1x16x128xf32> to vector<16x128xf32>
    %c6 = arith.constant 6 : index
    %c0_62 = arith.constant 0 : index
    %c0_63 = arith.constant 0 : index
    %62 = vector.load %arg1[%c6, %c0_62, %c0_63] : memref<16x16x128xf32, #tpu.memory_space<vmem>>, vector<1x16x128xf32>
    %63 = vector.shape_cast %62 : vector<1x16x128xf32> to vector<16x128xf32>
    %64 = arith.maximumf %61, %63 : vector<16x128xf32>
    %c0_64 = arith.constant 0 : index
    %c0_65 = arith.constant 0 : index
    %65 = vector.load %arg3[%c0_64, %c0_65] : memref<16x128xf32, #tpu.memory_space<vmem>>, vector<16x128xf32>
    tpu.vector_store %arg3[%c0_64, %c0_65], %64 {strides = array<i32>} : memref<16x128xf32, #tpu.memory_space<vmem>>, vector<16x128xf32>,
    %c0_66 = arith.constant 0 : index
    %c0_67 = arith.constant 0 : index
    %66 = vector.load %arg3[%c0_66, %c0_67] : memref<16x128xf32, #tpu.memory_space<vmem>>, vector<15x128xf32>
    %c1_68 = arith.constant 1 : index
    %c0_69 = arith.constant 0 : index
    %67 = vector.load %arg3[%c1_68, %c0_69] : memref<16x128xf32, #tpu.memory_space<vmem>>, vector<15x128xf32>
    %68 = arith.maximumf %66, %67 : vector<15x128xf32>
    %cst_70 = arith.constant dense<0.000000e+00> : vector<128xf32>
    %69 = vector.multi_reduction <add>, %68, %cst_70 [0] : vector<15x128xf32> to vector<128xf32>
    %70 = vector.shape_cast %69 : vector<128xf32> to vector<1x128xf32>
    %71 = arith.addf %59, %70 : vector<1x128xf32>
    %c6_71 = arith.constant 6 : index
    %c0_72 = arith.constant 0 : index
    %c0_73 = arith.constant 0 : index
    %72 = vector.load %arg1[%c6_71, %c0_72, %c0_73] : memref<16x16x128xf32, #tpu.memory_space<vmem>>, vector<1x16x128xf32>
    %73 = vector.shape_cast %72 : vector<1x16x128xf32> to vector<16x128xf32>
    %c7 = arith.constant 7 : index
    %c0_74 = arith.constant 0 : index
    %c0_75 = arith.constant 0 : index
    %74 = vector.load %arg1[%c7, %c0_74, %c0_75] : memref<16x16x128xf32, #tpu.memory_space<vmem>>, vector<1x16x128xf32>
    %75 = vector.shape_cast %74 : vector<1x16x128xf32> to vector<16x128xf32>
    %76 = arith.maximumf %73, %75 : vector<16x128xf32>
    %c0_76 = arith.constant 0 : index
    %c0_77 = arith.constant 0 : index
    %77 = vector.load %arg3[%c0_76, %c0_77] : memref<16x128xf32, #tpu.memory_space<vmem>>, vector<16x128xf32>
    tpu.vector_store %arg3[%c0_76, %c0_77], %76 {strides = array<i32>} : memref<16x128xf32, #tpu.memory_space<vmem>>, vector<16x128xf32>,
    %c0_78 = arith.constant 0 : index
    %c0_79 = arith.constant 0 : index
    %78 = vector.load %arg3[%c0_78, %c0_79] : memref<16x128xf32, #tpu.memory_space<vmem>>, vector<15x128xf32>
    %c1_80 = arith.constant 1 : index
    %c0_81 = arith.constant 0 : index
    %79 = vector.load %arg3[%c1_80, %c0_81] : memref<16x128xf32, #tpu.memory_space<vmem>>, vector<15x128xf32>
    %80 = arith.maximumf %78, %79 : vector<15x128xf32>
    %cst_82 = arith.constant dense<0.000000e+00> : vector<128xf32>
    %81 = vector.multi_reduction <add>, %80, %cst_82 [0] : vector<15x128xf32> to vector<128xf32>
    %82 = vector.shape_cast %81 : vector<128xf32> to vector<1x128xf32>
    %83 = arith.addf %71, %82 : vector<1x128xf32>
    %c7_83 = arith.constant 7 : index
    %c0_84 = arith.constant 0 : index
    %c0_85 = arith.constant 0 : index
    %84 = vector.load %arg1[%c7_83, %c0_84, %c0_85] : memref<16x16x128xf32, #tpu.memory_space<vmem>>, vector<1x16x128xf32>
    %85 = vector.shape_cast %84 : vector<1x16x128xf32> to vector<16x128xf32>
    %c8 = arith.constant 8 : index
    %c0_86 = arith.constant 0 : index
    %c0_87 = arith.constant 0 : index
    %86 = vector.load %arg1[%c8, %c0_86, %c0_87] : memref<16x16x128xf32, #tpu.memory_space<vmem>>, vector<1x16x128xf32>
    %87 = vector.shape_cast %86 : vector<1x16x128xf32> to vector<16x128xf32>
    %88 = arith.maximumf %85, %87 : vector<16x128xf32>
    %c0_88 = arith.constant 0 : index
    %c0_89 = arith.constant 0 : index
    %89 = vector.load %arg3[%c0_88, %c0_89] : memref<16x128xf32, #tpu.memory_space<vmem>>, vector<16x128xf32>
    tpu.vector_store %arg3[%c0_88, %c0_89], %88 {strides = array<i32>} : memref<16x128xf32, #tpu.memory_space<vmem>>, vector<16x128xf32>,
    %c0_90 = arith.constant 0 : index
    %c0_91 = arith.constant 0 : index
    %90 = vector.load %arg3[%c0_90, %c0_91] : memref<16x128xf32, #tpu.memory_space<vmem>>, vector<15x128xf32>
    %c1_92 = arith.constant 1 : index
    %c0_93 = arith.constant 0 : index
    %91 = vector.load %arg3[%c1_92, %c0_93] : memref<16x128xf32, #tpu.memory_space<vmem>>, vector<15x128xf32>
    %92 = arith.maximumf %90, %91 : vector<15x128xf32>
    %cst_94 = arith.constant dense<0.000000e+00> : vector<128xf32>
    %93 = vector.multi_reduction <add>, %92, %cst_94 [0] : vector<15x128xf32> to vector<128xf32>
    %94 = vector.shape_cast %93 : vector<128xf32> to vector<1x128xf32>
    %95 = arith.addf %83, %94 : vector<1x128xf32>
    %c8_95 = arith.constant 8 : index
    %c0_96 = arith.constant 0 : index
    %c0_97 = arith.constant 0 : index
    %96 = vector.load %arg1[%c8_95, %c0_96, %c0_97] : memref<16x16x128xf32, #tpu.memory_space<vmem>>, vector<1x16x128xf32>
    %97 = vector.shape_cast %96 : vector<1x16x128xf32> to vector<16x128xf32>
    %c9 = arith.constant 9 : index
    %c0_98 = arith.constant 0 : index
    %c0_99 = arith.constant 0 : index
    %98 = vector.load %arg1[%c9, %c0_98, %c0_99] : memref<16x16x128xf32, #tpu.memory_space<vmem>>, vector<1x16x128xf32>
    %99 = vector.shape_cast %98 : vector<1x16x128xf32> to vector<16x128xf32>
    %100 = arith.maximumf %97, %99 : vector<16x128xf32>
    %c0_100 = arith.constant 0 : index
    %c0_101 = arith.constant 0 : index
    %101 = vector.load %arg3[%c0_100, %c0_101] : memref<16x128xf32, #tpu.memory_space<vmem>>, vector<16x128xf32>
    tpu.vector_store %arg3[%c0_100, %c0_101], %100 {strides = array<i32>} : memref<16x128xf32, #tpu.memory_space<vmem>>, vector<16x128xf32>,
    %c0_102 = arith.constant 0 : index
    %c0_103 = arith.constant 0 : index
    %102 = vector.load %arg3[%c0_102, %c0_103] : memref<16x128xf32, #tpu.memory_space<vmem>>, vector<15x128xf32>
    %c1_104 = arith.constant 1 : index
    %c0_105 = arith.constant 0 : index
    %103 = vector.load %arg3[%c1_104, %c0_105] : memref<16x128xf32, #tpu.memory_space<vmem>>, vector<15x128xf32>
    %104 = arith.maximumf %102, %103 : vector<15x128xf32>
    %cst_106 = arith.constant dense<0.000000e+00> : vector<128xf32>
    %105 = vector.multi_reduction <add>, %104, %cst_106 [0] : vector<15x128xf32> to vector<128xf32>
    %106 = vector.shape_cast %105 : vector<128xf32> to vector<1x128xf32>
    %107 = arith.addf %95, %106 : vector<1x128xf32>
    %c9_107 = arith.constant 9 : index
    %c0_108 = arith.constant 0 : index
    %c0_109 = arith.constant 0 : index
    %108 = vector.load %arg1[%c9_107, %c0_108, %c0_109] : memref<16x16x128xf32, #tpu.memory_space<vmem>>, vector<1x16x128xf32>
    %109 = vector.shape_cast %108 : vector<1x16x128xf32> to vector<16x128xf32>
    %c10 = arith.constant 10 : index
    %c0_110 = arith.constant 0 : index
    %c0_111 = arith.constant 0 : index
    %110 = vector.load %arg1[%c10, %c0_110, %c0_111] : memref<16x16x128xf32, #tpu.memory_space<vmem>>, vector<1x16x128xf32>
    %111 = vector.shape_cast %110 : vector<1x16x128xf32> to vector<16x128xf32>
    %112 = arith.maximumf %109, %111 : vector<16x128xf32>
    %c0_112 = arith.constant 0 : index
    %c0_113 = arith.constant 0 : index
    %113 = vector.load %arg3[%c0_112, %c0_113] : memref<16x128xf32, #tpu.memory_space<vmem>>, vector<16x128xf32>
    tpu.vector_store %arg3[%c0_112, %c0_113], %112 {strides = array<i32>} : memref<16x128xf32, #tpu.memory_space<vmem>>, vector<16x128xf32>,
    %c0_114 = arith.constant 0 : index
    %c0_115 = arith.constant 0 : index
    %114 = vector.load %arg3[%c0_114, %c0_115] : memref<16x128xf32, #tpu.memory_space<vmem>>, vector<15x128xf32>
    %c1_116 = arith.constant 1 : index
    %c0_117 = arith.constant 0 : index
    %115 = vector.load %arg3[%c1_116, %c0_117] : memref<16x128xf32, #tpu.memory_space<vmem>>, vector<15x128xf32>
    %116 = arith.maximumf %114, %115 : vector<15x128xf32>
    %cst_118 = arith.constant dense<0.000000e+00> : vector<128xf32>
    %117 = vector.multi_reduction <add>, %116, %cst_118 [0] : vector<15x128xf32> to vector<128xf32>
    %118 = vector.shape_cast %117 : vector<128xf32> to vector<1x128xf32>
    %119 = arith.addf %107, %118 : vector<1x128xf32>
    %c10_119 = arith.constant 10 : index
    %c0_120 = arith.constant 0 : index
    %c0_121 = arith.constant 0 : index
    %120 = vector.load %arg1[%c10_119, %c0_120, %c0_121] : memref<16x16x128xf32, #tpu.memory_space<vmem>>, vector<1x16x128xf32>
    %121 = vector.shape_cast %120 : vector<1x16x128xf32> to vector<16x128xf32>
    %c11 = arith.constant 11 : index
    %c0_122 = arith.constant 0 : index
    %c0_123 = arith.constant 0 : index
    %122 = vector.load %arg1[%c11, %c0_122, %c0_123] : memref<16x16x128xf32, #tpu.memory_space<vmem>>, vector<1x16x128xf32>
    %123 = vector.shape_cast %122 : vector<1x16x128xf32> to vector<16x128xf32>
    %124 = arith.maximumf %121, %123 : vector<16x128xf32>
    %c0_124 = arith.constant 0 : index
    %c0_125 = arith.constant 0 : index
    %125 = vector.load %arg3[%c0_124, %c0_125] : memref<16x128xf32, #tpu.memory_space<vmem>>, vector<16x128xf32>
    tpu.vector_store %arg3[%c0_124, %c0_125], %124 {strides = array<i32>} : memref<16x128xf32, #tpu.memory_space<vmem>>, vector<16x128xf32>,
    %c0_126 = arith.constant 0 : index
    %c0_127 = arith.constant 0 : index
    %126 = vector.load %arg3[%c0_126, %c0_127] : memref<16x128xf32, #tpu.memory_space<vmem>>, vector<15x128xf32>
    %c1_128 = arith.constant 1 : index
    %c0_129 = arith.constant 0 : index
    %127 = vector.load %arg3[%c1_128, %c0_129] : memref<16x128xf32, #tpu.memory_space<vmem>>, vector<15x128xf32>
    %128 = arith.maximumf %126, %127 : vector<15x128xf32>
    %cst_130 = arith.constant dense<0.000000e+00> : vector<128xf32>
    %129 = vector.multi_reduction <add>, %128, %cst_130 [0] : vector<15x128xf32> to vector<128xf32>
    %130 = vector.shape_cast %129 : vector<128xf32> to vector<1x128xf32>
    %131 = arith.addf %119, %130 : vector<1x128xf32>
    %c11_131 = arith.constant 11 : index
    %c0_132 = arith.constant 0 : index
    %c0_133 = arith.constant 0 : index
    %132 = vector.load %arg1[%c11_131, %c0_132, %c0_133] : memref<16x16x128xf32, #tpu.memory_space<vmem>>, vector<1x16x128xf32>
    %133 = vector.shape_cast %132 : vector<1x16x128xf32> to vector<16x128xf32>
    %c12 = arith.constant 12 : index
    %c0_134 = arith.constant 0 : index
    %c0_135 = arith.constant 0 : index
    %134 = vector.load %arg1[%c12, %c0_134, %c0_135] : memref<16x16x128xf32, #tpu.memory_space<vmem>>, vector<1x16x128xf32>
    %135 = vector.shape_cast %134 : vector<1x16x128xf32> to vector<16x128xf32>
    %136 = arith.maximumf %133, %135 : vector<16x128xf32>
    %c0_136 = arith.constant 0 : index
    %c0_137 = arith.constant 0 : index
    %137 = vector.load %arg3[%c0_136, %c0_137] : memref<16x128xf32, #tpu.memory_space<vmem>>, vector<16x128xf32>
    tpu.vector_store %arg3[%c0_136, %c0_137], %136 {strides = array<i32>} : memref<16x128xf32, #tpu.memory_space<vmem>>, vector<16x128xf32>,
    %c0_138 = arith.constant 0 : index
    %c0_139 = arith.constant 0 : index
    %138 = vector.load %arg3[%c0_138, %c0_139] : memref<16x128xf32, #tpu.memory_space<vmem>>, vector<15x128xf32>
    %c1_140 = arith.constant 1 : index
    %c0_141 = arith.constant 0 : index
    %139 = vector.load %arg3[%c1_140, %c0_141] : memref<16x128xf32, #tpu.memory_space<vmem>>, vector<15x128xf32>
    %140 = arith.maximumf %138, %139 : vector<15x128xf32>
    %cst_142 = arith.constant dense<0.000000e+00> : vector<128xf32>
    %141 = vector.multi_reduction <add>, %140, %cst_142 [0] : vector<15x128xf32> to vector<128xf32>
    %142 = vector.shape_cast %141 : vector<128xf32> to vector<1x128xf32>
    %143 = arith.addf %131, %142 : vector<1x128xf32>
    %c12_143 = arith.constant 12 : index
    %c0_144 = arith.constant 0 : index
    %c0_145 = arith.constant 0 : index
    %144 = vector.load %arg1[%c12_143, %c0_144, %c0_145] : memref<16x16x128xf32, #tpu.memory_space<vmem>>, vector<1x16x128xf32>
    %145 = vector.shape_cast %144 : vector<1x16x128xf32> to vector<16x128xf32>
    %c13 = arith.constant 13 : index
    %c0_146 = arith.constant 0 : index
    %c0_147 = arith.constant 0 : index
    %146 = vector.load %arg1[%c13, %c0_146, %c0_147] : memref<16x16x128xf32, #tpu.memory_space<vmem>>, vector<1x16x128xf32>
    %147 = vector.shape_cast %146 : vector<1x16x128xf32> to vector<16x128xf32>
    %148 = arith.maximumf %145, %147 : vector<16x128xf32>
    %c0_148 = arith.constant 0 : index
    %c0_149 = arith.constant 0 : index
    %149 = vector.load %arg3[%c0_148, %c0_149] : memref<16x128xf32, #tpu.memory_space<vmem>>, vector<16x128xf32>
    tpu.vector_store %arg3[%c0_148, %c0_149], %148 {strides = array<i32>} : memref<16x128xf32, #tpu.memory_space<vmem>>, vector<16x128xf32>,
    %c0_150 = arith.constant 0 : index
    %c0_151 = arith.constant 0 : index
    %150 = vector.load %arg3[%c0_150, %c0_151] : memref<16x128xf32, #tpu.memory_space<vmem>>, vector<15x128xf32>
    %c1_152 = arith.constant 1 : index
    %c0_153 = arith.constant 0 : index
    %151 = vector.load %arg3[%c1_152, %c0_153] : memref<16x128xf32, #tpu.memory_space<vmem>>, vector<15x128xf32>
    %152 = arith.maximumf %150, %151 : vector<15x128xf32>
    %cst_154 = arith.constant dense<0.000000e+00> : vector<128xf32>
    %153 = vector.multi_reduction <add>, %152, %cst_154 [0] : vector<15x128xf32> to vector<128xf32>
    %154 = vector.shape_cast %153 : vector<128xf32> to vector<1x128xf32>
    %155 = arith.addf %143, %154 : vector<1x128xf32>
    %c13_155 = arith.constant 13 : index
    %c0_156 = arith.constant 0 : index
    %c0_157 = arith.constant 0 : index
    %156 = vector.load %arg1[%c13_155, %c0_156, %c0_157] : memref<16x16x128xf32, #tpu.memory_space<vmem>>, vector<1x16x128xf32>
    %157 = vector.shape_cast %156 : vector<1x16x128xf32> to vector<16x128xf32>
    %c14 = arith.constant 14 : index
    %c0_158 = arith.constant 0 : index
    %c0_159 = arith.constant 0 : index
    %158 = vector.load %arg1[%c14, %c0_158, %c0_159] : memref<16x16x128xf32, #tpu.memory_space<vmem>>, vector<1x16x128xf32>
    %159 = vector.shape_cast %158 : vector<1x16x128xf32> to vector<16x128xf32>
    %160 = arith.maximumf %157, %159 : vector<16x128xf32>
    %c0_160 = arith.constant 0 : index
    %c0_161 = arith.constant 0 : index
    %161 = vector.load %arg3[%c0_160, %c0_161] : memref<16x128xf32, #tpu.memory_space<vmem>>, vector<16x128xf32>
    tpu.vector_store %arg3[%c0_160, %c0_161], %160 {strides = array<i32>} : memref<16x128xf32, #tpu.memory_space<vmem>>, vector<16x128xf32>,
    %c0_162 = arith.constant 0 : index
    %c0_163 = arith.constant 0 : index
    %162 = vector.load %arg3[%c0_162, %c0_163] : memref<16x128xf32, #tpu.memory_space<vmem>>, vector<15x128xf32>
    %c1_164 = arith.constant 1 : index
    %c0_165 = arith.constant 0 : index
    %163 = vector.load %arg3[%c1_164, %c0_165] : memref<16x128xf32, #tpu.memory_space<vmem>>, vector<15x128xf32>
    %164 = arith.maximumf %162, %163 : vector<15x128xf32>
    %cst_166 = arith.constant dense<0.000000e+00> : vector<128xf32>
    %165 = vector.multi_reduction <add>, %164, %cst_166 [0] : vector<15x128xf32> to vector<128xf32>
    %166 = vector.shape_cast %165 : vector<128xf32> to vector<1x128xf32>
    %167 = arith.addf %155, %166 : vector<1x128xf32>
    %c14_167 = arith.constant 14 : index
    %c0_168 = arith.constant 0 : index
    %c0_169 = arith.constant 0 : index
    %168 = vector.load %arg1[%c14_167, %c0_168, %c0_169] : memref<16x16x128xf32, #tpu.memory_space<vmem>>, vector<1x16x128xf32>
    %169 = vector.shape_cast %168 : vector<1x16x128xf32> to vector<16x128xf32>
    %c15 = arith.constant 15 : index
    %c0_170 = arith.constant 0 : index
    %c0_171 = arith.constant 0 : index
    %170 = vector.load %arg1[%c15, %c0_170, %c0_171] : memref<16x16x128xf32, #tpu.memory_space<vmem>>, vector<1x16x128xf32>
    %171 = vector.shape_cast %170 : vector<1x16x128xf32> to vector<16x128xf32>
    %172 = arith.maximumf %169, %171 : vector<16x128xf32>
    %c0_172 = arith.constant 0 : index
    %c0_173 = arith.constant 0 : index
    %173 = vector.load %arg3[%c0_172, %c0_173] : memref<16x128xf32, #tpu.memory_space<vmem>>, vector<16x128xf32>
    tpu.vector_store %arg3[%c0_172, %c0_173], %172 {strides = array<i32>} : memref<16x128xf32, #tpu.memory_space<vmem>>, vector<16x128xf32>,
    %c0_174 = arith.constant 0 : index
    %c0_175 = arith.constant 0 : index
    %174 = vector.load %arg3[%c0_174, %c0_175] : memref<16x128xf32, #tpu.memory_space<vmem>>, vector<15x128xf32>
    %c1_176 = arith.constant 1 : index
    %c0_177 = arith.constant 0 : index
    %175 = vector.load %arg3[%c1_176, %c0_177] : memref<16x128xf32, #tpu.memory_space<vmem>>, vector<15x128xf32>
    %176 = arith.maximumf %174, %175 : vector<15x128xf32>
    %cst_178 = arith.constant dense<0.000000e+00> : vector<128xf32>
    %177 = vector.multi_reduction <add>, %176, %cst_178 [0] : vector<15x128xf32> to vector<128xf32>
    %178 = vector.shape_cast %177 : vector<128xf32> to vector<1x128xf32>
    %179 = arith.addf %167, %178 : vector<1x128xf32>
    %cst_179 = arith.constant 0.000000e+00 : f32
    %180 = vector.broadcast %cst_179 : f32 to vector<1x128xf32>
    %181 = arith.maximumf %179, %180 : vector<1x128xf32>
    %cst_180 = arith.constant 1.000000e+00 : f32
    %182 = vector.broadcast %cst_180 : f32 to vector<1x128xf32>
    %183 = arith.addf %181, %182 : vector<1x128xf32>
    %184 = math.log %183 : vector<1x128xf32>
    %cst_181 = arith.constant 2.000000e+00 : f32
    %185 = math.log %cst_181 : f32
    %186 = vector.broadcast %185 : f32 to vector<1x128xf32>
    %187 = arith.divf %184, %186 : vector<1x128xf32>
    %cst_182 = arith.constant 0.573513865 : f32
    %188 = vector.broadcast %cst_182 : f32 to vector<1x128xf32>
    %189 = arith.mulf %188, %187 : vector<1x128xf32>
    %190 = arith.addf %0, %189 : vector<1x128xf32>
    %c0_183 = arith.constant 0 : index
    %c0_184 = arith.constant 0 : index
    %c0_185 = arith.constant 0 : index
    %191 = vector.load %arg1[%c0_183, %c0_184, %c0_185] : memref<16x16x128xf32, #tpu.memory_space<vmem>>, vector<1x16x128xf32>
    %192 = vector.shape_cast %191 : vector<1x16x128xf32> to vector<16x128xf32>
    %c1_186 = arith.constant 1 : index
    %c0_187 = arith.constant 0 : index
    %c0_188 = arith.constant 0 : index
    %193 = vector.load %arg1[%c1_186, %c0_187, %c0_188] : memref<16x16x128xf32, #tpu.memory_space<vmem>>, vector<1x16x128xf32>
    %194 = vector.shape_cast %193 : vector<1x16x128xf32> to vector<16x128xf32>
    %195 = arith.maximumf %192, %194 : vector<16x128xf32>
    %c2_189 = arith.constant 2 : index
    %c0_190 = arith.constant 0 : index
    %c0_191 = arith.constant 0 : index
    %196 = vector.load %arg1[%c2_189, %c0_190, %c0_191] : memref<16x16x128xf32, #tpu.memory_space<vmem>>, vector<1x16x128xf32>
    %197 = vector.shape_cast %196 : vector<1x16x128xf32> to vector<16x128xf32>
    %198 = arith.maximumf %195, %197 : vector<16x128xf32>
    %c0_192 = arith.constant 0 : index
    %c0_193 = arith.constant 0 : index
    %199 = vector.load %arg3[%c0_192, %c0_193] : memref<16x128xf32, #tpu.memory_space<vmem>>, vector<16x128xf32>
    tpu.vector_store %arg3[%c0_192, %c0_193], %198 {strides = array<i32>} : memref<16x128xf32, #tpu.memory_space<vmem>>, vector<16x128xf32>,
    %c0_194 = arith.constant 0 : index
    %c0_195 = arith.constant 0 : index
    %200 = vector.load %arg3[%c0_194, %c0_195] : memref<16x128xf32, #tpu.memory_space<vmem>>, vector<14x128xf32>
    %c1_196 = arith.constant 1 : index
    %c0_197 = arith.constant 0 : index
    %201 = vector.load %arg3[%c1_196, %c0_197] : memref<16x128xf32, #tpu.memory_space<vmem>>, vector<14x128xf32>
    %202 = arith.maximumf %200, %201 : vector<14x128xf32>
    %c2_198 = arith.constant 2 : index
    %c0_199 = arith.constant 0 : index
    %203 = vector.load %arg3[%c2_198, %c0_199] : memref<16x128xf32, #tpu.memory_space<vmem>>, vector<14x128xf32>
    %204 = arith.maximumf %202, %203 : vector<14x128xf32>
    %cst_200 = arith.constant dense<0.000000e+00> : vector<128xf32>
    %205 = vector.multi_reduction <add>, %204, %cst_200 [0] : vector<14x128xf32> to vector<128xf32>
    %206 = vector.shape_cast %205 : vector<128xf32> to vector<1x128xf32>
    %c1_201 = arith.constant 1 : index
    %c0_202 = arith.constant 0 : index
    %c0_203 = arith.constant 0 : index
    %207 = vector.load %arg1[%c1_201, %c0_202, %c0_203] : memref<16x16x128xf32, #tpu.memory_space<vmem>>, vector<1x16x128xf32>
    %208 = vector.shape_cast %207 : vector<1x16x128xf32> to vector<16x128xf32>
    %c2_204 = arith.constant 2 : index
    %c0_205 = arith.constant 0 : index
    %c0_206 = arith.constant 0 : index
    %209 = vector.load %arg1[%c2_204, %c0_205, %c0_206] : memref<16x16x128xf32, #tpu.memory_space<vmem>>, vector<1x16x128xf32>
    %210 = vector.shape_cast %209 : vector<1x16x128xf32> to vector<16x128xf32>
    %211 = arith.maximumf %208, %210 : vector<16x128xf32>
    %c3_207 = arith.constant 3 : index
    %c0_208 = arith.constant 0 : index
    %c0_209 = arith.constant 0 : index
    %212 = vector.load %arg1[%c3_207, %c0_208, %c0_209] : memref<16x16x128xf32, #tpu.memory_space<vmem>>, vector<1x16x128xf32>
    %213 = vector.shape_cast %212 : vector<1x16x128xf32> to vector<16x128xf32>
    %214 = arith.maximumf %211, %213 : vector<16x128xf32>
    %c0_210 = arith.constant 0 : index
    %c0_211 = arith.constant 0 : index
    %215 = vector.load %arg3[%c0_210, %c0_211] : memref<16x128xf32, #tpu.memory_space<vmem>>, vector<16x128xf32>
    tpu.vector_store %arg3[%c0_210, %c0_211], %214 {strides = array<i32>} : memref<16x128xf32, #tpu.memory_space<vmem>>, vector<16x128xf32>,
    %c0_212 = arith.constant 0 : index
    %c0_213 = arith.constant 0 : index
    %216 = vector.load %arg3[%c0_212, %c0_213] : memref<16x128xf32, #tpu.memory_space<vmem>>, vector<14x128xf32>
    %c1_214 = arith.constant 1 : index
    %c0_215 = arith.constant 0 : index
    %217 = vector.load %arg3[%c1_214, %c0_215] : memref<16x128xf32, #tpu.memory_space<vmem>>, vector<14x128xf32>
    %218 = arith.maximumf %216, %217 : vector<14x128xf32>
    %c2_216 = arith.constant 2 : index
    %c0_217 = arith.constant 0 : index
    %219 = vector.load %arg3[%c2_216, %c0_217] : memref<16x128xf32, #tpu.memory_space<vmem>>, vector<14x128xf32>
    %220 = arith.maximumf %218, %219 : vector<14x128xf32>
    %cst_218 = arith.constant dense<0.000000e+00> : vector<128xf32>
    %221 = vector.multi_reduction <add>, %220, %cst_218 [0] : vector<14x128xf32> to vector<128xf32>
    %222 = vector.shape_cast %221 : vector<128xf32> to vector<1x128xf32>
    %223 = arith.addf %206, %222 : vector<1x128xf32>
    %c2_219 = arith.constant 2 : index
    %c0_220 = arith.constant 0 : index
    %c0_221 = arith.constant 0 : index
    %224 = vector.load %arg1[%c2_219, %c0_220, %c0_221] : memref<16x16x128xf32, #tpu.memory_space<vmem>>, vector<1x16x128xf32>
    %225 = vector.shape_cast %224 : vector<1x16x128xf32> to vector<16x128xf32>
    %c3_222 = arith.constant 3 : index
    %c0_223 = arith.constant 0 : index
    %c0_224 = arith.constant 0 : index
    %226 = vector.load %arg1[%c3_222, %c0_223, %c0_224] : memref<16x16x128xf32, #tpu.memory_space<vmem>>, vector<1x16x128xf32>
    %227 = vector.shape_cast %226 : vector<1x16x128xf32> to vector<16x128xf32>
    %228 = arith.maximumf %225, %227 : vector<16x128xf32>
    %c4_225 = arith.constant 4 : index
    %c0_226 = arith.constant 0 : index
    %c0_227 = arith.constant 0 : index
    %229 = vector.load %arg1[%c4_225, %c0_226, %c0_227] : memref<16x16x128xf32, #tpu.memory_space<vmem>>, vector<1x16x128xf32>
    %230 = vector.shape_cast %229 : vector<1x16x128xf32> to vector<16x128xf32>
    %231 = arith.maximumf %228, %230 : vector<16x128xf32>
    %c0_228 = arith.constant 0 : index
    %c0_229 = arith.constant 0 : index
    %232 = vector.load %arg3[%c0_228, %c0_229] : memref<16x128xf32, #tpu.memory_space<vmem>>, vector<16x128xf32>
    tpu.vector_store %arg3[%c0_228, %c0_229], %231 {strides = array<i32>} : memref<16x128xf32, #tpu.memory_space<vmem>>, vector<16x128xf32>,
    %c0_230 = arith.constant 0 : index
    %c0_231 = arith.constant 0 : index
    %233 = vector.load %arg3[%c0_230, %c0_231] : memref<16x128xf32, #tpu.memory_space<vmem>>, vector<14x128xf32>
    %c1_232 = arith.constant 1 : index
    %c0_233 = arith.constant 0 : index
    %234 = vector.load %arg3[%c1_232, %c0_233] : memref<16x128xf32, #tpu.memory_space<vmem>>, vector<14x128xf32>
    %235 = arith.maximumf %233, %234 : vector<14x128xf32>
    %c2_234 = arith.constant 2 : index
    %c0_235 = arith.constant 0 : index
    %236 = vector.load %arg3[%c2_234, %c0_235] : memref<16x128xf32, #tpu.memory_space<vmem>>, vector<14x128xf32>
    %237 = arith.maximumf %235, %236 : vector<14x128xf32>
    %cst_236 = arith.constant dense<0.000000e+00> : vector<128xf32>
    %238 = vector.multi_reduction <add>, %237, %cst_236 [0] : vector<14x128xf32> to vector<128xf32>
    %239 = vector.shape_cast %238 : vector<128xf32> to vector<1x128xf32>
    %240 = arith.addf %223, %239 : vector<1x128xf32>
    %c3_237 = arith.constant 3 : index
    %c0_238 = arith.constant 0 : index
    %c0_239 = arith.constant 0 : index
    %241 = vector.load %arg1[%c3_237, %c0_238, %c0_239] : memref<16x16x128xf32, #tpu.memory_space<vmem>>, vector<1x16x128xf32>
    %242 = vector.shape_cast %241 : vector<1x16x128xf32> to vector<16x128xf32>
    %c4_240 = arith.constant 4 : index
    %c0_241 = arith.constant 0 : index
    %c0_242 = arith.constant 0 : index
    %243 = vector.load %arg1[%c4_240, %c0_241, %c0_242] : memref<16x16x128xf32, #tpu.memory_space<vmem>>, vector<1x16x128xf32>
    %244 = vector.shape_cast %243 : vector<1x16x128xf32> to vector<16x128xf32>
    %245 = arith.maximumf %242, %244 : vector<16x128xf32>
    %c5_243 = arith.constant 5 : index
    %c0_244 = arith.constant 0 : index
    %c0_245 = arith.constant 0 : index
    %246 = vector.load %arg1[%c5_243, %c0_244, %c0_245] : memref<16x16x128xf32, #tpu.memory_space<vmem>>, vector<1x16x128xf32>
    %247 = vector.shape_cast %246 : vector<1x16x128xf32> to vector<16x128xf32>
    %248 = arith.maximumf %245, %247 : vector<16x128xf32>
    %c0_246 = arith.constant 0 : index
    %c0_247 = arith.constant 0 : index
    %249 = vector.load %arg3[%c0_246, %c0_247] : memref<16x128xf32, #tpu.memory_space<vmem>>, vector<16x128xf32>
    tpu.vector_store %arg3[%c0_246, %c0_247], %248 {strides = array<i32>} : memref<16x128xf32, #tpu.memory_space<vmem>>, vector<16x128xf32>,
    %c0_248 = arith.constant 0 : index
    %c0_249 = arith.constant 0 : index
    %250 = vector.load %arg3[%c0_248, %c0_249] : memref<16x128xf32, #tpu.memory_space<vmem>>, vector<14x128xf32>
    %c1_250 = arith.constant 1 : index
    %c0_251 = arith.constant 0 : index
    %251 = vector.load %arg3[%c1_250, %c0_251] : memref<16x128xf32, #tpu.memory_space<vmem>>, vector<14x128xf32>
    %252 = arith.maximumf %250, %251 : vector<14x128xf32>
    %c2_252 = arith.constant 2 : index
    %c0_253 = arith.constant 0 : index
    %253 = vector.load %arg3[%c2_252, %c0_253] : memref<16x128xf32, #tpu.memory_space<vmem>>, vector<14x128xf32>
    %254 = arith.maximumf %252, %253 : vector<14x128xf32>
    %cst_254 = arith.constant dense<0.000000e+00> : vector<128xf32>
    %255 = vector.multi_reduction <add>, %254, %cst_254 [0] : vector<14x128xf32> to vector<128xf32>
    %256 = vector.shape_cast %255 : vector<128xf32> to vector<1x128xf32>
    %257 = arith.addf %240, %256 : vector<1x128xf32>
    %c4_255 = arith.constant 4 : index
    %c0_256 = arith.constant 0 : index
    %c0_257 = arith.constant 0 : index
    %258 = vector.load %arg1[%c4_255, %c0_256, %c0_257] : memref<16x16x128xf32, #tpu.memory_space<vmem>>, vector<1x16x128xf32>
    %259 = vector.shape_cast %258 : vector<1x16x128xf32> to vector<16x128xf32>
    %c5_258 = arith.constant 5 : index
    %c0_259 = arith.constant 0 : index
    %c0_260 = arith.constant 0 : index
    %260 = vector.load %arg1[%c5_258, %c0_259, %c0_260] : memref<16x16x128xf32, #tpu.memory_space<vmem>>, vector<1x16x128xf32>
    %261 = vector.shape_cast %260 : vector<1x16x128xf32> to vector<16x128xf32>
    %262 = arith.maximumf %259, %261 : vector<16x128xf32>
    %c6_261 = arith.constant 6 : index
    %c0_262 = arith.constant 0 : index
    %c0_263 = arith.constant 0 : index
    %263 = vector.load %arg1[%c6_261, %c0_262, %c0_263] : memref<16x16x128xf32, #tpu.memory_space<vmem>>, vector<1x16x128xf32>
    %264 = vector.shape_cast %263 : vector<1x16x128xf32> to vector<16x128xf32>
    %265 = arith.maximumf %262, %264 : vector<16x128xf32>
    %c0_264 = arith.constant 0 : index
    %c0_265 = arith.constant 0 : index
    %266 = vector.load %arg3[%c0_264, %c0_265] : memref<16x128xf32, #tpu.memory_space<vmem>>, vector<16x128xf32>
    tpu.vector_store %arg3[%c0_264, %c0_265], %265 {strides = array<i32>} : memref<16x128xf32, #tpu.memory_space<vmem>>, vector<16x128xf32>,
    %c0_266 = arith.constant 0 : index
    %c0_267 = arith.constant 0 : index
    %267 = vector.load %arg3[%c0_266, %c0_267] : memref<16x128xf32, #tpu.memory_space<vmem>>, vector<14x128xf32>
    %c1_268 = arith.constant 1 : index
    %c0_269 = arith.constant 0 : index
    %268 = vector.load %arg3[%c1_268, %c0_269] : memref<16x128xf32, #tpu.memory_space<vmem>>, vector<14x128xf32>
    %269 = arith.maximumf %267, %268 : vector<14x128xf32>
    %c2_270 = arith.constant 2 : index
    %c0_271 = arith.constant 0 : index
    %270 = vector.load %arg3[%c2_270, %c0_271] : memref<16x128xf32, #tpu.memory_space<vmem>>, vector<14x128xf32>
    %271 = arith.maximumf %269, %270 : vector<14x128xf32>
    %cst_272 = arith.constant dense<0.000000e+00> : vector<128xf32>
    %272 = vector.multi_reduction <add>, %271, %cst_272 [0] : vector<14x128xf32> to vector<128xf32>
    %273 = vector.shape_cast %272 : vector<128xf32> to vector<1x128xf32>
    %274 = arith.addf %257, %273 : vector<1x128xf32>
    %c5_273 = arith.constant 5 : index
    %c0_274 = arith.constant 0 : index
    %c0_275 = arith.constant 0 : index
    %275 = vector.load %arg1[%c5_273, %c0_274, %c0_275] : memref<16x16x128xf32, #tpu.memory_space<vmem>>, vector<1x16x128xf32>
    %276 = vector.shape_cast %275 : vector<1x16x128xf32> to vector<16x128xf32>
    %c6_276 = arith.constant 6 : index
    %c0_277 = arith.constant 0 : index
    %c0_278 = arith.constant 0 : index
    %277 = vector.load %arg1[%c6_276, %c0_277, %c0_278] : memref<16x16x128xf32, #tpu.memory_space<vmem>>, vector<1x16x128xf32>
    %278 = vector.shape_cast %277 : vector<1x16x128xf32> to vector<16x128xf32>
    %279 = arith.maximumf %276, %278 : vector<16x128xf32>
    %c7_279 = arith.constant 7 : index
    %c0_280 = arith.constant 0 : index
    %c0_281 = arith.constant 0 : index
    %280 = vector.load %arg1[%c7_279, %c0_280, %c0_281] : memref<16x16x128xf32, #tpu.memory_space<vmem>>, vector<1x16x128xf32>
    %281 = vector.shape_cast %280 : vector<1x16x128xf32> to vector<16x128xf32>
    %282 = arith.maximumf %279, %281 : vector<16x128xf32>
    %c0_282 = arith.constant 0 : index
    %c0_283 = arith.constant 0 : index
    %283 = vector.load %arg3[%c0_282, %c0_283] : memref<16x128xf32, #tpu.memory_space<vmem>>, vector<16x128xf32>
    tpu.vector_store %arg3[%c0_282, %c0_283], %282 {strides = array<i32>} : memref<16x128xf32, #tpu.memory_space<vmem>>, vector<16x128xf32>,
    %c0_284 = arith.constant 0 : index
    %c0_285 = arith.constant 0 : index
    %284 = vector.load %arg3[%c0_284, %c0_285] : memref<16x128xf32, #tpu.memory_space<vmem>>, vector<14x128xf32>
    %c1_286 = arith.constant 1 : index
    %c0_287 = arith.constant 0 : index
    %285 = vector.load %arg3[%c1_286, %c0_287] : memref<16x128xf32, #tpu.memory_space<vmem>>, vector<14x128xf32>
    %286 = arith.maximumf %284, %285 : vector<14x128xf32>
    %c2_288 = arith.constant 2 : index
    %c0_289 = arith.constant 0 : index
    %287 = vector.load %arg3[%c2_288, %c0_289] : memref<16x128xf32, #tpu.memory_space<vmem>>, vector<14x128xf32>
    %288 = arith.maximumf %286, %287 : vector<14x128xf32>
    %cst_290 = arith.constant dense<0.000000e+00> : vector<128xf32>
    %289 = vector.multi_reduction <add>, %288, %cst_290 [0] : vector<14x128xf32> to vector<128xf32>
    %290 = vector.shape_cast %289 : vector<128xf32> to vector<1x128xf32>
    %291 = arith.addf %274, %290 : vector<1x128xf32>
    %c6_291 = arith.constant 6 : index
    %c0_292 = arith.constant 0 : index
    %c0_293 = arith.constant 0 : index
    %292 = vector.load %arg1[%c6_291, %c0_292, %c0_293] : memref<16x16x128xf32, #tpu.memory_space<vmem>>, vector<1x16x128xf32>
    %293 = vector.shape_cast %292 : vector<1x16x128xf32> to vector<16x128xf32>
    %c7_294 = arith.constant 7 : index
    %c0_295 = arith.constant 0 : index
    %c0_296 = arith.constant 0 : index
    %294 = vector.load %arg1[%c7_294, %c0_295, %c0_296] : memref<16x16x128xf32, #tpu.memory_space<vmem>>, vector<1x16x128xf32>
    %295 = vector.shape_cast %294 : vector<1x16x128xf32> to vector<16x128xf32>
    %296 = arith.maximumf %293, %295 : vector<16x128xf32>
    %c8_297 = arith.constant 8 : index
    %c0_298 = arith.constant 0 : index
    %c0_299 = arith.constant 0 : index
    %297 = vector.load %arg1[%c8_297, %c0_298, %c0_299] : memref<16x16x128xf32, #tpu.memory_space<vmem>>, vector<1x16x128xf32>
    %298 = vector.shape_cast %297 : vector<1x16x128xf32> to vector<16x128xf32>
    %299 = arith.maximumf %296, %298 : vector<16x128xf32>
    %c0_300 = arith.constant 0 : index
    %c0_301 = arith.constant 0 : index
    %300 = vector.load %arg3[%c0_300, %c0_301] : memref<16x128xf32, #tpu.memory_space<vmem>>, vector<16x128xf32>
    tpu.vector_store %arg3[%c0_300, %c0_301], %299 {strides = array<i32>} : memref<16x128xf32, #tpu.memory_space<vmem>>, vector<16x128xf32>,
    %c0_302 = arith.constant 0 : index
    %c0_303 = arith.constant 0 : index
    %301 = vector.load %arg3[%c0_302, %c0_303] : memref<16x128xf32, #tpu.memory_space<vmem>>, vector<14x128xf32>
    %c1_304 = arith.constant 1 : index
    %c0_305 = arith.constant 0 : index
    %302 = vector.load %arg3[%c1_304, %c0_305] : memref<16x128xf32, #tpu.memory_space<vmem>>, vector<14x128xf32>
    %303 = arith.maximumf %301, %302 : vector<14x128xf32>
    %c2_306 = arith.constant 2 : index
    %c0_307 = arith.constant 0 : index
    %304 = vector.load %arg3[%c2_306, %c0_307] : memref<16x128xf32, #tpu.memory_space<vmem>>, vector<14x128xf32>
    %305 = arith.maximumf %303, %304 : vector<14x128xf32>
    %cst_308 = arith.constant dense<0.000000e+00> : vector<128xf32>
    %306 = vector.multi_reduction <add>, %305, %cst_308 [0] : vector<14x128xf32> to vector<128xf32>
    %307 = vector.shape_cast %306 : vector<128xf32> to vector<1x128xf32>
    %308 = arith.addf %291, %307 : vector<1x128xf32>
    %c7_309 = arith.constant 7 : index
    %c0_310 = arith.constant 0 : index
    %c0_311 = arith.constant 0 : index
    %309 = vector.load %arg1[%c7_309, %c0_310, %c0_311] : memref<16x16x128xf32, #tpu.memory_space<vmem>>, vector<1x16x128xf32>
    %310 = vector.shape_cast %309 : vector<1x16x128xf32> to vector<16x128xf32>
    %c8_312 = arith.constant 8 : index
    %c0_313 = arith.constant 0 : index
    %c0_314 = arith.constant 0 : index
    %311 = vector.load %arg1[%c8_312, %c0_313, %c0_314] : memref<16x16x128xf32, #tpu.memory_space<vmem>>, vector<1x16x128xf32>
    %312 = vector.shape_cast %311 : vector<1x16x128xf32> to vector<16x128xf32>
    %313 = arith.maximumf %310, %312 : vector<16x128xf32>
    %c9_315 = arith.constant 9 : index
    %c0_316 = arith.constant 0 : index
    %c0_317 = arith.constant 0 : index
    %314 = vector.load %arg1[%c9_315, %c0_316, %c0_317] : memref<16x16x128xf32, #tpu.memory_space<vmem>>, vector<1x16x128xf32>
    %315 = vector.shape_cast %314 : vector<1x16x128xf32> to vector<16x128xf32>
    %316 = arith.maximumf %313, %315 : vector<16x128xf32>
    %c0_318 = arith.constant 0 : index
    %c0_319 = arith.constant 0 : index
    %317 = vector.load %arg3[%c0_318, %c0_319] : memref<16x128xf32, #tpu.memory_space<vmem>>, vector<16x128xf32>
    tpu.vector_store %arg3[%c0_318, %c0_319], %316 {strides = array<i32>} : memref<16x128xf32, #tpu.memory_space<vmem>>, vector<16x128xf32>,
    %c0_320 = arith.constant 0 : index
    %c0_321 = arith.constant 0 : index
    %318 = vector.load %arg3[%c0_320, %c0_321] : memref<16x128xf32, #tpu.memory_space<vmem>>, vector<14x128xf32>
    %c1_322 = arith.constant 1 : index
    %c0_323 = arith.constant 0 : index
    %319 = vector.load %arg3[%c1_322, %c0_323] : memref<16x128xf32, #tpu.memory_space<vmem>>, vector<14x128xf32>
    %320 = arith.maximumf %318, %319 : vector<14x128xf32>
    %c2_324 = arith.constant 2 : index
    %c0_325 = arith.constant 0 : index
    %321 = vector.load %arg3[%c2_324, %c0_325] : memref<16x128xf32, #tpu.memory_space<vmem>>, vector<14x128xf32>
    %322 = arith.maximumf %320, %321 : vector<14x128xf32>
    %cst_326 = arith.constant dense<0.000000e+00> : vector<128xf32>
    %323 = vector.multi_reduction <add>, %322, %cst_326 [0] : vector<14x128xf32> to vector<128xf32>
    %324 = vector.shape_cast %323 : vector<128xf32> to vector<1x128xf32>
    %325 = arith.addf %308, %324 : vector<1x128xf32>
    %c8_327 = arith.constant 8 : index
    %c0_328 = arith.constant 0 : index
    %c0_329 = arith.constant 0 : index
    %326 = vector.load %arg1[%c8_327, %c0_328, %c0_329] : memref<16x16x128xf32, #tpu.memory_space<vmem>>, vector<1x16x128xf32>
    %327 = vector.shape_cast %326 : vector<1x16x128xf32> to vector<16x128xf32>
    %c9_330 = arith.constant 9 : index
    %c0_331 = arith.constant 0 : index
    %c0_332 = arith.constant 0 : index
    %328 = vector.load %arg1[%c9_330, %c0_331, %c0_332] : memref<16x16x128xf32, #tpu.memory_space<vmem>>, vector<1x16x128xf32>
    %329 = vector.shape_cast %328 : vector<1x16x128xf32> to vector<16x128xf32>
    %330 = arith.maximumf %327, %329 : vector<16x128xf32>
    %c10_333 = arith.constant 10 : index
    %c0_334 = arith.constant 0 : index
    %c0_335 = arith.constant 0 : index
    %331 = vector.load %arg1[%c10_333, %c0_334, %c0_335] : memref<16x16x128xf32, #tpu.memory_space<vmem>>, vector<1x16x128xf32>
    %332 = vector.shape_cast %331 : vector<1x16x128xf32> to vector<16x128xf32>
    %333 = arith.maximumf %330, %332 : vector<16x128xf32>
    %c0_336 = arith.constant 0 : index
    %c0_337 = arith.constant 0 : index
    %334 = vector.load %arg3[%c0_336, %c0_337] : memref<16x128xf32, #tpu.memory_space<vmem>>, vector<16x128xf32>
    tpu.vector_store %arg3[%c0_336, %c0_337], %333 {strides = array<i32>} : memref<16x128xf32, #tpu.memory_space<vmem>>, vector<16x128xf32>,
    %c0_338 = arith.constant 0 : index
    %c0_339 = arith.constant 0 : index
    %335 = vector.load %arg3[%c0_338, %c0_339] : memref<16x128xf32, #tpu.memory_space<vmem>>, vector<14x128xf32>
    %c1_340 = arith.constant 1 : index
    %c0_341 = arith.constant 0 : index
    %336 = vector.load %arg3[%c1_340, %c0_341] : memref<16x128xf32, #tpu.memory_space<vmem>>, vector<14x128xf32>
    %337 = arith.maximumf %335, %336 : vector<14x128xf32>
    %c2_342 = arith.constant 2 : index
    %c0_343 = arith.constant 0 : index
    %338 = vector.load %arg3[%c2_342, %c0_343] : memref<16x128xf32, #tpu.memory_space<vmem>>, vector<14x128xf32>
    %339 = arith.maximumf %337, %338 : vector<14x128xf32>
    %cst_344 = arith.constant dense<0.000000e+00> : vector<128xf32>
    %340 = vector.multi_reduction <add>, %339, %cst_344 [0] : vector<14x128xf32> to vector<128xf32>
    %341 = vector.shape_cast %340 : vector<128xf32> to vector<1x128xf32>
    %342 = arith.addf %325, %341 : vector<1x128xf32>
    %c9_345 = arith.constant 9 : index
    %c0_346 = arith.constant 0 : index
    %c0_347 = arith.constant 0 : index
    %343 = vector.load %arg1[%c9_345, %c0_346, %c0_347] : memref<16x16x128xf32, #tpu.memory_space<vmem>>, vector<1x16x128xf32>
    %344 = vector.shape_cast %343 : vector<1x16x128xf32> to vector<16x128xf32>
    %c10_348 = arith.constant 10 : index
    %c0_349 = arith.constant 0 : index
    %c0_350 = arith.constant 0 : index
    %345 = vector.load %arg1[%c10_348, %c0_349, %c0_350] : memref<16x16x128xf32, #tpu.memory_space<vmem>>, vector<1x16x128xf32>
    %346 = vector.shape_cast %345 : vector<1x16x128xf32> to vector<16x128xf32>
    %347 = arith.maximumf %344, %346 : vector<16x128xf32>
    %c11_351 = arith.constant 11 : index
    %c0_352 = arith.constant 0 : index
    %c0_353 = arith.constant 0 : index
    %348 = vector.load %arg1[%c11_351, %c0_352, %c0_353] : memref<16x16x128xf32, #tpu.memory_space<vmem>>, vector<1x16x128xf32>
    %349 = vector.shape_cast %348 : vector<1x16x128xf32> to vector<16x128xf32>
    %350 = arith.maximumf %347, %349 : vector<16x128xf32>
    %c0_354 = arith.constant 0 : index
    %c0_355 = arith.constant 0 : index
    %351 = vector.load %arg3[%c0_354, %c0_355] : memref<16x128xf32, #tpu.memory_space<vmem>>, vector<16x128xf32>
    tpu.vector_store %arg3[%c0_354, %c0_355], %350 {strides = array<i32>} : memref<16x128xf32, #tpu.memory_space<vmem>>, vector<16x128xf32>,
    %c0_356 = arith.constant 0 : index
    %c0_357 = arith.constant 0 : index
    %352 = vector.load %arg3[%c0_356, %c0_357] : memref<16x128xf32, #tpu.memory_space<vmem>>, vector<14x128xf32>
    %c1_358 = arith.constant 1 : index
    %c0_359 = arith.constant 0 : index
    %353 = vector.load %arg3[%c1_358, %c0_359] : memref<16x128xf32, #tpu.memory_space<vmem>>, vector<14x128xf32>
    %354 = arith.maximumf %352, %353 : vector<14x128xf32>
    %c2_360 = arith.constant 2 : index
    %c0_361 = arith.constant 0 : index
    %355 = vector.load %arg3[%c2_360, %c0_361] : memref<16x128xf32, #tpu.memory_space<vmem>>, vector<14x128xf32>
    %356 = arith.maximumf %354, %355 : vector<14x128xf32>
    %cst_362 = arith.constant dense<0.000000e+00> : vector<128xf32>
    %357 = vector.multi_reduction <add>, %356, %cst_362 [0] : vector<14x128xf32> to vector<128xf32>
    %358 = vector.shape_cast %357 : vector<128xf32> to vector<1x128xf32>
    %359 = arith.addf %342, %358 : vector<1x128xf32>
    %c10_363 = arith.constant 10 : index
    %c0_364 = arith.constant 0 : index
    %c0_365 = arith.constant 0 : index
    %360 = vector.load %arg1[%c10_363, %c0_364, %c0_365] : memref<16x16x128xf32, #tpu.memory_space<vmem>>, vector<1x16x128xf32>
    %361 = vector.shape_cast %360 : vector<1x16x128xf32> to vector<16x128xf32>
    %c11_366 = arith.constant 11 : index
    %c0_367 = arith.constant 0 : index
    %c0_368 = arith.constant 0 : index
    %362 = vector.load %arg1[%c11_366, %c0_367, %c0_368] : memref<16x16x128xf32, #tpu.memory_space<vmem>>, vector<1x16x128xf32>
    %363 = vector.shape_cast %362 : vector<1x16x128xf32> to vector<16x128xf32>
    %364 = arith.maximumf %361, %363 : vector<16x128xf32>
    %c12_369 = arith.constant 12 : index
    %c0_370 = arith.constant 0 : index
    %c0_371 = arith.constant 0 : index
    %365 = vector.load %arg1[%c12_369, %c0_370, %c0_371] : memref<16x16x128xf32, #tpu.memory_space<vmem>>, vector<1x16x128xf32>
    %366 = vector.shape_cast %365 : vector<1x16x128xf32> to vector<16x128xf32>
    %367 = arith.maximumf %364, %366 : vector<16x128xf32>
    %c0_372 = arith.constant 0 : index
    %c0_373 = arith.constant 0 : index
    %368 = vector.load %arg3[%c0_372, %c0_373] : memref<16x128xf32, #tpu.memory_space<vmem>>, vector<16x128xf32>
    tpu.vector_store %arg3[%c0_372, %c0_373], %367 {strides = array<i32>} : memref<16x128xf32, #tpu.memory_space<vmem>>, vector<16x128xf32>,
    %c0_374 = arith.constant 0 : index
    %c0_375 = arith.constant 0 : index
    %369 = vector.load %arg3[%c0_374, %c0_375] : memref<16x128xf32, #tpu.memory_space<vmem>>, vector<14x128xf32>
    %c1_376 = arith.constant 1 : index
    %c0_377 = arith.constant 0 : index
    %370 = vector.load %arg3[%c1_376, %c0_377] : memref<16x128xf32, #tpu.memory_space<vmem>>, vector<14x128xf32>
    %371 = arith.maximumf %369, %370 : vector<14x128xf32>
    %c2_378 = arith.constant 2 : index
    %c0_379 = arith.constant 0 : index
    %372 = vector.load %arg3[%c2_378, %c0_379] : memref<16x128xf32, #tpu.memory_space<vmem>>, vector<14x128xf32>
    %373 = arith.maximumf %371, %372 : vector<14x128xf32>
    %cst_380 = arith.constant dense<0.000000e+00> : vector<128xf32>
    %374 = vector.multi_reduction <add>, %373, %cst_380 [0] : vector<14x128xf32> to vector<128xf32>
    %375 = vector.shape_cast %374 : vector<128xf32> to vector<1x128xf32>
    %376 = arith.addf %359, %375 : vector<1x128xf32>
    %c11_381 = arith.constant 11 : index
    %c0_382 = arith.constant 0 : index
    %c0_383 = arith.constant 0 : index
    %377 = vector.load %arg1[%c11_381, %c0_382, %c0_383] : memref<16x16x128xf32, #tpu.memory_space<vmem>>, vector<1x16x128xf32>
    %378 = vector.shape_cast %377 : vector<1x16x128xf32> to vector<16x128xf32>
    %c12_384 = arith.constant 12 : index
    %c0_385 = arith.constant 0 : index
    %c0_386 = arith.constant 0 : index
    %379 = vector.load %arg1[%c12_384, %c0_385, %c0_386] : memref<16x16x128xf32, #tpu.memory_space<vmem>>, vector<1x16x128xf32>
    %380 = vector.shape_cast %379 : vector<1x16x128xf32> to vector<16x128xf32>
    %381 = arith.maximumf %378, %380 : vector<16x128xf32>
    %c13_387 = arith.constant 13 : index
    %c0_388 = arith.constant 0 : index
    %c0_389 = arith.constant 0 : index
    %382 = vector.load %arg1[%c13_387, %c0_388, %c0_389] : memref<16x16x128xf32, #tpu.memory_space<vmem>>, vector<1x16x128xf32>
    %383 = vector.shape_cast %382 : vector<1x16x128xf32> to vector<16x128xf32>
    %384 = arith.maximumf %381, %383 : vector<16x128xf32>
    %c0_390 = arith.constant 0 : index
    %c0_391 = arith.constant 0 : index
    %385 = vector.load %arg3[%c0_390, %c0_391] : memref<16x128xf32, #tpu.memory_space<vmem>>, vector<16x128xf32>
    tpu.vector_store %arg3[%c0_390, %c0_391], %384 {strides = array<i32>} : memref<16x128xf32, #tpu.memory_space<vmem>>, vector<16x128xf32>,
    %c0_392 = arith.constant 0 : index
    %c0_393 = arith.constant 0 : index
    %386 = vector.load %arg3[%c0_392, %c0_393] : memref<16x128xf32, #tpu.memory_space<vmem>>, vector<14x128xf32>
    %c1_394 = arith.constant 1 : index
    %c0_395 = arith.constant 0 : index
    %387 = vector.load %arg3[%c1_394, %c0_395] : memref<16x128xf32, #tpu.memory_space<vmem>>, vector<14x128xf32>
    %388 = arith.maximumf %386, %387 : vector<14x128xf32>
    %c2_396 = arith.constant 2 : index
    %c0_397 = arith.constant 0 : index
    %389 = vector.load %arg3[%c2_396, %c0_397] : memref<16x128xf32, #tpu.memory_space<vmem>>, vector<14x128xf32>
    %390 = arith.maximumf %388, %389 : vector<14x128xf32>
    %cst_398 = arith.constant dense<0.000000e+00> : vector<128xf32>
    %391 = vector.multi_reduction <add>, %390, %cst_398 [0] : vector<14x128xf32> to vector<128xf32>
    %392 = vector.shape_cast %391 : vector<128xf32> to vector<1x128xf32>
    %393 = arith.addf %376, %392 : vector<1x128xf32>
    %c12_399 = arith.constant 12 : index
    %c0_400 = arith.constant 0 : index
    %c0_401 = arith.constant 0 : index
    %394 = vector.load %arg1[%c12_399, %c0_400, %c0_401] : memref<16x16x128xf32, #tpu.memory_space<vmem>>, vector<1x16x128xf32>
    %395 = vector.shape_cast %394 : vector<1x16x128xf32> to vector<16x128xf32>
    %c13_402 = arith.constant 13 : index
    %c0_403 = arith.constant 0 : index
    %c0_404 = arith.constant 0 : index
    %396 = vector.load %arg1[%c13_402, %c0_403, %c0_404] : memref<16x16x128xf32, #tpu.memory_space<vmem>>, vector<1x16x128xf32>
    %397 = vector.shape_cast %396 : vector<1x16x128xf32> to vector<16x128xf32>
    %398 = arith.maximumf %395, %397 : vector<16x128xf32>
    %c14_405 = arith.constant 14 : index
    %c0_406 = arith.constant 0 : index
    %c0_407 = arith.constant 0 : index
    %399 = vector.load %arg1[%c14_405, %c0_406, %c0_407] : memref<16x16x128xf32, #tpu.memory_space<vmem>>, vector<1x16x128xf32>
    %400 = vector.shape_cast %399 : vector<1x16x128xf32> to vector<16x128xf32>
    %401 = arith.maximumf %398, %400 : vector<16x128xf32>
    %c0_408 = arith.constant 0 : index
    %c0_409 = arith.constant 0 : index
    %402 = vector.load %arg3[%c0_408, %c0_409] : memref<16x128xf32, #tpu.memory_space<vmem>>, vector<16x128xf32>
    tpu.vector_store %arg3[%c0_408, %c0_409], %401 {strides = array<i32>} : memref<16x128xf32, #tpu.memory_space<vmem>>, vector<16x128xf32>,
    %c0_410 = arith.constant 0 : index
    %c0_411 = arith.constant 0 : index
    %403 = vector.load %arg3[%c0_410, %c0_411] : memref<16x128xf32, #tpu.memory_space<vmem>>, vector<14x128xf32>
    %c1_412 = arith.constant 1 : index
    %c0_413 = arith.constant 0 : index
    %404 = vector.load %arg3[%c1_412, %c0_413] : memref<16x128xf32, #tpu.memory_space<vmem>>, vector<14x128xf32>
    %405 = arith.maximumf %403, %404 : vector<14x128xf32>
    %c2_414 = arith.constant 2 : index
    %c0_415 = arith.constant 0 : index
    %406 = vector.load %arg3[%c2_414, %c0_415] : memref<16x128xf32, #tpu.memory_space<vmem>>, vector<14x128xf32>
    %407 = arith.maximumf %405, %406 : vector<14x128xf32>
    %cst_416 = arith.constant dense<0.000000e+00> : vector<128xf32>
    %408 = vector.multi_reduction <add>, %407, %cst_416 [0] : vector<14x128xf32> to vector<128xf32>
    %409 = vector.shape_cast %408 : vector<128xf32> to vector<1x128xf32>
    %410 = arith.addf %393, %409 : vector<1x128xf32>
    %c13_417 = arith.constant 13 : index
    %c0_418 = arith.constant 0 : index
    %c0_419 = arith.constant 0 : index
    %411 = vector.load %arg1[%c13_417, %c0_418, %c0_419] : memref<16x16x128xf32, #tpu.memory_space<vmem>>, vector<1x16x128xf32>
    %412 = vector.shape_cast %411 : vector<1x16x128xf32> to vector<16x128xf32>
    %c14_420 = arith.constant 14 : index
    %c0_421 = arith.constant 0 : index
    %c0_422 = arith.constant 0 : index
    %413 = vector.load %arg1[%c14_420, %c0_421, %c0_422] : memref<16x16x128xf32, #tpu.memory_space<vmem>>, vector<1x16x128xf32>
    %414 = vector.shape_cast %413 : vector<1x16x128xf32> to vector<16x128xf32>
    %415 = arith.maximumf %412, %414 : vector<16x128xf32>
    %c15_423 = arith.constant 15 : index
    %c0_424 = arith.constant 0 : index
    %c0_425 = arith.constant 0 : index
    %416 = vector.load %arg1[%c15_423, %c0_424, %c0_425] : memref<16x16x128xf32, #tpu.memory_space<vmem>>, vector<1x16x128xf32>
    %417 = vector.shape_cast %416 : vector<1x16x128xf32> to vector<16x128xf32>
    %418 = arith.maximumf %415, %417 : vector<16x128xf32>
    %c0_426 = arith.constant 0 : index
    %c0_427 = arith.constant 0 : index
    %419 = vector.load %arg3[%c0_426, %c0_427] : memref<16x128xf32, #tpu.memory_space<vmem>>, vector<16x128xf32>
    tpu.vector_store %arg3[%c0_426, %c0_427], %418 {strides = array<i32>} : memref<16x128xf32, #tpu.memory_space<vmem>>, vector<16x128xf32>,
    %c0_428 = arith.constant 0 : index
    %c0_429 = arith.constant 0 : index
    %420 = vector.load %arg3[%c0_428, %c0_429] : memref<16x128xf32, #tpu.memory_space<vmem>>, vector<14x128xf32>
    %c1_430 = arith.constant 1 : index
    %c0_431 = arith.constant 0 : index
    %421 = vector.load %arg3[%c1_430, %c0_431] : memref<16x128xf32, #tpu.memory_space<vmem>>, vector<14x128xf32>
    %422 = arith.maximumf %420, %421 : vector<14x128xf32>
    %c2_432 = arith.constant 2 : index
    %c0_433 = arith.constant 0 : index
    %423 = vector.load %arg3[%c2_432, %c0_433] : memref<16x128xf32, #tpu.memory_space<vmem>>, vector<14x128xf32>
    %424 = arith.maximumf %422, %423 : vector<14x128xf32>
    %cst_434 = arith.constant dense<0.000000e+00> : vector<128xf32>
    %425 = vector.multi_reduction <add>, %424, %cst_434 [0] : vector<14x128xf32> to vector<128xf32>
    %426 = vector.shape_cast %425 : vector<128xf32> to vector<1x128xf32>
    %427 = arith.addf %410, %426 : vector<1x128xf32>
    %cst_435 = arith.constant 0.000000e+00 : f32
    %428 = vector.broadcast %cst_435 : f32 to vector<1x128xf32>
    %429 = arith.maximumf %427, %428 : vector<1x128xf32>
    %cst_436 = arith.constant 1.000000e+00 : f32
    %430 = vector.broadcast %cst_436 : f32 to vector<1x128xf32>
    %431 = arith.addf %429, %430 : vector<1x128xf32>
    %432 = math.log %431 : vector<1x128xf32>
    %cst_437 = arith.constant 2.000000e+00 : f32
    %433 = math.log %cst_437 : f32
    %434 = vector.broadcast %433 : f32 to vector<1x128xf32>
    %435 = arith.divf %432, %434 : vector<1x128xf32>
    %cst_438 = arith.constant 0.200077668 : f32
    %436 = vector.broadcast %cst_438 : f32 to vector<1x128xf32>
    %437 = arith.mulf %436, %435 : vector<1x128xf32>
    %438 = arith.addf %190, %437 : vector<1x128xf32>
    %c0_439 = arith.constant 0 : index
    %c0_440 = arith.constant 0 : index
    %c0_441 = arith.constant 0 : index
    %439 = vector.load %arg1[%c0_439, %c0_440, %c0_441] : memref<16x16x128xf32, #tpu.memory_space<vmem>>, vector<1x16x128xf32>
    %440 = vector.shape_cast %439 : vector<1x16x128xf32> to vector<16x128xf32>
    %c1_442 = arith.constant 1 : index
    %c0_443 = arith.constant 0 : index
    %c0_444 = arith.constant 0 : index
    %441 = vector.load %arg1[%c1_442, %c0_443, %c0_444] : memref<16x16x128xf32, #tpu.memory_space<vmem>>, vector<1x16x128xf32>
    %442 = vector.shape_cast %441 : vector<1x16x128xf32> to vector<16x128xf32>
    %443 = arith.maximumf %440, %442 : vector<16x128xf32>
    %c2_445 = arith.constant 2 : index
    %c0_446 = arith.constant 0 : index
    %c0_447 = arith.constant 0 : index
    %444 = vector.load %arg1[%c2_445, %c0_446, %c0_447] : memref<16x16x128xf32, #tpu.memory_space<vmem>>, vector<1x16x128xf32>
    %445 = vector.shape_cast %444 : vector<1x16x128xf32> to vector<16x128xf32>
    %446 = arith.maximumf %443, %445 : vector<16x128xf32>
    %c3_448 = arith.constant 3 : index
    %c0_449 = arith.constant 0 : index
    %c0_450 = arith.constant 0 : index
    %447 = vector.load %arg1[%c3_448, %c0_449, %c0_450] : memref<16x16x128xf32, #tpu.memory_space<vmem>>, vector<1x16x128xf32>
    %448 = vector.shape_cast %447 : vector<1x16x128xf32> to vector<16x128xf32>
    %449 = arith.maximumf %446, %448 : vector<16x128xf32>
    %c0_451 = arith.constant 0 : index
    %c0_452 = arith.constant 0 : index
    %450 = vector.load %arg3[%c0_451, %c0_452] : memref<16x128xf32, #tpu.memory_space<vmem>>, vector<16x128xf32>
    tpu.vector_store %arg3[%c0_451, %c0_452], %449 {strides = array<i32>} : memref<16x128xf32, #tpu.memory_space<vmem>>, vector<16x128xf32>,
    %c0_453 = arith.constant 0 : index
    %c0_454 = arith.constant 0 : index
    %451 = tpu.strided_load %arg3[%c0_453, %c0_454] {strides = array<i32: 2, 1>} : memref<16x128xf32, #tpu.memory_space<vmem>>, vector<7x128xf32>
    %c1_455 = arith.constant 1 : index
    %c0_456 = arith.constant 0 : index
    %452 = tpu.strided_load %arg3[%c1_455, %c0_456] {strides = array<i32: 2, 1>} : memref<16x128xf32, #tpu.memory_space<vmem>>, vector<7x128xf32>
    %453 = arith.maximumf %451, %452 : vector<7x128xf32>
    %c2_457 = arith.constant 2 : index
    %c0_458 = arith.constant 0 : index
    %454 = tpu.strided_load %arg3[%c2_457, %c0_458] {strides = array<i32: 2, 1>} : memref<16x128xf32, #tpu.memory_space<vmem>>, vector<7x128xf32>
    %455 = arith.maximumf %453, %454 : vector<7x128xf32>
    %c3_459 = arith.constant 3 : index
    %c0_460 = arith.constant 0 : index
    %456 = tpu.strided_load %arg3[%c3_459, %c0_460] {strides = array<i32: 2, 1>} : memref<16x128xf32, #tpu.memory_space<vmem>>, vector<7x128xf32>
    %457 = arith.maximumf %455, %456 : vector<7x128xf32>
    %cst_461 = arith.constant dense<0.000000e+00> : vector<128xf32>
    %458 = vector.multi_reduction <add>, %457, %cst_461 [0] : vector<7x128xf32> to vector<128xf32>
    %459 = vector.shape_cast %458 : vector<128xf32> to vector<1x128xf32>
    %c2_462 = arith.constant 2 : index
    %c0_463 = arith.constant 0 : index
    %c0_464 = arith.constant 0 : index
    %460 = vector.load %arg1[%c2_462, %c0_463, %c0_464] : memref<16x16x128xf32, #tpu.memory_space<vmem>>, vector<1x16x128xf32>
    %461 = vector.shape_cast %460 : vector<1x16x128xf32> to vector<16x128xf32>
    %c3_465 = arith.constant 3 : index
    %c0_466 = arith.constant 0 : index
    %c0_467 = arith.constant 0 : index
    %462 = vector.load %arg1[%c3_465, %c0_466, %c0_467] : memref<16x16x128xf32, #tpu.memory_space<vmem>>, vector<1x16x128xf32>
    %463 = vector.shape_cast %462 : vector<1x16x128xf32> to vector<16x128xf32>
    %464 = arith.maximumf %461, %463 : vector<16x128xf32>
    %c4_468 = arith.constant 4 : index
    %c0_469 = arith.constant 0 : index
    %c0_470 = arith.constant 0 : index
    %465 = vector.load %arg1[%c4_468, %c0_469, %c0_470] : memref<16x16x128xf32, #tpu.memory_space<vmem>>, vector<1x16x128xf32>
    %466 = vector.shape_cast %465 : vector<1x16x128xf32> to vector<16x128xf32>
    %467 = arith.maximumf %464, %466 : vector<16x128xf32>
    %c5_471 = arith.constant 5 : index
    %c0_472 = arith.constant 0 : index
    %c0_473 = arith.constant 0 : index
    %468 = vector.load %arg1[%c5_471, %c0_472, %c0_473] : memref<16x16x128xf32, #tpu.memory_space<vmem>>, vector<1x16x128xf32>
    %469 = vector.shape_cast %468 : vector<1x16x128xf32> to vector<16x128xf32>
    %470 = arith.maximumf %467, %469 : vector<16x128xf32>
    %c0_474 = arith.constant 0 : index
    %c0_475 = arith.constant 0 : index
    %471 = vector.load %arg3[%c0_474, %c0_475] : memref<16x128xf32, #tpu.memory_space<vmem>>, vector<16x128xf32>
    tpu.vector_store %arg3[%c0_474, %c0_475], %470 {strides = array<i32>} : memref<16x128xf32, #tpu.memory_space<vmem>>, vector<16x128xf32>,
    %c0_476 = arith.constant 0 : index
    %c0_477 = arith.constant 0 : index
    %472 = tpu.strided_load %arg3[%c0_476, %c0_477] {strides = array<i32: 2, 1>} : memref<16x128xf32, #tpu.memory_space<vmem>>, vector<7x128xf32>
    %c1_478 = arith.constant 1 : index
    %c0_479 = arith.constant 0 : index
    %473 = tpu.strided_load %arg3[%c1_478, %c0_479] {strides = array<i32: 2, 1>} : memref<16x128xf32, #tpu.memory_space<vmem>>, vector<7x128xf32>
    %474 = arith.maximumf %472, %473 : vector<7x128xf32>
    %c2_480 = arith.constant 2 : index
    %c0_481 = arith.constant 0 : index
    %475 = tpu.strided_load %arg3[%c2_480, %c0_481] {strides = array<i32: 2, 1>} : memref<16x128xf32, #tpu.memory_space<vmem>>, vector<7x128xf32>
    %476 = arith.maximumf %474, %475 : vector<7x128xf32>
    %c3_482 = arith.constant 3 : index
    %c0_483 = arith.constant 0 : index
    %477 = tpu.strided_load %arg3[%c3_482, %c0_483] {strides = array<i32: 2, 1>} : memref<16x128xf32, #tpu.memory_space<vmem>>, vector<7x128xf32>
    %478 = arith.maximumf %476, %477 : vector<7x128xf32>
    %cst_484 = arith.constant dense<0.000000e+00> : vector<128xf32>
    %479 = vector.multi_reduction <add>, %478, %cst_484 [0] : vector<7x128xf32> to vector<128xf32>
    %480 = vector.shape_cast %479 : vector<128xf32> to vector<1x128xf32>
    %481 = arith.addf %459, %480 : vector<1x128xf32>
    %c4_485 = arith.constant 4 : index
    %c0_486 = arith.constant 0 : index
    %c0_487 = arith.constant 0 : index
    %482 = vector.load %arg1[%c4_485, %c0_486, %c0_487] : memref<16x16x128xf32, #tpu.memory_space<vmem>>, vector<1x16x128xf32>
    %483 = vector.shape_cast %482 : vector<1x16x128xf32> to vector<16x128xf32>
    %c5_488 = arith.constant 5 : index
    %c0_489 = arith.constant 0 : index
    %c0_490 = arith.constant 0 : index
    %484 = vector.load %arg1[%c5_488, %c0_489, %c0_490] : memref<16x16x128xf32, #tpu.memory_space<vmem>>, vector<1x16x128xf32>
    %485 = vector.shape_cast %484 : vector<1x16x128xf32> to vector<16x128xf32>
    %486 = arith.maximumf %483, %485 : vector<16x128xf32>
    %c6_491 = arith.constant 6 : index
    %c0_492 = arith.constant 0 : index
    %c0_493 = arith.constant 0 : index
    %487 = vector.load %arg1[%c6_491, %c0_492, %c0_493] : memref<16x16x128xf32, #tpu.memory_space<vmem>>, vector<1x16x128xf32>
    %488 = vector.shape_cast %487 : vector<1x16x128xf32> to vector<16x128xf32>
    %489 = arith.maximumf %486, %488 : vector<16x128xf32>
    %c7_494 = arith.constant 7 : index
    %c0_495 = arith.constant 0 : index
    %c0_496 = arith.constant 0 : index
    %490 = vector.load %arg1[%c7_494, %c0_495, %c0_496] : memref<16x16x128xf32, #tpu.memory_space<vmem>>, vector<1x16x128xf32>
    %491 = vector.shape_cast %490 : vector<1x16x128xf32> to vector<16x128xf32>
    %492 = arith.maximumf %489, %491 : vector<16x128xf32>
    %c0_497 = arith.constant 0 : index
    %c0_498 = arith.constant 0 : index
    %493 = vector.load %arg3[%c0_497, %c0_498] : memref<16x128xf32, #tpu.memory_space<vmem>>, vector<16x128xf32>
    tpu.vector_store %arg3[%c0_497, %c0_498], %492 {strides = array<i32>} : memref<16x128xf32, #tpu.memory_space<vmem>>, vector<16x128xf32>,
    %c0_499 = arith.constant 0 : index
    %c0_500 = arith.constant 0 : index
    %494 = tpu.strided_load %arg3[%c0_499, %c0_500] {strides = array<i32: 2, 1>} : memref<16x128xf32, #tpu.memory_space<vmem>>, vector<7x128xf32>
    %c1_501 = arith.constant 1 : index
    %c0_502 = arith.constant 0 : index
    %495 = tpu.strided_load %arg3[%c1_501, %c0_502] {strides = array<i32: 2, 1>} : memref<16x128xf32, #tpu.memory_space<vmem>>, vector<7x128xf32>
    %496 = arith.maximumf %494, %495 : vector<7x128xf32>
    %c2_503 = arith.constant 2 : index
    %c0_504 = arith.constant 0 : index
    %497 = tpu.strided_load %arg3[%c2_503, %c0_504] {strides = array<i32: 2, 1>} : memref<16x128xf32, #tpu.memory_space<vmem>>, vector<7x128xf32>
    %498 = arith.maximumf %496, %497 : vector<7x128xf32>
    %c3_505 = arith.constant 3 : index
    %c0_506 = arith.constant 0 : index
    %499 = tpu.strided_load %arg3[%c3_505, %c0_506] {strides = array<i32: 2, 1>} : memref<16x128xf32, #tpu.memory_space<vmem>>, vector<7x128xf32>
    %500 = arith.maximumf %498, %499 : vector<7x128xf32>
    %cst_507 = arith.constant dense<0.000000e+00> : vector<128xf32>
    %501 = vector.multi_reduction <add>, %500, %cst_507 [0] : vector<7x128xf32> to vector<128xf32>
    %502 = vector.shape_cast %501 : vector<128xf32> to vector<1x128xf32>
    %503 = arith.addf %481, %502 : vector<1x128xf32>
    %c6_508 = arith.constant 6 : index
    %c0_509 = arith.constant 0 : index
    %c0_510 = arith.constant 0 : index
    %504 = vector.load %arg1[%c6_508, %c0_509, %c0_510] : memref<16x16x128xf32, #tpu.memory_space<vmem>>, vector<1x16x128xf32>
    %505 = vector.shape_cast %504 : vector<1x16x128xf32> to vector<16x128xf32>
    %c7_511 = arith.constant 7 : index
    %c0_512 = arith.constant 0 : index
    %c0_513 = arith.constant 0 : index
    %506 = vector.load %arg1[%c7_511, %c0_512, %c0_513] : memref<16x16x128xf32, #tpu.memory_space<vmem>>, vector<1x16x128xf32>
    %507 = vector.shape_cast %506 : vector<1x16x128xf32> to vector<16x128xf32>
    %508 = arith.maximumf %505, %507 : vector<16x128xf32>
    %c8_514 = arith.constant 8 : index
    %c0_515 = arith.constant 0 : index
    %c0_516 = arith.constant 0 : index
    %509 = vector.load %arg1[%c8_514, %c0_515, %c0_516] : memref<16x16x128xf32, #tpu.memory_space<vmem>>, vector<1x16x128xf32>
    %510 = vector.shape_cast %509 : vector<1x16x128xf32> to vector<16x128xf32>
    %511 = arith.maximumf %508, %510 : vector<16x128xf32>
    %c9_517 = arith.constant 9 : index
    %c0_518 = arith.constant 0 : index
    %c0_519 = arith.constant 0 : index
    %512 = vector.load %arg1[%c9_517, %c0_518, %c0_519] : memref<16x16x128xf32, #tpu.memory_space<vmem>>, vector<1x16x128xf32>
    %513 = vector.shape_cast %512 : vector<1x16x128xf32> to vector<16x128xf32>
    %514 = arith.maximumf %511, %513 : vector<16x128xf32>
    %c0_520 = arith.constant 0 : index
    %c0_521 = arith.constant 0 : index
    %515 = vector.load %arg3[%c0_520, %c0_521] : memref<16x128xf32, #tpu.memory_space<vmem>>, vector<16x128xf32>
    tpu.vector_store %arg3[%c0_520, %c0_521], %514 {strides = array<i32>} : memref<16x128xf32, #tpu.memory_space<vmem>>, vector<16x128xf32>,
    %c0_522 = arith.constant 0 : index
    %c0_523 = arith.constant 0 : index
    %516 = tpu.strided_load %arg3[%c0_522, %c0_523] {strides = array<i32: 2, 1>} : memref<16x128xf32, #tpu.memory_space<vmem>>, vector<7x128xf32>
    %c1_524 = arith.constant 1 : index
    %c0_525 = arith.constant 0 : index
    %517 = tpu.strided_load %arg3[%c1_524, %c0_525] {strides = array<i32: 2, 1>} : memref<16x128xf32, #tpu.memory_space<vmem>>, vector<7x128xf32>
    %518 = arith.maximumf %516, %517 : vector<7x128xf32>
    %c2_526 = arith.constant 2 : index
    %c0_527 = arith.constant 0 : index
    %519 = tpu.strided_load %arg3[%c2_526, %c0_527] {strides = array<i32: 2, 1>} : memref<16x128xf32, #tpu.memory_space<vmem>>, vector<7x128xf32>
    %520 = arith.maximumf %518, %519 : vector<7x128xf32>
    %c3_528 = arith.constant 3 : index
    %c0_529 = arith.constant 0 : index
    %521 = tpu.strided_load %arg3[%c3_528, %c0_529] {strides = array<i32: 2, 1>} : memref<16x128xf32, #tpu.memory_space<vmem>>, vector<7x128xf32>
    %522 = arith.maximumf %520, %521 : vector<7x128xf32>
    %cst_530 = arith.constant dense<0.000000e+00> : vector<128xf32>
    %523 = vector.multi_reduction <add>, %522, %cst_530 [0] : vector<7x128xf32> to vector<128xf32>
    %524 = vector.shape_cast %523 : vector<128xf32> to vector<1x128xf32>
    %525 = arith.addf %503, %524 : vector<1x128xf32>
    %c8_531 = arith.constant 8 : index
    %c0_532 = arith.constant 0 : index
    %c0_533 = arith.constant 0 : index
    %526 = vector.load %arg1[%c8_531, %c0_532, %c0_533] : memref<16x16x128xf32, #tpu.memory_space<vmem>>, vector<1x16x128xf32>
    %527 = vector.shape_cast %526 : vector<1x16x128xf32> to vector<16x128xf32>
    %c9_534 = arith.constant 9 : index
    %c0_535 = arith.constant 0 : index
    %c0_536 = arith.constant 0 : index
    %528 = vector.load %arg1[%c9_534, %c0_535, %c0_536] : memref<16x16x128xf32, #tpu.memory_space<vmem>>, vector<1x16x128xf32>
    %529 = vector.shape_cast %528 : vector<1x16x128xf32> to vector<16x128xf32>
    %530 = arith.maximumf %527, %529 : vector<16x128xf32>
    %c10_537 = arith.constant 10 : index
    %c0_538 = arith.constant 0 : index
    %c0_539 = arith.constant 0 : index
    %531 = vector.load %arg1[%c10_537, %c0_538, %c0_539] : memref<16x16x128xf32, #tpu.memory_space<vmem>>, vector<1x16x128xf32>
    %532 = vector.shape_cast %531 : vector<1x16x128xf32> to vector<16x128xf32>
    %533 = arith.maximumf %530, %532 : vector<16x128xf32>
    %c11_540 = arith.constant 11 : index
    %c0_541 = arith.constant 0 : index
    %c0_542 = arith.constant 0 : index
    %534 = vector.load %arg1[%c11_540, %c0_541, %c0_542] : memref<16x16x128xf32, #tpu.memory_space<vmem>>, vector<1x16x128xf32>
    %535 = vector.shape_cast %534 : vector<1x16x128xf32> to vector<16x128xf32>
    %536 = arith.maximumf %533, %535 : vector<16x128xf32>
    %c0_543 = arith.constant 0 : index
    %c0_544 = arith.constant 0 : index
    %537 = vector.load %arg3[%c0_543, %c0_544] : memref<16x128xf32, #tpu.memory_space<vmem>>, vector<16x128xf32>
    tpu.vector_store %arg3[%c0_543, %c0_544], %536 {strides = array<i32>} : memref<16x128xf32, #tpu.memory_space<vmem>>, vector<16x128xf32>,
    %c0_545 = arith.constant 0 : index
    %c0_546 = arith.constant 0 : index
    %538 = tpu.strided_load %arg3[%c0_545, %c0_546] {strides = array<i32: 2, 1>} : memref<16x128xf32, #tpu.memory_space<vmem>>, vector<7x128xf32>
    %c1_547 = arith.constant 1 : index
    %c0_548 = arith.constant 0 : index
    %539 = tpu.strided_load %arg3[%c1_547, %c0_548] {strides = array<i32: 2, 1>} : memref<16x128xf32, #tpu.memory_space<vmem>>, vector<7x128xf32>
    %540 = arith.maximumf %538, %539 : vector<7x128xf32>
    %c2_549 = arith.constant 2 : index
    %c0_550 = arith.constant 0 : index
    %541 = tpu.strided_load %arg3[%c2_549, %c0_550] {strides = array<i32: 2, 1>} : memref<16x128xf32, #tpu.memory_space<vmem>>, vector<7x128xf32>
    %542 = arith.maximumf %540, %541 : vector<7x128xf32>
    %c3_551 = arith.constant 3 : index
    %c0_552 = arith.constant 0 : index
    %543 = tpu.strided_load %arg3[%c3_551, %c0_552] {strides = array<i32: 2, 1>} : memref<16x128xf32, #tpu.memory_space<vmem>>, vector<7x128xf32>
    %544 = arith.maximumf %542, %543 : vector<7x128xf32>
    %cst_553 = arith.constant dense<0.000000e+00> : vector<128xf32>
    %545 = vector.multi_reduction <add>, %544, %cst_553 [0] : vector<7x128xf32> to vector<128xf32>
    %546 = vector.shape_cast %545 : vector<128xf32> to vector<1x128xf32>
    %547 = arith.addf %525, %546 : vector<1x128xf32>
    %c10_554 = arith.constant 10 : index
    %c0_555 = arith.constant 0 : index
    %c0_556 = arith.constant 0 : index
    %548 = vector.load %arg1[%c10_554, %c0_555, %c0_556] : memref<16x16x128xf32, #tpu.memory_space<vmem>>, vector<1x16x128xf32>
    %549 = vector.shape_cast %548 : vector<1x16x128xf32> to vector<16x128xf32>
    %c11_557 = arith.constant 11 : index
    %c0_558 = arith.constant 0 : index
    %c0_559 = arith.constant 0 : index
    %550 = vector.load %arg1[%c11_557, %c0_558, %c0_559] : memref<16x16x128xf32, #tpu.memory_space<vmem>>, vector<1x16x128xf32>
    %551 = vector.shape_cast %550 : vector<1x16x128xf32> to vector<16x128xf32>
    %552 = arith.maximumf %549, %551 : vector<16x128xf32>
    %c12_560 = arith.constant 12 : index
    %c0_561 = arith.constant 0 : index
    %c0_562 = arith.constant 0 : index
    %553 = vector.load %arg1[%c12_560, %c0_561, %c0_562] : memref<16x16x128xf32, #tpu.memory_space<vmem>>, vector<1x16x128xf32>
    %554 = vector.shape_cast %553 : vector<1x16x128xf32> to vector<16x128xf32>
    %555 = arith.maximumf %552, %554 : vector<16x128xf32>
    %c13_563 = arith.constant 13 : index
    %c0_564 = arith.constant 0 : index
    %c0_565 = arith.constant 0 : index
    %556 = vector.load %arg1[%c13_563, %c0_564, %c0_565] : memref<16x16x128xf32, #tpu.memory_space<vmem>>, vector<1x16x128xf32>
    %557 = vector.shape_cast %556 : vector<1x16x128xf32> to vector<16x128xf32>
    %558 = arith.maximumf %555, %557 : vector<16x128xf32>
    %c0_566 = arith.constant 0 : index
    %c0_567 = arith.constant 0 : index
    %559 = vector.load %arg3[%c0_566, %c0_567] : memref<16x128xf32, #tpu.memory_space<vmem>>, vector<16x128xf32>
    tpu.vector_store %arg3[%c0_566, %c0_567], %558 {strides = array<i32>} : memref<16x128xf32, #tpu.memory_space<vmem>>, vector<16x128xf32>,
    %c0_568 = arith.constant 0 : index
    %c0_569 = arith.constant 0 : index
    %560 = tpu.strided_load %arg3[%c0_568, %c0_569] {strides = array<i32: 2, 1>} : memref<16x128xf32, #tpu.memory_space<vmem>>, vector<7x128xf32>
    %c1_570 = arith.constant 1 : index
    %c0_571 = arith.constant 0 : index
    %561 = tpu.strided_load %arg3[%c1_570, %c0_571] {strides = array<i32: 2, 1>} : memref<16x128xf32, #tpu.memory_space<vmem>>, vector<7x128xf32>
    %562 = arith.maximumf %560, %561 : vector<7x128xf32>
    %c2_572 = arith.constant 2 : index
    %c0_573 = arith.constant 0 : index
    %563 = tpu.strided_load %arg3[%c2_572, %c0_573] {strides = array<i32: 2, 1>} : memref<16x128xf32, #tpu.memory_space<vmem>>, vector<7x128xf32>
    %564 = arith.maximumf %562, %563 : vector<7x128xf32>
    %c3_574 = arith.constant 3 : index
    %c0_575 = arith.constant 0 : index
    %565 = tpu.strided_load %arg3[%c3_574, %c0_575] {strides = array<i32: 2, 1>} : memref<16x128xf32, #tpu.memory_space<vmem>>, vector<7x128xf32>
    %566 = arith.maximumf %564, %565 : vector<7x128xf32>
    %cst_576 = arith.constant dense<0.000000e+00> : vector<128xf32>
    %567 = vector.multi_reduction <add>, %566, %cst_576 [0] : vector<7x128xf32> to vector<128xf32>
    %568 = vector.shape_cast %567 : vector<128xf32> to vector<1x128xf32>
    %569 = arith.addf %547, %568 : vector<1x128xf32>
    %c12_577 = arith.constant 12 : index
    %c0_578 = arith.constant 0 : index
    %c0_579 = arith.constant 0 : index
    %570 = vector.load %arg1[%c12_577, %c0_578, %c0_579] : memref<16x16x128xf32, #tpu.memory_space<vmem>>, vector<1x16x128xf32>
    %571 = vector.shape_cast %570 : vector<1x16x128xf32> to vector<16x128xf32>
    %c13_580 = arith.constant 13 : index
    %c0_581 = arith.constant 0 : index
    %c0_582 = arith.constant 0 : index
    %572 = vector.load %arg1[%c13_580, %c0_581, %c0_582] : memref<16x16x128xf32, #tpu.memory_space<vmem>>, vector<1x16x128xf32>
    %573 = vector.shape_cast %572 : vector<1x16x128xf32> to vector<16x128xf32>
    %574 = arith.maximumf %571, %573 : vector<16x128xf32>
    %c14_583 = arith.constant 14 : index
    %c0_584 = arith.constant 0 : index
    %c0_585 = arith.constant 0 : index
    %575 = vector.load %arg1[%c14_583, %c0_584, %c0_585] : memref<16x16x128xf32, #tpu.memory_space<vmem>>, vector<1x16x128xf32>
    %576 = vector.shape_cast %575 : vector<1x16x128xf32> to vector<16x128xf32>
    %577 = arith.maximumf %574, %576 : vector<16x128xf32>
    %c15_586 = arith.constant 15 : index
    %c0_587 = arith.constant 0 : index
    %c0_588 = arith.constant 0 : index
    %578 = vector.load %arg1[%c15_586, %c0_587, %c0_588] : memref<16x16x128xf32, #tpu.memory_space<vmem>>, vector<1x16x128xf32>
    %579 = vector.shape_cast %578 : vector<1x16x128xf32> to vector<16x128xf32>
    %580 = arith.maximumf %577, %579 : vector<16x128xf32>
    %c0_589 = arith.constant 0 : index
    %c0_590 = arith.constant 0 : index
    %581 = vector.load %arg3[%c0_589, %c0_590] : memref<16x128xf32, #tpu.memory_space<vmem>>, vector<16x128xf32>
    tpu.vector_store %arg3[%c0_589, %c0_590], %580 {strides = array<i32>} : memref<16x128xf32, #tpu.memory_space<vmem>>, vector<16x128xf32>,
    %c0_591 = arith.constant 0 : index
    %c0_592 = arith.constant 0 : index
    %582 = tpu.strided_load %arg3[%c0_591, %c0_592] {strides = array<i32: 2, 1>} : memref<16x128xf32, #tpu.memory_space<vmem>>, vector<7x128xf32>
    %c1_593 = arith.constant 1 : index
    %c0_594 = arith.constant 0 : index
    %583 = tpu.strided_load %arg3[%c1_593, %c0_594] {strides = array<i32: 2, 1>} : memref<16x128xf32, #tpu.memory_space<vmem>>, vector<7x128xf32>
    %584 = arith.maximumf %582, %583 : vector<7x128xf32>
    %c2_595 = arith.constant 2 : index
    %c0_596 = arith.constant 0 : index
    %585 = tpu.strided_load %arg3[%c2_595, %c0_596] {strides = array<i32: 2, 1>} : memref<16x128xf32, #tpu.memory_space<vmem>>, vector<7x128xf32>
    %586 = arith.maximumf %584, %585 : vector<7x128xf32>
    %c3_597 = arith.constant 3 : index
    %c0_598 = arith.constant 0 : index
    %587 = tpu.strided_load %arg3[%c3_597, %c0_598] {strides = array<i32: 2, 1>} : memref<16x128xf32, #tpu.memory_space<vmem>>, vector<7x128xf32>
    %588 = arith.maximumf %586, %587 : vector<7x128xf32>
    %cst_599 = arith.constant dense<0.000000e+00> : vector<128xf32>
    %589 = vector.multi_reduction <add>, %588, %cst_599 [0] : vector<7x128xf32> to vector<128xf32>
    %590 = vector.shape_cast %589 : vector<128xf32> to vector<1x128xf32>
    %591 = arith.addf %569, %590 : vector<1x128xf32>
    %cst_600 = arith.constant 0.000000e+00 : f32
    %592 = vector.broadcast %cst_600 : f32 to vector<1x128xf32>
    %593 = arith.maximumf %591, %592 : vector<1x128xf32>
    %cst_601 = arith.constant 1.000000e+00 : f32
    %594 = vector.broadcast %cst_601 : f32 to vector<1x128xf32>
    %595 = arith.addf %593, %594 : vector<1x128xf32>
    %596 = math.log %595 : vector<1x128xf32>
    %cst_602 = arith.constant 2.000000e+00 : f32
    %597 = math.log %cst_602 : f32
    %598 = vector.broadcast %597 : f32 to vector<1x128xf32>
    %599 = arith.divf %596, %598 : vector<1x128xf32>
    %cst_603 = arith.constant -0.0648795217 : f32
    %600 = vector.broadcast %cst_603 : f32 to vector<1x128xf32>
    %601 = arith.mulf %600, %599 : vector<1x128xf32>
    %602 = arith.addf %438, %601 : vector<1x128xf32>
    %c0_604 = arith.constant 0 : index
    %c0_605 = arith.constant 0 : index
    %c0_606 = arith.constant 0 : index
    %603 = vector.load %arg1[%c0_604, %c0_605, %c0_606] : memref<16x16x128xf32, #tpu.memory_space<vmem>>, vector<1x16x128xf32>
    %604 = vector.shape_cast %603 : vector<1x16x128xf32> to vector<16x128xf32>
    %c1_607 = arith.constant 1 : index
    %c0_608 = arith.constant 0 : index
    %c0_609 = arith.constant 0 : index
    %605 = vector.load %arg1[%c1_607, %c0_608, %c0_609] : memref<16x16x128xf32, #tpu.memory_space<vmem>>, vector<1x16x128xf32>
    %606 = vector.shape_cast %605 : vector<1x16x128xf32> to vector<16x128xf32>
    %607 = arith.maximumf %604, %606 : vector<16x128xf32>
    %c2_610 = arith.constant 2 : index
    %c0_611 = arith.constant 0 : index
    %c0_612 = arith.constant 0 : index
    %608 = vector.load %arg1[%c2_610, %c0_611, %c0_612] : memref<16x16x128xf32, #tpu.memory_space<vmem>>, vector<1x16x128xf32>
    %609 = vector.shape_cast %608 : vector<1x16x128xf32> to vector<16x128xf32>
    %610 = arith.maximumf %607, %609 : vector<16x128xf32>
    %c3_613 = arith.constant 3 : index
    %c0_614 = arith.constant 0 : index
    %c0_615 = arith.constant 0 : index
    %611 = vector.load %arg1[%c3_613, %c0_614, %c0_615] : memref<16x16x128xf32, #tpu.memory_space<vmem>>, vector<1x16x128xf32>
    %612 = vector.shape_cast %611 : vector<1x16x128xf32> to vector<16x128xf32>
    %613 = arith.maximumf %610, %612 : vector<16x128xf32>
    %c4_616 = arith.constant 4 : index
    %c0_617 = arith.constant 0 : index
    %c0_618 = arith.constant 0 : index
    %614 = vector.load %arg1[%c4_616, %c0_617, %c0_618] : memref<16x16x128xf32, #tpu.memory_space<vmem>>, vector<1x16x128xf32>
    %615 = vector.shape_cast %614 : vector<1x16x128xf32> to vector<16x128xf32>
    %616 = arith.maximumf %613, %615 : vector<16x128xf32>
    %c0_619 = arith.constant 0 : index
    %c0_620 = arith.constant 0 : index
    %617 = vector.load %arg3[%c0_619, %c0_620] : memref<16x128xf32, #tpu.memory_space<vmem>>, vector<16x128xf32>
    tpu.vector_store %arg3[%c0_619, %c0_620], %616 {strides = array<i32>} : memref<16x128xf32, #tpu.memory_space<vmem>>, vector<16x128xf32>,
    %c0_621 = arith.constant 0 : index
    %c0_622 = arith.constant 0 : index
    %618 = tpu.strided_load %arg3[%c0_621, %c0_622] {strides = array<i32: 2, 1>} : memref<16x128xf32, #tpu.memory_space<vmem>>, vector<6x128xf32>
    %c1_623 = arith.constant 1 : index
    %c0_624 = arith.constant 0 : index
    %619 = tpu.strided_load %arg3[%c1_623, %c0_624] {strides = array<i32: 2, 1>} : memref<16x128xf32, #tpu.memory_space<vmem>>, vector<6x128xf32>
    %620 = arith.maximumf %618, %619 : vector<6x128xf32>
    %c2_625 = arith.constant 2 : index
    %c0_626 = arith.constant 0 : index
    %621 = tpu.strided_load %arg3[%c2_625, %c0_626] {strides = array<i32: 2, 1>} : memref<16x128xf32, #tpu.memory_space<vmem>>, vector<6x128xf32>
    %622 = arith.maximumf %620, %621 : vector<6x128xf32>
    %c3_627 = arith.constant 3 : index
    %c0_628 = arith.constant 0 : index
    %623 = tpu.strided_load %arg3[%c3_627, %c0_628] {strides = array<i32: 2, 1>} : memref<16x128xf32, #tpu.memory_space<vmem>>, vector<6x128xf32>
    %624 = arith.maximumf %622, %623 : vector<6x128xf32>
    %c4_629 = arith.constant 4 : index
    %c0_630 = arith.constant 0 : index
    %625 = tpu.strided_load %arg3[%c4_629, %c0_630] {strides = array<i32: 2, 1>} : memref<16x128xf32, #tpu.memory_space<vmem>>, vector<6x128xf32>
    %626 = arith.maximumf %624, %625 : vector<6x128xf32>
    %cst_631 = arith.constant dense<0.000000e+00> : vector<128xf32>
    %627 = vector.multi_reduction <add>, %626, %cst_631 [0] : vector<6x128xf32> to vector<128xf32>
    %628 = vector.shape_cast %627 : vector<128xf32> to vector<1x128xf32>
    %c2_632 = arith.constant 2 : index
    %c0_633 = arith.constant 0 : index
    %c0_634 = arith.constant 0 : index
    %629 = vector.load %arg1[%c2_632, %c0_633, %c0_634] : memref<16x16x128xf32, #tpu.memory_space<vmem>>, vector<1x16x128xf32>
    %630 = vector.shape_cast %629 : vector<1x16x128xf32> to vector<16x128xf32>
    %c3_635 = arith.constant 3 : index
    %c0_636 = arith.constant 0 : index
    %c0_637 = arith.constant 0 : index
    %631 = vector.load %arg1[%c3_635, %c0_636, %c0_637] : memref<16x16x128xf32, #tpu.memory_space<vmem>>, vector<1x16x128xf32>
    %632 = vector.shape_cast %631 : vector<1x16x128xf32> to vector<16x128xf32>
    %633 = arith.maximumf %630, %632 : vector<16x128xf32>
    %c4_638 = arith.constant 4 : index
    %c0_639 = arith.constant 0 : index
    %c0_640 = arith.constant 0 : index
    %634 = vector.load %arg1[%c4_638, %c0_639, %c0_640] : memref<16x16x128xf32, #tpu.memory_space<vmem>>, vector<1x16x128xf32>
    %635 = vector.shape_cast %634 : vector<1x16x128xf32> to vector<16x128xf32>
    %636 = arith.maximumf %633, %635 : vector<16x128xf32>
    %c5_641 = arith.constant 5 : index
    %c0_642 = arith.constant 0 : index
    %c0_643 = arith.constant 0 : index
    %637 = vector.load %arg1[%c5_641, %c0_642, %c0_643] : memref<16x16x128xf32, #tpu.memory_space<vmem>>, vector<1x16x128xf32>
    %638 = vector.shape_cast %637 : vector<1x16x128xf32> to vector<16x128xf32>
    %639 = arith.maximumf %636, %638 : vector<16x128xf32>
    %c6_644 = arith.constant 6 : index
    %c0_645 = arith.constant 0 : index
    %c0_646 = arith.constant 0 : index
    %640 = vector.load %arg1[%c6_644, %c0_645, %c0_646] : memref<16x16x128xf32, #tpu.memory_space<vmem>>, vector<1x16x128xf32>
    %641 = vector.shape_cast %640 : vector<1x16x128xf32> to vector<16x128xf32>
    %642 = arith.maximumf %639, %641 : vector<16x128xf32>
    %c0_647 = arith.constant 0 : index
    %c0_648 = arith.constant 0 : index
    %643 = vector.load %arg3[%c0_647, %c0_648] : memref<16x128xf32, #tpu.memory_space<vmem>>, vector<16x128xf32>
    tpu.vector_store %arg3[%c0_647, %c0_648], %642 {strides = array<i32>} : memref<16x128xf32, #tpu.memory_space<vmem>>, vector<16x128xf32>,
    %c0_649 = arith.constant 0 : index
    %c0_650 = arith.constant 0 : index
    %644 = tpu.strided_load %arg3[%c0_649, %c0_650] {strides = array<i32: 2, 1>} : memref<16x128xf32, #tpu.memory_space<vmem>>, vector<6x128xf32>
    %c1_651 = arith.constant 1 : index
    %c0_652 = arith.constant 0 : index
    %645 = tpu.strided_load %arg3[%c1_651, %c0_652] {strides = array<i32: 2, 1>} : memref<16x128xf32, #tpu.memory_space<vmem>>, vector<6x128xf32>
    %646 = arith.maximumf %644, %645 : vector<6x128xf32>
    %c2_653 = arith.constant 2 : index
    %c0_654 = arith.constant 0 : index
    %647 = tpu.strided_load %arg3[%c2_653, %c0_654] {strides = array<i32: 2, 1>} : memref<16x128xf32, #tpu.memory_space<vmem>>, vector<6x128xf32>
    %648 = arith.maximumf %646, %647 : vector<6x128xf32>
    %c3_655 = arith.constant 3 : index
    %c0_656 = arith.constant 0 : index
    %649 = tpu.strided_load %arg3[%c3_655, %c0_656] {strides = array<i32: 2, 1>} : memref<16x128xf32, #tpu.memory_space<vmem>>, vector<6x128xf32>
    %650 = arith.maximumf %648, %649 : vector<6x128xf32>
    %c4_657 = arith.constant 4 : index
    %c0_658 = arith.constant 0 : index
    %651 = tpu.strided_load %arg3[%c4_657, %c0_658] {strides = array<i32: 2, 1>} : memref<16x128xf32, #tpu.memory_space<vmem>>, vector<6x128xf32>
    %652 = arith.maximumf %650, %651 : vector<6x128xf32>
    %cst_659 = arith.constant dense<0.000000e+00> : vector<128xf32>
    %653 = vector.multi_reduction <add>, %652, %cst_659 [0] : vector<6x128xf32> to vector<128xf32>
    %654 = vector.shape_cast %653 : vector<128xf32> to vector<1x128xf32>
    %655 = arith.addf %628, %654 : vector<1x128xf32>
    %c4_660 = arith.constant 4 : index
    %c0_661 = arith.constant 0 : index
    %c0_662 = arith.constant 0 : index
    %656 = vector.load %arg1[%c4_660, %c0_661, %c0_662] : memref<16x16x128xf32, #tpu.memory_space<vmem>>, vector<1x16x128xf32>
    %657 = vector.shape_cast %656 : vector<1x16x128xf32> to vector<16x128xf32>
    %c5_663 = arith.constant 5 : index
    %c0_664 = arith.constant 0 : index
    %c0_665 = arith.constant 0 : index
    %658 = vector.load %arg1[%c5_663, %c0_664, %c0_665] : memref<16x16x128xf32, #tpu.memory_space<vmem>>, vector<1x16x128xf32>
    %659 = vector.shape_cast %658 : vector<1x16x128xf32> to vector<16x128xf32>
    %660 = arith.maximumf %657, %659 : vector<16x128xf32>
    %c6_666 = arith.constant 6 : index
    %c0_667 = arith.constant 0 : index
    %c0_668 = arith.constant 0 : index
    %661 = vector.load %arg1[%c6_666, %c0_667, %c0_668] : memref<16x16x128xf32, #tpu.memory_space<vmem>>, vector<1x16x128xf32>
    %662 = vector.shape_cast %661 : vector<1x16x128xf32> to vector<16x128xf32>
    %663 = arith.maximumf %660, %662 : vector<16x128xf32>
    %c7_669 = arith.constant 7 : index
    %c0_670 = arith.constant 0 : index
    %c0_671 = arith.constant 0 : index
    %664 = vector.load %arg1[%c7_669, %c0_670, %c0_671] : memref<16x16x128xf32, #tpu.memory_space<vmem>>, vector<1x16x128xf32>
    %665 = vector.shape_cast %664 : vector<1x16x128xf32> to vector<16x128xf32>
    %666 = arith.maximumf %663, %665 : vector<16x128xf32>
    %c8_672 = arith.constant 8 : index
    %c0_673 = arith.constant 0 : index
    %c0_674 = arith.constant 0 : index
    %667 = vector.load %arg1[%c8_672, %c0_673, %c0_674] : memref<16x16x128xf32, #tpu.memory_space<vmem>>, vector<1x16x128xf32>
    %668 = vector.shape_cast %667 : vector<1x16x128xf32> to vector<16x128xf32>
    %669 = arith.maximumf %666, %668 : vector<16x128xf32>
    %c0_675 = arith.constant 0 : index
    %c0_676 = arith.constant 0 : index
    %670 = vector.load %arg3[%c0_675, %c0_676] : memref<16x128xf32, #tpu.memory_space<vmem>>, vector<16x128xf32>
    tpu.vector_store %arg3[%c0_675, %c0_676], %669 {strides = array<i32>} : memref<16x128xf32, #tpu.memory_space<vmem>>, vector<16x128xf32>,
    %c0_677 = arith.constant 0 : index
    %c0_678 = arith.constant 0 : index
    %671 = tpu.strided_load %arg3[%c0_677, %c0_678] {strides = array<i32: 2, 1>} : memref<16x128xf32, #tpu.memory_space<vmem>>, vector<6x128xf32>
    %c1_679 = arith.constant 1 : index
    %c0_680 = arith.constant 0 : index
    %672 = tpu.strided_load %arg3[%c1_679, %c0_680] {strides = array<i32: 2, 1>} : memref<16x128xf32, #tpu.memory_space<vmem>>, vector<6x128xf32>
    %673 = arith.maximumf %671, %672 : vector<6x128xf32>
    %c2_681 = arith.constant 2 : index
    %c0_682 = arith.constant 0 : index
    %674 = tpu.strided_load %arg3[%c2_681, %c0_682] {strides = array<i32: 2, 1>} : memref<16x128xf32, #tpu.memory_space<vmem>>, vector<6x128xf32>
    %675 = arith.maximumf %673, %674 : vector<6x128xf32>
    %c3_683 = arith.constant 3 : index
    %c0_684 = arith.constant 0 : index
    %676 = tpu.strided_load %arg3[%c3_683, %c0_684] {strides = array<i32: 2, 1>} : memref<16x128xf32, #tpu.memory_space<vmem>>, vector<6x128xf32>
    %677 = arith.maximumf %675, %676 : vector<6x128xf32>
    %c4_685 = arith.constant 4 : index
    %c0_686 = arith.constant 0 : index
    %678 = tpu.strided_load %arg3[%c4_685, %c0_686] {strides = array<i32: 2, 1>} : memref<16x128xf32, #tpu.memory_space<vmem>>, vector<6x128xf32>
    %679 = arith.maximumf %677, %678 : vector<6x128xf32>
    %cst_687 = arith.constant dense<0.000000e+00> : vector<128xf32>
    %680 = vector.multi_reduction <add>, %679, %cst_687 [0] : vector<6x128xf32> to vector<128xf32>
    %681 = vector.shape_cast %680 : vector<128xf32> to vector<1x128xf32>
    %682 = arith.addf %655, %681 : vector<1x128xf32>
    %c6_688 = arith.constant 6 : index
    %c0_689 = arith.constant 0 : index
    %c0_690 = arith.constant 0 : index
    %683 = vector.load %arg1[%c6_688, %c0_689, %c0_690] : memref<16x16x128xf32, #tpu.memory_space<vmem>>, vector<1x16x128xf32>
    %684 = vector.shape_cast %683 : vector<1x16x128xf32> to vector<16x128xf32>
    %c7_691 = arith.constant 7 : index
    %c0_692 = arith.constant 0 : index
    %c0_693 = arith.constant 0 : index
    %685 = vector.load %arg1[%c7_691, %c0_692, %c0_693] : memref<16x16x128xf32, #tpu.memory_space<vmem>>, vector<1x16x128xf32>
    %686 = vector.shape_cast %685 : vector<1x16x128xf32> to vector<16x128xf32>
    %687 = arith.maximumf %684, %686 : vector<16x128xf32>
    %c8_694 = arith.constant 8 : index
    %c0_695 = arith.constant 0 : index
    %c0_696 = arith.constant 0 : index
    %688 = vector.load %arg1[%c8_694, %c0_695, %c0_696] : memref<16x16x128xf32, #tpu.memory_space<vmem>>, vector<1x16x128xf32>
    %689 = vector.shape_cast %688 : vector<1x16x128xf32> to vector<16x128xf32>
    %690 = arith.maximumf %687, %689 : vector<16x128xf32>
    %c9_697 = arith.constant 9 : index
    %c0_698 = arith.constant 0 : index
    %c0_699 = arith.constant 0 : index
    %691 = vector.load %arg1[%c9_697, %c0_698, %c0_699] : memref<16x16x128xf32, #tpu.memory_space<vmem>>, vector<1x16x128xf32>
    %692 = vector.shape_cast %691 : vector<1x16x128xf32> to vector<16x128xf32>
    %693 = arith.maximumf %690, %692 : vector<16x128xf32>
    %c10_700 = arith.constant 10 : index
    %c0_701 = arith.constant 0 : index
    %c0_702 = arith.constant 0 : index
    %694 = vector.load %arg1[%c10_700, %c0_701, %c0_702] : memref<16x16x128xf32, #tpu.memory_space<vmem>>, vector<1x16x128xf32>
    %695 = vector.shape_cast %694 : vector<1x16x128xf32> to vector<16x128xf32>
    %696 = arith.maximumf %693, %695 : vector<16x128xf32>
    %c0_703 = arith.constant 0 : index
    %c0_704 = arith.constant 0 : index
    %697 = vector.load %arg3[%c0_703, %c0_704] : memref<16x128xf32, #tpu.memory_space<vmem>>, vector<16x128xf32>
    tpu.vector_store %arg3[%c0_703, %c0_704], %696 {strides = array<i32>} : memref<16x128xf32, #tpu.memory_space<vmem>>, vector<16x128xf32>,
    %c0_705 = arith.constant 0 : index
    %c0_706 = arith.constant 0 : index
    %698 = tpu.strided_load %arg3[%c0_705, %c0_706] {strides = array<i32: 2, 1>} : memref<16x128xf32, #tpu.memory_space<vmem>>, vector<6x128xf32>
    %c1_707 = arith.constant 1 : index
    %c0_708 = arith.constant 0 : index
    %699 = tpu.strided_load %arg3[%c1_707, %c0_708] {strides = array<i32: 2, 1>} : memref<16x128xf32, #tpu.memory_space<vmem>>, vector<6x128xf32>
    %700 = arith.maximumf %698, %699 : vector<6x128xf32>
    %c2_709 = arith.constant 2 : index
    %c0_710 = arith.constant 0 : index
    %701 = tpu.strided_load %arg3[%c2_709, %c0_710] {strides = array<i32: 2, 1>} : memref<16x128xf32, #tpu.memory_space<vmem>>, vector<6x128xf32>
    %702 = arith.maximumf %700, %701 : vector<6x128xf32>
    %c3_711 = arith.constant 3 : index
    %c0_712 = arith.constant 0 : index
    %703 = tpu.strided_load %arg3[%c3_711, %c0_712] {strides = array<i32: 2, 1>} : memref<16x128xf32, #tpu.memory_space<vmem>>, vector<6x128xf32>
    %704 = arith.maximumf %702, %703 : vector<6x128xf32>
    %c4_713 = arith.constant 4 : index
    %c0_714 = arith.constant 0 : index
    %705 = tpu.strided_load %arg3[%c4_713, %c0_714] {strides = array<i32: 2, 1>} : memref<16x128xf32, #tpu.memory_space<vmem>>, vector<6x128xf32>
    %706 = arith.maximumf %704, %705 : vector<6x128xf32>
    %cst_715 = arith.constant dense<0.000000e+00> : vector<128xf32>
    %707 = vector.multi_reduction <add>, %706, %cst_715 [0] : vector<6x128xf32> to vector<128xf32>
    %708 = vector.shape_cast %707 : vector<128xf32> to vector<1x128xf32>
    %709 = arith.addf %682, %708 : vector<1x128xf32>
    %c8_716 = arith.constant 8 : index
    %c0_717 = arith.constant 0 : index
    %c0_718 = arith.constant 0 : index
    %710 = vector.load %arg1[%c8_716, %c0_717, %c0_718] : memref<16x16x128xf32, #tpu.memory_space<vmem>>, vector<1x16x128xf32>
    %711 = vector.shape_cast %710 : vector<1x16x128xf32> to vector<16x128xf32>
    %c9_719 = arith.constant 9 : index
    %c0_720 = arith.constant 0 : index
    %c0_721 = arith.constant 0 : index
    %712 = vector.load %arg1[%c9_719, %c0_720, %c0_721] : memref<16x16x128xf32, #tpu.memory_space<vmem>>, vector<1x16x128xf32>
    %713 = vector.shape_cast %712 : vector<1x16x128xf32> to vector<16x128xf32>
    %714 = arith.maximumf %711, %713 : vector<16x128xf32>
    %c10_722 = arith.constant 10 : index
    %c0_723 = arith.constant 0 : index
    %c0_724 = arith.constant 0 : index
    %715 = vector.load %arg1[%c10_722, %c0_723, %c0_724] : memref<16x16x128xf32, #tpu.memory_space<vmem>>, vector<1x16x128xf32>
    %716 = vector.shape_cast %715 : vector<1x16x128xf32> to vector<16x128xf32>
    %717 = arith.maximumf %714, %716 : vector<16x128xf32>
    %c11_725 = arith.constant 11 : index
    %c0_726 = arith.constant 0 : index
    %c0_727 = arith.constant 0 : index
    %718 = vector.load %arg1[%c11_725, %c0_726, %c0_727] : memref<16x16x128xf32, #tpu.memory_space<vmem>>, vector<1x16x128xf32>
    %719 = vector.shape_cast %718 : vector<1x16x128xf32> to vector<16x128xf32>
    %720 = arith.maximumf %717, %719 : vector<16x128xf32>
    %c12_728 = arith.constant 12 : index
    %c0_729 = arith.constant 0 : index
    %c0_730 = arith.constant 0 : index
    %721 = vector.load %arg1[%c12_728, %c0_729, %c0_730] : memref<16x16x128xf32, #tpu.memory_space<vmem>>, vector<1x16x128xf32>
    %722 = vector.shape_cast %721 : vector<1x16x128xf32> to vector<16x128xf32>
    %723 = arith.maximumf %720, %722 : vector<16x128xf32>
    %c0_731 = arith.constant 0 : index
    %c0_732 = arith.constant 0 : index
    %724 = vector.load %arg3[%c0_731, %c0_732] : memref<16x128xf32, #tpu.memory_space<vmem>>, vector<16x128xf32>
    tpu.vector_store %arg3[%c0_731, %c0_732], %723 {strides = array<i32>} : memref<16x128xf32, #tpu.memory_space<vmem>>, vector<16x128xf32>,
    %c0_733 = arith.constant 0 : index
    %c0_734 = arith.constant 0 : index
    %725 = tpu.strided_load %arg3[%c0_733, %c0_734] {strides = array<i32: 2, 1>} : memref<16x128xf32, #tpu.memory_space<vmem>>, vector<6x128xf32>
    %c1_735 = arith.constant 1 : index
    %c0_736 = arith.constant 0 : index
    %726 = tpu.strided_load %arg3[%c1_735, %c0_736] {strides = array<i32: 2, 1>} : memref<16x128xf32, #tpu.memory_space<vmem>>, vector<6x128xf32>
    %727 = arith.maximumf %725, %726 : vector<6x128xf32>
    %c2_737 = arith.constant 2 : index
    %c0_738 = arith.constant 0 : index
    %728 = tpu.strided_load %arg3[%c2_737, %c0_738] {strides = array<i32: 2, 1>} : memref<16x128xf32, #tpu.memory_space<vmem>>, vector<6x128xf32>
    %729 = arith.maximumf %727, %728 : vector<6x128xf32>
    %c3_739 = arith.constant 3 : index
    %c0_740 = arith.constant 0 : index
    %730 = tpu.strided_load %arg3[%c3_739, %c0_740] {strides = array<i32: 2, 1>} : memref<16x128xf32, #tpu.memory_space<vmem>>, vector<6x128xf32>
    %731 = arith.maximumf %729, %730 : vector<6x128xf32>
    %c4_741 = arith.constant 4 : index
    %c0_742 = arith.constant 0 : index
    %732 = tpu.strided_load %arg3[%c4_741, %c0_742] {strides = array<i32: 2, 1>} : memref<16x128xf32, #tpu.memory_space<vmem>>, vector<6x128xf32>
    %733 = arith.maximumf %731, %732 : vector<6x128xf32>
    %cst_743 = arith.constant dense<0.000000e+00> : vector<128xf32>
    %734 = vector.multi_reduction <add>, %733, %cst_743 [0] : vector<6x128xf32> to vector<128xf32>
    %735 = vector.shape_cast %734 : vector<128xf32> to vector<1x128xf32>
    %736 = arith.addf %709, %735 : vector<1x128xf32>
    %c10_744 = arith.constant 10 : index
    %c0_745 = arith.constant 0 : index
    %c0_746 = arith.constant 0 : index
    %737 = vector.load %arg1[%c10_744, %c0_745, %c0_746] : memref<16x16x128xf32, #tpu.memory_space<vmem>>, vector<1x16x128xf32>
    %738 = vector.shape_cast %737 : vector<1x16x128xf32> to vector<16x128xf32>
    %c11_747 = arith.constant 11 : index
    %c0_748 = arith.constant 0 : index
    %c0_749 = arith.constant 0 : index
    %739 = vector.load %arg1[%c11_747, %c0_748, %c0_749] : memref<16x16x128xf32, #tpu.memory_space<vmem>>, vector<1x16x128xf32>
    %740 = vector.shape_cast %739 : vector<1x16x128xf32> to vector<16x128xf32>
    %741 = arith.maximumf %738, %740 : vector<16x128xf32>
    %c12_750 = arith.constant 12 : index
    %c0_751 = arith.constant 0 : index
    %c0_752 = arith.constant 0 : index
    %742 = vector.load %arg1[%c12_750, %c0_751, %c0_752] : memref<16x16x128xf32, #tpu.memory_space<vmem>>, vector<1x16x128xf32>
    %743 = vector.shape_cast %742 : vector<1x16x128xf32> to vector<16x128xf32>
    %744 = arith.maximumf %741, %743 : vector<16x128xf32>
    %c13_753 = arith.constant 13 : index
    %c0_754 = arith.constant 0 : index
    %c0_755 = arith.constant 0 : index
    %745 = vector.load %arg1[%c13_753, %c0_754, %c0_755] : memref<16x16x128xf32, #tpu.memory_space<vmem>>, vector<1x16x128xf32>
    %746 = vector.shape_cast %745 : vector<1x16x128xf32> to vector<16x128xf32>
    %747 = arith.maximumf %744, %746 : vector<16x128xf32>
    %c14_756 = arith.constant 14 : index
    %c0_757 = arith.constant 0 : index
    %c0_758 = arith.constant 0 : index
    %748 = vector.load %arg1[%c14_756, %c0_757, %c0_758] : memref<16x16x128xf32, #tpu.memory_space<vmem>>, vector<1x16x128xf32>
    %749 = vector.shape_cast %748 : vector<1x16x128xf32> to vector<16x128xf32>
    %750 = arith.maximumf %747, %749 : vector<16x128xf32>
    %c0_759 = arith.constant 0 : index
    %c0_760 = arith.constant 0 : index
    %751 = vector.load %arg3[%c0_759, %c0_760] : memref<16x128xf32, #tpu.memory_space<vmem>>, vector<16x128xf32>
    tpu.vector_store %arg3[%c0_759, %c0_760], %750 {strides = array<i32>} : memref<16x128xf32, #tpu.memory_space<vmem>>, vector<16x128xf32>,
    %c0_761 = arith.constant 0 : index
    %c0_762 = arith.constant 0 : index
    %752 = tpu.strided_load %arg3[%c0_761, %c0_762] {strides = array<i32: 2, 1>} : memref<16x128xf32, #tpu.memory_space<vmem>>, vector<6x128xf32>
    %c1_763 = arith.constant 1 : index
    %c0_764 = arith.constant 0 : index
    %753 = tpu.strided_load %arg3[%c1_763, %c0_764] {strides = array<i32: 2, 1>} : memref<16x128xf32, #tpu.memory_space<vmem>>, vector<6x128xf32>
    %754 = arith.maximumf %752, %753 : vector<6x128xf32>
    %c2_765 = arith.constant 2 : index
    %c0_766 = arith.constant 0 : index
    %755 = tpu.strided_load %arg3[%c2_765, %c0_766] {strides = array<i32: 2, 1>} : memref<16x128xf32, #tpu.memory_space<vmem>>, vector<6x128xf32>
    %756 = arith.maximumf %754, %755 : vector<6x128xf32>
    %c3_767 = arith.constant 3 : index
    %c0_768 = arith.constant 0 : index
    %757 = tpu.strided_load %arg3[%c3_767, %c0_768] {strides = array<i32: 2, 1>} : memref<16x128xf32, #tpu.memory_space<vmem>>, vector<6x128xf32>
    %758 = arith.maximumf %756, %757 : vector<6x128xf32>
    %c4_769 = arith.constant 4 : index
    %c0_770 = arith.constant 0 : index
    %759 = tpu.strided_load %arg3[%c4_769, %c0_770] {strides = array<i32: 2, 1>} : memref<16x128xf32, #tpu.memory_space<vmem>>, vector<6x128xf32>
    %760 = arith.maximumf %758, %759 : vector<6x128xf32>
    %cst_771 = arith.constant dense<0.000000e+00> : vector<128xf32>
    %761 = vector.multi_reduction <add>, %760, %cst_771 [0] : vector<6x128xf32> to vector<128xf32>
    %762 = vector.shape_cast %761 : vector<128xf32> to vector<1x128xf32>
    %763 = arith.addf %736, %762 : vector<1x128xf32>
    %cst_772 = arith.constant 0.000000e+00 : f32
    %764 = vector.broadcast %cst_772 : f32 to vector<1x128xf32>
    %765 = arith.maximumf %763, %764 : vector<1x128xf32>
    %cst_773 = arith.constant 1.000000e+00 : f32
    %766 = vector.broadcast %cst_773 : f32 to vector<1x128xf32>
    %767 = arith.addf %765, %766 : vector<1x128xf32>
    %768 = math.log %767 : vector<1x128xf32>
    %cst_774 = arith.constant 2.000000e+00 : f32
    %769 = math.log %cst_774 : f32
    %770 = vector.broadcast %769 : f32 to vector<1x128xf32>
    %771 = arith.divf %768, %770 : vector<1x128xf32>
    %cst_775 = arith.constant -0.270396292 : f32
    %772 = vector.broadcast %cst_775 : f32 to vector<1x128xf32>
    %773 = arith.mulf %772, %771 : vector<1x128xf32>
    %774 = arith.addf %602, %773 : vector<1x128xf32>
    %c0_776 = arith.constant 0 : index
    %c0_777 = arith.constant 0 : index
    %c0_778 = arith.constant 0 : index
    %775 = vector.load %arg1[%c0_776, %c0_777, %c0_778] : memref<16x16x128xf32, #tpu.memory_space<vmem>>, vector<1x16x128xf32>
    %776 = vector.shape_cast %775 : vector<1x16x128xf32> to vector<16x128xf32>
    %c1_779 = arith.constant 1 : index
    %c0_780 = arith.constant 0 : index
    %c0_781 = arith.constant 0 : index
    %777 = vector.load %arg1[%c1_779, %c0_780, %c0_781] : memref<16x16x128xf32, #tpu.memory_space<vmem>>, vector<1x16x128xf32>
    %778 = vector.shape_cast %777 : vector<1x16x128xf32> to vector<16x128xf32>
    %779 = arith.maximumf %776, %778 : vector<16x128xf32>
    %c2_782 = arith.constant 2 : index
    %c0_783 = arith.constant 0 : index
    %c0_784 = arith.constant 0 : index
    %780 = vector.load %arg1[%c2_782, %c0_783, %c0_784] : memref<16x16x128xf32, #tpu.memory_space<vmem>>, vector<1x16x128xf32>
    %781 = vector.shape_cast %780 : vector<1x16x128xf32> to vector<16x128xf32>
    %782 = arith.maximumf %779, %781 : vector<16x128xf32>
    %c3_785 = arith.constant 3 : index
    %c0_786 = arith.constant 0 : index
    %c0_787 = arith.constant 0 : index
    %783 = vector.load %arg1[%c3_785, %c0_786, %c0_787] : memref<16x16x128xf32, #tpu.memory_space<vmem>>, vector<1x16x128xf32>
    %784 = vector.shape_cast %783 : vector<1x16x128xf32> to vector<16x128xf32>
    %785 = arith.maximumf %782, %784 : vector<16x128xf32>
    %c4_788 = arith.constant 4 : index
    %c0_789 = arith.constant 0 : index
    %c0_790 = arith.constant 0 : index
    %786 = vector.load %arg1[%c4_788, %c0_789, %c0_790] : memref<16x16x128xf32, #tpu.memory_space<vmem>>, vector<1x16x128xf32>
    %787 = vector.shape_cast %786 : vector<1x16x128xf32> to vector<16x128xf32>
    %788 = arith.maximumf %785, %787 : vector<16x128xf32>
    %c5_791 = arith.constant 5 : index
    %c0_792 = arith.constant 0 : index
    %c0_793 = arith.constant 0 : index
    %789 = vector.load %arg1[%c5_791, %c0_792, %c0_793] : memref<16x16x128xf32, #tpu.memory_space<vmem>>, vector<1x16x128xf32>
    %790 = vector.shape_cast %789 : vector<1x16x128xf32> to vector<16x128xf32>
    %791 = arith.maximumf %788, %790 : vector<16x128xf32>
    %c0_794 = arith.constant 0 : index
    %c0_795 = arith.constant 0 : index
    %792 = vector.load %arg3[%c0_794, %c0_795] : memref<16x128xf32, #tpu.memory_space<vmem>>, vector<16x128xf32>
    tpu.vector_store %arg3[%c0_794, %c0_795], %791 {strides = array<i32>} : memref<16x128xf32, #tpu.memory_space<vmem>>, vector<16x128xf32>,
    %c0_796 = arith.constant 0 : index
    %c0_797 = arith.constant 0 : index
    %793 = tpu.strided_load %arg3[%c0_796, %c0_797] {strides = array<i32: 3, 1>} : memref<16x128xf32, #tpu.memory_space<vmem>>, vector<4x128xf32>
    %c1_798 = arith.constant 1 : index
    %c0_799 = arith.constant 0 : index
    %794 = tpu.strided_load %arg3[%c1_798, %c0_799] {strides = array<i32: 3, 1>} : memref<16x128xf32, #tpu.memory_space<vmem>>, vector<4x128xf32>
    %795 = arith.maximumf %793, %794 : vector<4x128xf32>
    %c2_800 = arith.constant 2 : index
    %c0_801 = arith.constant 0 : index
    %796 = tpu.strided_load %arg3[%c2_800, %c0_801] {strides = array<i32: 3, 1>} : memref<16x128xf32, #tpu.memory_space<vmem>>, vector<4x128xf32>
    %797 = arith.maximumf %795, %796 : vector<4x128xf32>
    %c3_802 = arith.constant 3 : index
    %c0_803 = arith.constant 0 : index
    %798 = tpu.strided_load %arg3[%c3_802, %c0_803] {strides = array<i32: 3, 1>} : memref<16x128xf32, #tpu.memory_space<vmem>>, vector<4x128xf32>
    %799 = arith.maximumf %797, %798 : vector<4x128xf32>
    %c4_804 = arith.constant 4 : index
    %c0_805 = arith.constant 0 : index
    %800 = tpu.strided_load %arg3[%c4_804, %c0_805] {strides = array<i32: 3, 1>} : memref<16x128xf32, #tpu.memory_space<vmem>>, vector<4x128xf32>
    %801 = arith.maximumf %799, %800 : vector<4x128xf32>
    %c5_806 = arith.constant 5 : index
    %c0_807 = arith.constant 0 : index
    %802 = tpu.strided_load %arg3[%c5_806, %c0_807] {strides = array<i32: 3, 1>} : memref<16x128xf32, #tpu.memory_space<vmem>>, vector<4x128xf32>
    %803 = arith.maximumf %801, %802 : vector<4x128xf32>
    %cst_808 = arith.constant dense<0.000000e+00> : vector<128xf32>
    %804 = vector.multi_reduction <add>, %803, %cst_808 [0] : vector<4x128xf32> to vector<128xf32>
    %805 = vector.shape_cast %804 : vector<128xf32> to vector<1x128xf32>
    %c3_809 = arith.constant 3 : index
    %c0_810 = arith.constant 0 : index
    %c0_811 = arith.constant 0 : index
    %806 = vector.load %arg1[%c3_809, %c0_810, %c0_811] : memref<16x16x128xf32, #tpu.memory_space<vmem>>, vector<1x16x128xf32>
    %807 = vector.shape_cast %806 : vector<1x16x128xf32> to vector<16x128xf32>
    %c4_812 = arith.constant 4 : index
    %c0_813 = arith.constant 0 : index
    %c0_814 = arith.constant 0 : index
    %808 = vector.load %arg1[%c4_812, %c0_813, %c0_814] : memref<16x16x128xf32, #tpu.memory_space<vmem>>, vector<1x16x128xf32>
    %809 = vector.shape_cast %808 : vector<1x16x128xf32> to vector<16x128xf32>
    %810 = arith.maximumf %807, %809 : vector<16x128xf32>
    %c5_815 = arith.constant 5 : index
    %c0_816 = arith.constant 0 : index
    %c0_817 = arith.constant 0 : index
    %811 = vector.load %arg1[%c5_815, %c0_816, %c0_817] : memref<16x16x128xf32, #tpu.memory_space<vmem>>, vector<1x16x128xf32>
    %812 = vector.shape_cast %811 : vector<1x16x128xf32> to vector<16x128xf32>
    %813 = arith.maximumf %810, %812 : vector<16x128xf32>
    %c6_818 = arith.constant 6 : index
    %c0_819 = arith.constant 0 : index
    %c0_820 = arith.constant 0 : index
    %814 = vector.load %arg1[%c6_818, %c0_819, %c0_820] : memref<16x16x128xf32, #tpu.memory_space<vmem>>, vector<1x16x128xf32>
    %815 = vector.shape_cast %814 : vector<1x16x128xf32> to vector<16x128xf32>
    %816 = arith.maximumf %813, %815 : vector<16x128xf32>
    %c7_821 = arith.constant 7 : index
    %c0_822 = arith.constant 0 : index
    %c0_823 = arith.constant 0 : index
    %817 = vector.load %arg1[%c7_821, %c0_822, %c0_823] : memref<16x16x128xf32, #tpu.memory_space<vmem>>, vector<1x16x128xf32>
    %818 = vector.shape_cast %817 : vector<1x16x128xf32> to vector<16x128xf32>
    %819 = arith.maximumf %816, %818 : vector<16x128xf32>
    %c8_824 = arith.constant 8 : index
    %c0_825 = arith.constant 0 : index
    %c0_826 = arith.constant 0 : index
    %820 = vector.load %arg1[%c8_824, %c0_825, %c0_826] : memref<16x16x128xf32, #tpu.memory_space<vmem>>, vector<1x16x128xf32>
    %821 = vector.shape_cast %820 : vector<1x16x128xf32> to vector<16x128xf32>
    %822 = arith.maximumf %819, %821 : vector<16x128xf32>
    %c0_827 = arith.constant 0 : index
    %c0_828 = arith.constant 0 : index
    %823 = vector.load %arg3[%c0_827, %c0_828] : memref<16x128xf32, #tpu.memory_space<vmem>>, vector<16x128xf32>
    tpu.vector_store %arg3[%c0_827, %c0_828], %822 {strides = array<i32>} : memref<16x128xf32, #tpu.memory_space<vmem>>, vector<16x128xf32>,
    %c0_829 = arith.constant 0 : index
    %c0_830 = arith.constant 0 : index
    %824 = tpu.strided_load %arg3[%c0_829, %c0_830] {strides = array<i32: 3, 1>} : memref<16x128xf32, #tpu.memory_space<vmem>>, vector<4x128xf32>
    %c1_831 = arith.constant 1 : index
    %c0_832 = arith.constant 0 : index
    %825 = tpu.strided_load %arg3[%c1_831, %c0_832] {strides = array<i32: 3, 1>} : memref<16x128xf32, #tpu.memory_space<vmem>>, vector<4x128xf32>
    %826 = arith.maximumf %824, %825 : vector<4x128xf32>
    %c2_833 = arith.constant 2 : index
    %c0_834 = arith.constant 0 : index
    %827 = tpu.strided_load %arg3[%c2_833, %c0_834] {strides = array<i32: 3, 1>} : memref<16x128xf32, #tpu.memory_space<vmem>>, vector<4x128xf32>
    %828 = arith.maximumf %826, %827 : vector<4x128xf32>
    %c3_835 = arith.constant 3 : index
    %c0_836 = arith.constant 0 : index
    %829 = tpu.strided_load %arg3[%c3_835, %c0_836] {strides = array<i32: 3, 1>} : memref<16x128xf32, #tpu.memory_space<vmem>>, vector<4x128xf32>
    %830 = arith.maximumf %828, %829 : vector<4x128xf32>
    %c4_837 = arith.constant 4 : index
    %c0_838 = arith.constant 0 : index
    %831 = tpu.strided_load %arg3[%c4_837, %c0_838] {strides = array<i32: 3, 1>} : memref<16x128xf32, #tpu.memory_space<vmem>>, vector<4x128xf32>
    %832 = arith.maximumf %830, %831 : vector<4x128xf32>
    %c5_839 = arith.constant 5 : index
    %c0_840 = arith.constant 0 : index
    %833 = tpu.strided_load %arg3[%c5_839, %c0_840] {strides = array<i32: 3, 1>} : memref<16x128xf32, #tpu.memory_space<vmem>>, vector<4x128xf32>
    %834 = arith.maximumf %832, %833 : vector<4x128xf32>
    %cst_841 = arith.constant dense<0.000000e+00> : vector<128xf32>
    %835 = vector.multi_reduction <add>, %834, %cst_841 [0] : vector<4x128xf32> to vector<128xf32>
    %836 = vector.shape_cast %835 : vector<128xf32> to vector<1x128xf32>
    %837 = arith.addf %805, %836 : vector<1x128xf32>
    %c6_842 = arith.constant 6 : index
    %c0_843 = arith.constant 0 : index
    %c0_844 = arith.constant 0 : index
    %838 = vector.load %arg1[%c6_842, %c0_843, %c0_844] : memref<16x16x128xf32, #tpu.memory_space<vmem>>, vector<1x16x128xf32>
    %839 = vector.shape_cast %838 : vector<1x16x128xf32> to vector<16x128xf32>
    %c7_845 = arith.constant 7 : index
    %c0_846 = arith.constant 0 : index
    %c0_847 = arith.constant 0 : index
    %840 = vector.load %arg1[%c7_845, %c0_846, %c0_847] : memref<16x16x128xf32, #tpu.memory_space<vmem>>, vector<1x16x128xf32>
    %841 = vector.shape_cast %840 : vector<1x16x128xf32> to vector<16x128xf32>
    %842 = arith.maximumf %839, %841 : vector<16x128xf32>
    %c8_848 = arith.constant 8 : index
    %c0_849 = arith.constant 0 : index
    %c0_850 = arith.constant 0 : index
    %843 = vector.load %arg1[%c8_848, %c0_849, %c0_850] : memref<16x16x128xf32, #tpu.memory_space<vmem>>, vector<1x16x128xf32>
    %844 = vector.shape_cast %843 : vector<1x16x128xf32> to vector<16x128xf32>
    %845 = arith.maximumf %842, %844 : vector<16x128xf32>
    %c9_851 = arith.constant 9 : index
    %c0_852 = arith.constant 0 : index
    %c0_853 = arith.constant 0 : index
    %846 = vector.load %arg1[%c9_851, %c0_852, %c0_853] : memref<16x16x128xf32, #tpu.memory_space<vmem>>, vector<1x16x128xf32>
    %847 = vector.shape_cast %846 : vector<1x16x128xf32> to vector<16x128xf32>
    %848 = arith.maximumf %845, %847 : vector<16x128xf32>
    %c10_854 = arith.constant 10 : index
    %c0_855 = arith.constant 0 : index
    %c0_856 = arith.constant 0 : index
    %849 = vector.load %arg1[%c10_854, %c0_855, %c0_856] : memref<16x16x128xf32, #tpu.memory_space<vmem>>, vector<1x16x128xf32>
    %850 = vector.shape_cast %849 : vector<1x16x128xf32> to vector<16x128xf32>
    %851 = arith.maximumf %848, %850 : vector<16x128xf32>
    %c11_857 = arith.constant 11 : index
    %c0_858 = arith.constant 0 : index
    %c0_859 = arith.constant 0 : index
    %852 = vector.load %arg1[%c11_857, %c0_858, %c0_859] : memref<16x16x128xf32, #tpu.memory_space<vmem>>, vector<1x16x128xf32>
    %853 = vector.shape_cast %852 : vector<1x16x128xf32> to vector<16x128xf32>
    %854 = arith.maximumf %851, %853 : vector<16x128xf32>
    %c0_860 = arith.constant 0 : index
    %c0_861 = arith.constant 0 : index
    %855 = vector.load %arg3[%c0_860, %c0_861] : memref<16x128xf32, #tpu.memory_space<vmem>>, vector<16x128xf32>
    tpu.vector_store %arg3[%c0_860, %c0_861], %854 {strides = array<i32>} : memref<16x128xf32, #tpu.memory_space<vmem>>, vector<16x128xf32>,
    %c0_862 = arith.constant 0 : index
    %c0_863 = arith.constant 0 : index
    %856 = tpu.strided_load %arg3[%c0_862, %c0_863] {strides = array<i32: 3, 1>} : memref<16x128xf32, #tpu.memory_space<vmem>>, vector<4x128xf32>
    %c1_864 = arith.constant 1 : index
    %c0_865 = arith.constant 0 : index
    %857 = tpu.strided_load %arg3[%c1_864, %c0_865] {strides = array<i32: 3, 1>} : memref<16x128xf32, #tpu.memory_space<vmem>>, vector<4x128xf32>
    %858 = arith.maximumf %856, %857 : vector<4x128xf32>
    %c2_866 = arith.constant 2 : index
    %c0_867 = arith.constant 0 : index
    %859 = tpu.strided_load %arg3[%c2_866, %c0_867] {strides = array<i32: 3, 1>} : memref<16x128xf32, #tpu.memory_space<vmem>>, vector<4x128xf32>
    %860 = arith.maximumf %858, %859 : vector<4x128xf32>
    %c3_868 = arith.constant 3 : index
    %c0_869 = arith.constant 0 : index
    %861 = tpu.strided_load %arg3[%c3_868, %c0_869] {strides = array<i32: 3, 1>} : memref<16x128xf32, #tpu.memory_space<vmem>>, vector<4x128xf32>
    %862 = arith.maximumf %860, %861 : vector<4x128xf32>
    %c4_870 = arith.constant 4 : index
    %c0_871 = arith.constant 0 : index
    %863 = tpu.strided_load %arg3[%c4_870, %c0_871] {strides = array<i32: 3, 1>} : memref<16x128xf32, #tpu.memory_space<vmem>>, vector<4x128xf32>
    %864 = arith.maximumf %862, %863 : vector<4x128xf32>
    %c5_872 = arith.constant 5 : index
    %c0_873 = arith.constant 0 : index
    %865 = tpu.strided_load %arg3[%c5_872, %c0_873] {strides = array<i32: 3, 1>} : memref<16x128xf32, #tpu.memory_space<vmem>>, vector<4x128xf32>
    %866 = arith.maximumf %864, %865 : vector<4x128xf32>
    %cst_874 = arith.constant dense<0.000000e+00> : vector<128xf32>
    %867 = vector.multi_reduction <add>, %866, %cst_874 [0] : vector<4x128xf32> to vector<128xf32>
    %868 = vector.shape_cast %867 : vector<128xf32> to vector<1x128xf32>
    %869 = arith.addf %837, %868 : vector<1x128xf32>
    %c9_875 = arith.constant 9 : index
    %c0_876 = arith.constant 0 : index
    %c0_877 = arith.constant 0 : index
    %870 = vector.load %arg1[%c9_875, %c0_876, %c0_877] : memref<16x16x128xf32, #tpu.memory_space<vmem>>, vector<1x16x128xf32>
    %871 = vector.shape_cast %870 : vector<1x16x128xf32> to vector<16x128xf32>
    %c10_878 = arith.constant 10 : index
    %c0_879 = arith.constant 0 : index
    %c0_880 = arith.constant 0 : index
    %872 = vector.load %arg1[%c10_878, %c0_879, %c0_880] : memref<16x16x128xf32, #tpu.memory_space<vmem>>, vector<1x16x128xf32>
    %873 = vector.shape_cast %872 : vector<1x16x128xf32> to vector<16x128xf32>
    %874 = arith.maximumf %871, %873 : vector<16x128xf32>
    %c11_881 = arith.constant 11 : index
    %c0_882 = arith.constant 0 : index
    %c0_883 = arith.constant 0 : index
    %875 = vector.load %arg1[%c11_881, %c0_882, %c0_883] : memref<16x16x128xf32, #tpu.memory_space<vmem>>, vector<1x16x128xf32>
    %876 = vector.shape_cast %875 : vector<1x16x128xf32> to vector<16x128xf32>
    %877 = arith.maximumf %874, %876 : vector<16x128xf32>
    %c12_884 = arith.constant 12 : index
    %c0_885 = arith.constant 0 : index
    %c0_886 = arith.constant 0 : index
    %878 = vector.load %arg1[%c12_884, %c0_885, %c0_886] : memref<16x16x128xf32, #tpu.memory_space<vmem>>, vector<1x16x128xf32>
    %879 = vector.shape_cast %878 : vector<1x16x128xf32> to vector<16x128xf32>
    %880 = arith.maximumf %877, %879 : vector<16x128xf32>
    %c13_887 = arith.constant 13 : index
    %c0_888 = arith.constant 0 : index
    %c0_889 = arith.constant 0 : index
    %881 = vector.load %arg1[%c13_887, %c0_888, %c0_889] : memref<16x16x128xf32, #tpu.memory_space<vmem>>, vector<1x16x128xf32>
    %882 = vector.shape_cast %881 : vector<1x16x128xf32> to vector<16x128xf32>
    %883 = arith.maximumf %880, %882 : vector<16x128xf32>
    %c14_890 = arith.constant 14 : index
    %c0_891 = arith.constant 0 : index
    %c0_892 = arith.constant 0 : index
    %884 = vector.load %arg1[%c14_890, %c0_891, %c0_892] : memref<16x16x128xf32, #tpu.memory_space<vmem>>, vector<1x16x128xf32>
    %885 = vector.shape_cast %884 : vector<1x16x128xf32> to vector<16x128xf32>
    %886 = arith.maximumf %883, %885 : vector<16x128xf32>
    %c0_893 = arith.constant 0 : index
    %c0_894 = arith.constant 0 : index
    %887 = vector.load %arg3[%c0_893, %c0_894] : memref<16x128xf32, #tpu.memory_space<vmem>>, vector<16x128xf32>
    tpu.vector_store %arg3[%c0_893, %c0_894], %886 {strides = array<i32>} : memref<16x128xf32, #tpu.memory_space<vmem>>, vector<16x128xf32>,
    %c0_895 = arith.constant 0 : index
    %c0_896 = arith.constant 0 : index
    %888 = tpu.strided_load %arg3[%c0_895, %c0_896] {strides = array<i32: 3, 1>} : memref<16x128xf32, #tpu.memory_space<vmem>>, vector<4x128xf32>
    %c1_897 = arith.constant 1 : index
    %c0_898 = arith.constant 0 : index
    %889 = tpu.strided_load %arg3[%c1_897, %c0_898] {strides = array<i32: 3, 1>} : memref<16x128xf32, #tpu.memory_space<vmem>>, vector<4x128xf32>
    %890 = arith.maximumf %888, %889 : vector<4x128xf32>
    %c2_899 = arith.constant 2 : index
    %c0_900 = arith.constant 0 : index
    %891 = tpu.strided_load %arg3[%c2_899, %c0_900] {strides = array<i32: 3, 1>} : memref<16x128xf32, #tpu.memory_space<vmem>>, vector<4x128xf32>
    %892 = arith.maximumf %890, %891 : vector<4x128xf32>
    %c3_901 = arith.constant 3 : index
    %c0_902 = arith.constant 0 : index
    %893 = tpu.strided_load %arg3[%c3_901, %c0_902] {strides = array<i32: 3, 1>} : memref<16x128xf32, #tpu.memory_space<vmem>>, vector<4x128xf32>
    %894 = arith.maximumf %892, %893 : vector<4x128xf32>
    %c4_903 = arith.constant 4 : index
    %c0_904 = arith.constant 0 : index
    %895 = tpu.strided_load %arg3[%c4_903, %c0_904] {strides = array<i32: 3, 1>} : memref<16x128xf32, #tpu.memory_space<vmem>>, vector<4x128xf32>
    %896 = arith.maximumf %894, %895 : vector<4x128xf32>
    %c5_905 = arith.constant 5 : index
    %c0_906 = arith.constant 0 : index
    %897 = tpu.strided_load %arg3[%c5_905, %c0_906] {strides = array<i32: 3, 1>} : memref<16x128xf32, #tpu.memory_space<vmem>>, vector<4x128xf32>
    %898 = arith.maximumf %896, %897 : vector<4x128xf32>
    %cst_907 = arith.constant dense<0.000000e+00> : vector<128xf32>
    %899 = vector.multi_reduction <add>, %898, %cst_907 [0] : vector<4x128xf32> to vector<128xf32>
    %900 = vector.shape_cast %899 : vector<128xf32> to vector<1x128xf32>
    %901 = arith.addf %869, %900 : vector<1x128xf32>
    %cst_908 = arith.constant 0.000000e+00 : f32
    %902 = vector.broadcast %cst_908 : f32 to vector<1x128xf32>
    %903 = arith.maximumf %901, %902 : vector<1x128xf32>
    %cst_909 = arith.constant 1.000000e+00 : f32
    %904 = vector.broadcast %cst_909 : f32 to vector<1x128xf32>
    %905 = arith.addf %903, %904 : vector<1x128xf32>
    %906 = math.log %905 : vector<1x128xf32>
    %cst_910 = arith.constant 2.000000e+00 : f32
    %907 = math.log %cst_910 : f32
    %908 = vector.broadcast %907 : f32 to vector<1x128xf32>
    %909 = arith.divf %906, %908 : vector<1x128xf32>
    %cst_911 = arith.constant -0.438315719 : f32
    %910 = vector.broadcast %cst_911 : f32 to vector<1x128xf32>
    %911 = arith.mulf %910, %909 : vector<1x128xf32>
    %912 = arith.addf %774, %911 : vector<1x128xf32>
    %c0_912 = arith.constant 0 : index
    %c0_913 = arith.constant 0 : index
    %913 = vector.load %arg2[%c0_912, %c0_913] : memref<1x128xf32, #tpu.memory_space<vmem>>, vector<1x128xf32>
    tpu.vector_store %arg2[%c0_912, %c0_913], %912 {strides = array<i32>} : memref<1x128xf32, #tpu.memory_space<vmem>>, vector<1x128xf32>,
    return
  }
  func.func @transform_0(%arg0: i32) -> (i32, i32, i32) {
    %c0_i32 = arith.constant 0 : i32
    %c0_i32_0 = arith.constant 0 : i32
    %c0_i32_1 = arith.constant 0 : i32
    return %c0_i32, %c0_i32_0, %arg0 : i32, i32, i32
  }
  func.func @transform_1(%arg0: i32) -> (i32, i32) {
    %c0_i32 = arith.constant 0 : i32
    %c0_i32_0 = arith.constant 0 : i32
    return %c0_i32, %arg0 : i32, i32
  }
}

</mosaic_0001>

<llo_original>
// kernel: gdcb_forward.1
$region0: #{gdcb_forward.1}
  #allocation0 [shape = 'u32[]', space=smem, size = 0x4, offset = 0x4, fixed_abs, tag = 'smem constant byte address 0x4 - core index']
  #allocation1 [shape = 'u32[144,128]{1,0:T(1,128)}', space=vmem, size = 0x12000, scoped, tag = 'internal scratch']
  #allocation2 [shape = 'f32[16,128]{1,0:T(8,128)}', space=vmem, size = 0x2000, scoped, tag = 'scratch operand']
  %s0 = inlined_call_operand.vmem [shape: f32[16,16,128], index: 0, kind: input, shape index: {}]
  %s1 = inlined_call_operand.vmem [shape: f32[1,128], index: 1, kind: output, shape index: {}]
  %s2 = sld [smem:[#allocation0]]
  $region14: #{gdcb_forward.1} parent=0
    _
  %s4 = ssub.s32 1, %s2
  %s5 = scalar_select 0, %s4, %s2
  // Predicated region
  $region2: #{gdcb_forward.1} parent=0 // pred_check
    _
  $region3: #{gdcb_forward.1} parent=0 // pred_check_branch
    %7 = sbr.rel (0) target = $region5
  $region4: #{gdcb_forward.1} parent=0 // pred_region
    _
  $region5: #{gdcb_forward.1} parent=0 // pred_fallthru
    _
  %v8 = vld [vmem:[%s0] sm:$0xff]
  %v9 = vld [vmem:[%s0 + $0x8] sm:$0xff]
  %s10 = scalar_lea.vmem %s0, 16
  %v11 = vld [vmem:[%s10] sm:$0xff]
  %v12 = vld [vmem:[%s10 + $0x8] sm:$0xff]
  %v13 = vmax.f32 %v8, %v11
  %v14 = vmax.f32 %v9, %v12
  %15 = vst [vmem:[#allocation2] sm:$0xff] %v13
  %16 = vst [vmem:[#allocation2 + $0x8] sm:$0xff] %v14
  %v17 = vld [vmem:[#allocation2] sm:$0xff]
  %v18 = vld [vmem:[#allocation2 + $0x8] sm:$0x7f]
  %v19 = vld [vmem:[#allocation2 + $0x1] sm:$0xff]
  %v20 = vld [vmem:[#allocation2 + $0x9] sm:$0x7f]
  %v21 = vmax.f32 %v17, %v19
  %v22 = vmax.f32 %v18, %v20
  %vm23 = vcmask 1046528
  %v24 = vsel %vm23, %v22, 0.0
  %v25 = vadd.f32 %v21, %v24
  %v26 = vrot.slane %v25, 4
  %v27 = vadd.f32 %v25, %v26
  %v28 = vrot.slane %v27, 2
  %v29 = vadd.f32 %v27, %v28
  %v30 = vrot.slane %v29, 1
  %v31 = vadd.f32 %v29, %v30
  %v32 = vld [vmem:[%s10] sm:$0xff]
  %v33 = vld [vmem:[%s10 + $0x8] sm:$0xff]
  %s34 = scalar_lea.vmem %s0, 32
  %v35 = vld [vmem:[%s34] sm:$0xff]
  %v36 = vld [vmem:[%s34 + $0x8] sm:$0xff]
  %v37 = vmax.f32 %v32, %v35
  %v38 = vmax.f32 %v33, %v36
  %39 = vst [vmem:[#allocation2] sm:$0xff] %v37
  %40 = vst [vmem:[#allocation2 + $0x8] sm:$0xff] %v38
  %v41 = vld [vmem:[#allocation2] sm:$0xff]
  %v42 = vld [vmem:[#allocation2 + $0x8] sm:$0x7f]
  %v43 = vld [vmem:[#allocation2 + $0x1] sm:$0xff]
  %v44 = vld [vmem:[#allocation2 + $0x9] sm:$0x7f]
  %v45 = vmax.f32 %v41, %v43
  %v46 = vmax.f32 %v42, %v44
  %v47 = vsel %vm23, %v46, 0.0
  %v48 = vadd.f32 %v45, %v47
  %v49 = vrot.slane %v48, 4
  %v50 = vadd.f32 %v48, %v49
  %v51 = vrot.slane %v50, 2
  %v52 = vadd.f32 %v50, %v51
  %v53 = vrot.slane %v52, 1
  %v54 = vadd.f32 %v52, %v53
  %v55 = vadd.f32 %v31, %v54
  %v56 = vld [vmem:[%s34] sm:$0xff]
  %v57 = vld [vmem:[%s34 + $0x8] sm:$0xff]
  %s58 = scalar_lea.vmem %s0, 48
  %v59 = vld [vmem:[%s58] sm:$0xff]
  %v60 = vld [vmem:[%s58 + $0x8] sm:$0xff]
  %v61 = vmax.f32 %v56, %v59
  %v62 = vmax.f32 %v57, %v60
  %63 = vst [vmem:[#allocation2] sm:$0xff] %v61
  %64 = vst [vmem:[#allocation2 + $0x8] sm:$0xff] %v62
  %v65 = vld [vmem:[#allocation2] sm:$0xff]
  %v66 = vld [vmem:[#allocation2 + $0x8] sm:$0x7f]
  %v67 = vld [vmem:[#allocation2 + $0x1] sm:$0xff]
  %v68 = vld [vmem:[#allocation2 + $0x9] sm:$0x7f]
  %v69 = vmax.f32 %v65, %v67
  %v70 = vmax.f32 %v66, %v68
  %v71 = vsel %vm23, %v70, 0.0
  %v72 = vadd.f32 %v69, %v71
  %v73 = vrot.slane %v72, 4
  %v74 = vadd.f32 %v72, %v73
  %v75 = vrot.slane %v74, 2
  %v76 = vadd.f32 %v74, %v75
  %v77 = vrot.slane %v76, 1
  %v78 = vadd.f32 %v76, %v77
  %v79 = vadd.f32 %v55, %v78
  %v80 = vld [vmem:[%s58] sm:$0xff]
  %v81 = vld [vmem:[%s58 + $0x8] sm:$0xff]
  %s82 = scalar_lea.vmem %s0, 64
  %v83 = vld [vmem:[%s82] sm:$0xff]
  %v84 = vld [vmem:[%s82 + $0x8] sm:$0xff]
  %v85 = vmax.f32 %v80, %v83
  %v86 = vmax.f32 %v81, %v84
  %87 = vst [vmem:[#allocation2] sm:$0xff] %v85
  %88 = vst [vmem:[#allocation2 + $0x8] sm:$0xff] %v86
  %v89 = vld [vmem:[#allocation2] sm:$0xff]
  %v90 = vld [vmem:[#allocation2 + $0x8] sm:$0x7f]
  %v91 = vld [vmem:[#allocation2 + $0x1] sm:$0xff]
  %v92 = vld [vmem:[#allocation2 + $0x9] sm:$0x7f]
  %v93 = vmax.f32 %v89, %v91
  %v94 = vmax.f32 %v90, %v92
  %v95 = vsel %vm23, %v94, 0.0
  %v96 = vadd.f32 %v93, %v95
  %v97 = vrot.slane %v96, 4
  %v98 = vadd.f32 %v96, %v97
  %v99 = vrot.slane %v98, 2
  %v100 = vadd.f32 %v98, %v99
  %v101 = vrot.slane %v100, 1
  %v102 = vadd.f32 %v100, %v101
  %v103 = vadd.f32 %v79, %v102
  %v104 = vld [vmem:[%s82] sm:$0xff]
  %v105 = vld [vmem:[%s82 + $0x8] sm:$0xff]
  %s106 = scalar_lea.vmem %s0, 80
  %v107 = vld [vmem:[%s106] sm:$0xff]
  %v108 = vld [vmem:[%s106 + $0x8] sm:$0xff]
  %v109 = vmax.f32 %v104, %v107
  %v110 = vmax.f32 %v105, %v108
  %111 = vst [vmem:[#allocation2] sm:$0xff] %v109
  %112 = vst [vmem:[#allocation2 + $0x8] sm:$0xff] %v110
  %v113 = vld [vmem:[#allocation2] sm:$0xff]
  %v114 = vld [vmem:[#allocation2 + $0x8] sm:$0x7f]
  %v115 = vld [vmem:[#allocation2 + $0x1] sm:$0xff]
  %v116 = vld [vmem:[#allocation2 + $0x9] sm:$0x7f]
  %v117 = vmax.f32 %v113, %v115
  %v118 = vmax.f32 %v114, %v116
  %v119 = vsel %vm23, %v118, 0.0
  %v120 = vadd.f32 %v117, %v119
  %v121 = vrot.slane %v120, 4
  %v122 = vadd.f32 %v120, %v121
  %v123 = vrot.slane %v122, 2
  %v124 = vadd.f32 %v122, %v123
  %v125 = vrot.slane %v124, 1
  %v126 = vadd.f32 %v124, %v125
  %v127 = vadd.f32 %v103, %v126
  %v128 = vld [vmem:[%s106] sm:$0xff]
  %v129 = vld [vmem:[%s106 + $0x8] sm:$0xff]
  %s130 = scalar_lea.vmem %s0, 96
  %v131 = vld [vmem:[%s130] sm:$0xff]
  %v132 = vld [vmem:[%s130 + $0x8] sm:$0xff]
  %v133 = vmax.f32 %v128, %v131
  %v134 = vmax.f32 %v129, %v132
  %135 = vst [vmem:[#allocation2] sm:$0xff] %v133
  %136 = vst [vmem:[#allocation2 + $0x8] sm:$0xff] %v134
  %v137 = vld [vmem:[#allocation2] sm:$0xff]
  %v138 = vld [vmem:[#allocation2 + $0x8] sm:$0x7f]
  %v139 = vld [vmem:[#allocation2 + $0x1] sm:$0xff]
  %v140 = vld [vmem:[#allocation2 + $0x9] sm:$0x7f]
  %v141 = vmax.f32 %v137, %v139
  %v142 = vmax.f32 %v138, %v140
  %v143 = vsel %vm23, %v142, 0.0
  %v144 = vadd.f32 %v141, %v143
  %v145 = vrot.slane %v144, 4
  %v146 = vadd.f32 %v144, %v145
  %v147 = vrot.slane %v146, 2
  %v148 = vadd.f32 %v146, %v147
  %v149 = vrot.slane %v148, 1
  %v150 = vadd.f32 %v148, %v149
  %v151 = vadd.f32 %v127, %v150
  %v152 = vld [vmem:[%s130] sm:$0xff]
  %v153 = vld [vmem:[%s130 + $0x8] sm:$0xff]
  %s154 = scalar_lea.vmem %s0, 112
  %v155 = vld [vmem:[%s154] sm:$0xff]
  %v156 = vld [vmem:[%s154 + $0x8] sm:$0xff]
  %v157 = vmax.f32 %v152, %v155
  %v158 = vmax.f32 %v153, %v156
  %159 = vst [vmem:[#allocation2] sm:$0xff] %v157
  %160 = vst [vmem:[#allocation2 + $0x8] sm:$0xff] %v158
  %v161 = vld [vmem:[#allocation2] sm:$0xff]
  %v162 = vld [vmem:[#allocation2 + $0x8] sm:$0x7f]
  %v163 = vld [vmem:[#allocation2 + $0x1] sm:$0xff]
  %v164 = vld [vmem:[#allocation2 + $0x9] sm:$0x7f]
  %v165 = vmax.f32 %v161, %v163
  %v166 = vmax.f32 %v162, %v164
  %v167 = vsel %vm23, %v166, 0.0
  %v168 = vadd.f32 %v165, %v167
  %v169 = vrot.slane %v168, 4
  %v170 = vadd.f32 %v168, %v169
  %v171 = vrot.slane %v170, 2
  %v172 = vadd.f32 %v170, %v171
  %v173 = vrot.slane %v172, 1
  %v174 = vadd.f32 %v172, %v173
  %v175 = vadd.f32 %v151, %v174
  %v176 = vld [vmem:[%s154] sm:$0xff]
  %v177 = vld [vmem:[%s154 + $0x8] sm:$0xff]
  %s178 = scalar_lea.vmem %s0, 128
  %v179 = vld [vmem:[%s178] sm:$0xff]
  %v180 = vld [vmem:[%s178 + $0x8] sm:$0xff]
  %v181 = vmax.f32 %v176, %v179
  %v182 = vmax.f32 %v177, %v180
  %183 = vst [vmem:[#allocation2] sm:$0xff] %v181
  %184 = vst [vmem:[#allocation2 + $0x8] sm:$0xff] %v182
  %v185 = vld [vmem:[#allocation2] sm:$0xff]
  %v186 = vld [vmem:[#allocation2 + $0x8] sm:$0x7f]
  %v187 = vld [vmem:[#allocation2 + $0x1] sm:$0xff]
  %v188 = vld [vmem:[#allocation2 + $0x9] sm:$0x7f]
  %v189 = vmax.f32 %v185, %v187
  %v190 = vmax.f32 %v186, %v188
  %v191 = vsel %vm23, %v190, 0.0
  %v192 = vadd.f32 %v189, %v191
  %v193 = vrot.slane %v192, 4
  %v194 = vadd.f32 %v192, %v193
  %v195 = vrot.slane %v194, 2
  %v196 = vadd.f32 %v194, %v195
  %v197 = vrot.slane %v196, 1
  %v198 = vadd.f32 %v196, %v197
  %v199 = vadd.f32 %v175, %v198
  %v200 = vld [vmem:[%s178] sm:$0xff]
  %v201 = vld [vmem:[%s178 + $0x8] sm:$0xff]
  %s202 = scalar_lea.vmem %s0, 144
  %v203 = vld [vmem:[%s202] sm:$0xff]
  %v204 = vld [vmem:[%s202 + $0x8] sm:$0xff]
  %v205 = vmax.f32 %v200, %v203
  %v206 = vmax.f32 %v201, %v204
  %207 = vst [vmem:[#allocation2] sm:$0xff] %v205
  %208 = vst [vmem:[#allocation2 + $0x8] sm:$0xff] %v206
  %v209 = vld [vmem:[#allocation2] sm:$0xff]
  %v210 = vld [vmem:[#allocation2 + $0x8] sm:$0x7f]
  %v211 = vld [vmem:[#allocation2 + $0x1] sm:$0xff]
  %v212 = vld [vmem:[#allocation2 + $0x9] sm:$0x7f]
  %v213 = vmax.f32 %v209, %v211
  %v214 = vmax.f32 %v210, %v212
  %v215 = vsel %vm23, %v214, 0.0
  %v216 = vadd.f32 %v213, %v215
  %v217 = vrot.slane %v216, 4
  %v218 = vadd.f32 %v216, %v217
  %v219 = vrot.slane %v218, 2
  %v220 = vadd.f32 %v218, %v219
  %v221 = vrot.slane %v220, 1
  %v222 = vadd.f32 %v220, %v221
  %v223 = vadd.f32 %v199, %v222
  %v224 = vld [vmem:[%s202] sm:$0xff]
  %v225 = vld [vmem:[%s202 + $0x8] sm:$0xff]
  %s226 = scalar_lea.vmem %s0, 160
  %v227 = vld [vmem:[%s226] sm:$0xff]
  %v228 = vld [vmem:[%s226 + $0x8] sm:$0xff]
  %v229 = vmax.f32 %v224, %v227
  %v230 = vmax.f32 %v225, %v228
  %231 = vst [vmem:[#allocation2] sm:$0xff] %v229
  %232 = vst [vmem:[#allocation2 + $0x8] sm:$0xff] %v230
  %v233 = vld [vmem:[#allocation2] sm:$0xff]
  %v234 = vld [vmem:[#allocation2 + $0x8] sm:$0x7f]
  %v235 = vld [vmem:[#allocation2 + $0x1] sm:$0xff]
  %v236 = vld [vmem:[#allocation2 + $0x9] sm:$0x7f]
  %v237 = vmax.f32 %v233, %v235
  %v238 = vmax.f32 %v234, %v236
  %v239 = vsel %vm23, %v238, 0.0
  %v240 = vadd.f32 %v237, %v239
  %v241 = vrot.slane %v240, 4
  %v242 = vadd.f32 %v240, %v241
  %v243 = vrot.slane %v242, 2
  %v244 = vadd.f32 %v242, %v243
  %v245 = vrot.slane %v244, 1
  %v246 = vadd.f32 %v244, %v245
  %v247 = vadd.f32 %v223, %v246
  %v248 = vld [vmem:[%s226] sm:$0xff]
  %v249 = vld [vmem:[%s226 + $0x8] sm:$0xff]
  %s250 = scalar_lea.vmem %s0, 176
  %v251 = vld [vmem:[%s250] sm:$0xff]
  %v252 = vld [vmem:[%s250 + $0x8] sm:$0xff]
  %v253 = vmax.f32 %v248, %v251
  %v254 = vmax.f32 %v249, %v252
  %255 = vst [vmem:[#allocation2] sm:$0xff] %v253
  %256 = vst [vmem:[#allocation2 + $0x8] sm:$0xff] %v254
  %v257 = vld [vmem:[#allocation2] sm:$0xff]
  %v258 = vld [vmem:[#allocation2 + $0x8] sm:$0x7f]
  %v259 = vld [vmem:[#allocation2 + $0x1] sm:$0xff]
  %v260 = vld [vmem:[#allocation2 + $0x9] sm:$0x7f]
  %v261 = vmax.f32 %v257, %v259
  %v262 = vmax.f32 %v258, %v260
  %v263 = vsel %vm23, %v262, 0.0
  %v264 = vadd.f32 %v261, %v263
  %v265 = vrot.slane %v264, 4
  %v266 = vadd.f32 %v264, %v265
  %v267 = vrot.slane %v266, 2
  %v268 = vadd.f32 %v266, %v267
  %v269 = vrot.slane %v268, 1
  %v270 = vadd.f32 %v268, %v269
  %v271 = vadd.f32 %v247, %v270
  %v272 = vld [vmem:[%s250] sm:$0xff]
  %v273 = vld [vmem:[%s250 + $0x8] sm:$0xff]
  %s274 = scalar_lea.vmem %s0, 192
  %v275 = vld [vmem:[%s274] sm:$0xff]
  %v276 = vld [vmem:[%s274 + $0x8] sm:$0xff]
  %v277 = vmax.f32 %v272, %v275
  %v278 = vmax.f32 %v273, %v276
  %279 = vst [vmem:[#allocation2] sm:$0xff] %v277
  %280 = vst [vmem:[#allocation2 + $0x8] sm:$0xff] %v278
  %v281 = vld [vmem:[#allocation2] sm:$0xff]
  %v282 = vld [vmem:[#allocation2 + $0x8] sm:$0x7f]
  %v283 = vld [vmem:[#allocation2 + $0x1] sm:$0xff]
  %v284 = vld [vmem:[#allocation2 + $0x9] sm:$0x7f]
  %v285 = vmax.f32 %v281, %v283
  %v286 = vmax.f32 %v282, %v284
  %v287 = vsel %vm23, %v286, 0.0
  %v288 = vadd.f32 %v285, %v287
  %v289 = vrot.slane %v288, 4
  %v290 = vadd.f32 %v288, %v289
  %v291 = vrot.slane %v290, 2
  %v292 = vadd.f32 %v290, %v291
  %v293 = vrot.slane %v292, 1
  %v294 = vadd.f32 %v292, %v293
  %v295 = vadd.f32 %v271, %v294
  %v296 = vld [vmem:[%s274] sm:$0xff]
  %v297 = vld [vmem:[%s274 + $0x8] sm:$0xff]
  %s298 = scalar_lea.vmem %s0, 208
  %v299 = vld [vmem:[%s298] sm:$0xff]
  %v300 = vld [vmem:[%s298 + $0x8] sm:$0xff]
  %v301 = vmax.f32 %v296, %v299
  %v302 = vmax.f32 %v297, %v300
  %303 = vst [vmem:[#allocation2] sm:$0xff] %v301
  %304 = vst [vmem:[#allocation2 + $0x8] sm:$0xff] %v302
  %v305 = vld [vmem:[#allocation2] sm:$0xff]
  %v306 = vld [vmem:[#allocation2 + $0x8] sm:$0x7f]
  %v307 = vld [vmem:[#allocation2 + $0x1] sm:$0xff]
  %v308 = vld [vmem:[#allocation2 + $0x9] sm:$0x7f]
  %v309 = vmax.f32 %v305, %v307
  %v310 = vmax.f32 %v306, %v308
  %v311 = vsel %vm23, %v310, 0.0
  %v312 = vadd.f32 %v309, %v311
  %v313 = vrot.slane %v312, 4
  %v314 = vadd.f32 %v312, %v313
  %v315 = vrot.slane %v314, 2
  %v316 = vadd.f32 %v314, %v315
  %v317 = vrot.slane %v316, 1
  %v318 = vadd.f32 %v316, %v317
  %v319 = vadd.f32 %v295, %v318
  %v320 = vld [vmem:[%s298] sm:$0xff]
  %v321 = vld [vmem:[%s298 + $0x8] sm:$0xff]
  %s322 = scalar_lea.vmem %s0, 224
  %v323 = vld [vmem:[%s322] sm:$0xff]
  %v324 = vld [vmem:[%s322 + $0x8] sm:$0xff]
  %v325 = vmax.f32 %v320, %v323
  %v326 = vmax.f32 %v321, %v324
  %327 = vst [vmem:[#allocation2] sm:$0xff] %v325
  %328 = vst [vmem:[#allocation2 + $0x8] sm:$0xff] %v326
  %v329 = vld [vmem:[#allocation2] sm:$0xff]
  %v330 = vld [vmem:[#allocation2 + $0x8] sm:$0x7f]
  %v331 = vld [vmem:[#allocation2 + $0x1] sm:$0xff]
  %v332 = vld [vmem:[#allocation2 + $0x9] sm:$0x7f]
  %v333 = vmax.f32 %v329, %v331
  %v334 = vmax.f32 %v330, %v332
  %v335 = vsel %vm23, %v334, 0.0
  %v336 = vadd.f32 %v333, %v335
  %v337 = vrot.slane %v336, 4
  %v338 = vadd.f32 %v336, %v337
  %v339 = vrot.slane %v338, 2
  %v340 = vadd.f32 %v338, %v339
  %v341 = vrot.slane %v340, 1
  %v342 = vadd.f32 %v340, %v341
  %v343 = vadd.f32 %v319, %v342
  %v344 = vld [vmem:[%s322] sm:$0xff]
  %v345 = vld [vmem:[%s322 + $0x8] sm:$0xff]
  %s346 = scalar_lea.vmem %s0, 240
  %v347 = vld [vmem:[%s346] sm:$0xff]
  %v348 = vld [vmem:[%s346 + $0x8] sm:$0xff]
  %v349 = vmax.f32 %v344, %v347
  %v350 = vmax.f32 %v345, %v348
  %351 = vst [vmem:[#allocation2] sm:$0xff] %v349
  %352 = vst [vmem:[#allocation2 + $0x8] sm:$0xff] %v350
  %v353 = vld [vmem:[#allocation2] sm:$0xff]
  %v354 = vld [vmem:[#allocation2 + $0x8] sm:$0x7f]
  %v355 = vld [vmem:[#allocation2 + $0x1] sm:$0xff]
  %v356 = vld [vmem:[#allocation2 + $0x9] sm:$0x7f]
  %v357 = vmax.f32 %v353, %v355
  %v358 = vmax.f32 %v354, %v356
  %v359 = vsel %vm23, %v358, 0.0
  %v360 = vadd.f32 %v357, %v359
  %v361 = vrot.slane %v360, 4
  %v362 = vadd.f32 %v360, %v361
  %v363 = vrot.slane %v362, 2
  %v364 = vadd.f32 %v362, %v363
  %v365 = vrot.slane %v364, 1
  %v366 = vadd.f32 %v364, %v365
  %v367 = vadd.f32 %v343, %v366
  %v368 = vmax.f32 %v367, 0.0
  %v369 = vadd.f32 %v368, 1.0
  %v370 = vlog2.pop %v369
  %v371 = vmul.f32 %v370, 0.6931472
  %v372 = vrcp.pop 0.6931472
  %v373 = vmul.f32 %v371, %v372
  %v374 = vmul.f32 %v373, 0.57351387
  %v375 = vadd.f32 %v374, 0.0
  %v376 = vld [vmem:[%s0] sm:$0xff]
  %v377 = vld [vmem:[%s0 + $0x8] sm:$0xff]
  %v378 = vld [vmem:[%s10] sm:$0xff]
  %v379 = vld [vmem:[%s10 + $0x8] sm:$0xff]
  %v380 = vmax.f32 %v376, %v378
  %v381 = vmax.f32 %v377, %v379
  %v382 = vld [vmem:[%s34] sm:$0xff]
  %v383 = vld [vmem:[%s34 + $0x8] sm:$0xff]
  %v384 = vmax.f32 %v380, %v382
  %v385 = vmax.f32 %v381, %v383
  %386 = vst [vmem:[#allocation2] sm:$0xff] %v384
  %387 = vst [vmem:[#allocation2 + $0x8] sm:$0xff] %v385
  %v388 = vld [vmem:[#allocation2] sm:$0xff]
  %v389 = vld [vmem:[#allocation2 + $0x8] sm:$0x3f]
  %v390 = vld [vmem:[#allocation2 + $0x1] sm:$0xff]
  %v391 = vld [vmem:[#allocation2 + $0x9] sm:$0x3f]
  %v392 = vmax.f32 %v388, %v390
  %v393 = vmax.f32 %v389, %v391
  %v394 = vld [vmem:[#allocation2 + $0x2] sm:$0xff]
  %v395 = vld [vmem:[#allocation2 + $0xa] sm:$0x3f]
  %v396 = vmax.f32 %v392, %v394
  %v397 = vmax.f32 %v393, %v395
  %vm398 = vcmask 1045504
  %v399 = vsel %vm398, %v397, 0.0
  %v400 = vadd.f32 %v396, %v399
  %v401 = vrot.slane %v400, 4
  %v402 = vadd.f32 %v400, %v401
  %v403 = vrot.slane %v402, 2
  %v404 = vadd.f32 %v402, %v403
  %v405 = vrot.slane %v404, 1
  %v406 = vadd.f32 %v404, %v405
  %v407 = vld [vmem:[%s10] sm:$0xff]
  %v408 = vld [vmem:[%s10 + $0x8] sm:$0xff]
  %v409 = vld [vmem:[%s34] sm:$0xff]
  %v410 = vld [vmem:[%s34 + $0x8] sm:$0xff]
  %v411 = vmax.f32 %v407, %v409
  %v412 = vmax.f32 %v408, %v410
  %v413 = vld [vmem:[%s58] sm:$0xff]
  %v414 = vld [vmem:[%s58 + $0x8] sm:$0xff]
  %v415 = vmax.f32 %v411, %v413
  %v416 = vmax.f32 %v412, %v414
  %417 = vst [vmem:[#allocation2] sm:$0xff] %v415
  %418 = vst [vmem:[#allocation2 + $0x8] sm:$0xff] %v416
  %v419 = vld [vmem:[#allocation2] sm:$0xff]
  %v420 = vld [vmem:[#allocation2 + $0x8] sm:$0x3f]
  %v421 = vld [vmem:[#allocation2 + $0x1] sm:$0xff]
  %v422 = vld [vmem:[#allocation2 + $0x9] sm:$0x3f]
  %v423 = vmax.f32 %v419, %v421
  %v424 = vmax.f32 %v420, %v422
  %v425 = vld [vmem:[#allocation2 + $0x2] sm:$0xff]
  %v426 = vld [vmem:[#allocation2 + $0xa] sm:$0x3f]
  %v427 = vmax.f32 %v423, %v425
  %v428 = vmax.f32 %v424, %v426
  %v429 = vsel %vm398, %v428, 0.0
  %v430 = vadd.f32 %v427, %v429
  %v431 = vrot.slane %v430, 4
  %v432 = vadd.f32 %v430, %v431
  %v433 = vrot.slane %v432, 2
  %v434 = vadd.f32 %v432, %v433
  %v435 = vrot.slane %v434, 1
  %v436 = vadd.f32 %v434, %v435
  %v437 = vadd.f32 %v406, %v436
  %v438 = vld [vmem:[%s34] sm:$0xff]
  %v439 = vld [vmem:[%s34 + $0x8] sm:$0xff]
  %v440 = vld [vmem:[%s58] sm:$0xff]
  %v441 = vld [vmem:[%s58 + $0x8] sm:$0xff]
  %v442 = vmax.f32 %v438, %v440
  %v443 = vmax.f32 %v439, %v441
  %v444 = vld [vmem:[%s82] sm:$0xff]
  %v445 = vld [vmem:[%s82 + $0x8] sm:$0xff]
  %v446 = vmax.f32 %v442, %v444
  %v447 = vmax.f32 %v443, %v445
  %448 = vst [vmem:[#allocation2] sm:$0xff] %v446
  %449 = vst [vmem:[#allocation2 + $0x8] sm:$0xff] %v447
  %v450 = vld [vmem:[#allocation2] sm:$0xff]
  %v451 = vld [vmem:[#allocation2 + $0x8] sm:$0x3f]
  %v452 = vld [vmem:[#allocation2 + $0x1] sm:$0xff]
  %v453 = vld [vmem:[#allocation2 + $0x9] sm:$0x3f]
  %v454 = vmax.f32 %v450, %v452
  %v455 = vmax.f32 %v451, %v453
  %v456 = vld [vmem:[#allocation2 + $0x2] sm:$0xff]
  %v457 = vld [vmem:[#allocation2 + $0xa] sm:$0x3f]
  %v458 = vmax.f32 %v454, %v456
  %v459 = vmax.f32 %v455, %v457
  %v460 = vsel %vm398, %v459, 0.0
  %v461 = vadd.f32 %v458, %v460
  %v462 = vrot.slane %v461, 4
  %v463 = vadd.f32 %v461, %v462
  %v464 = vrot.slane %v463, 2
  %v465 = vadd.f32 %v463, %v464
  %v466 = vrot.slane %v465, 1
  %v467 = vadd.f32 %v465, %v466
  %v468 = vadd.f32 %v437, %v467
  %v469 = vld [vmem:[%s58] sm:$0xff]
  %v470 = vld [vmem:[%s58 + $0x8] sm:$0xff]
  %v471 = vld [vmem:[%s82] sm:$0xff]
  %v472 = vld [vmem:[%s82 + $0x8] sm:$0xff]
  %v473 = vmax.f32 %v469, %v471
  %v474 = vmax.f32 %v470, %v472
  %v475 = vld [vmem:[%s106] sm:$0xff]
  %v476 = vld [vmem:[%s106 + $0x8] sm:$0xff]
  %v477 = vmax.f32 %v473, %v475
  %v478 = vmax.f32 %v474, %v476
  %479 = vst [vmem:[#allocation2] sm:$0xff] %v477
  %480 = vst [vmem:[#allocation2 + $0x8] sm:$0xff] %v478
  %v481 = vld [vmem:[#allocation2] sm:$0xff]
  %v482 = vld [vmem:[#allocation2 + $0x8] sm:$0x3f]
  %v483 = vld [vmem:[#allocation2 + $0x1] sm:$0xff]
  %v484 = vld [vmem:[#allocation2 + $0x9] sm:$0x3f]
  %v485 = vmax.f32 %v481, %v483
  %v486 = vmax.f32 %v482, %v484
  %v487 = vld [vmem:[#allocation2 + $0x2] sm:$0xff]
  %v488 = vld [vmem:[#allocation2 + $0xa] sm:$0x3f]
  %v489 = vmax.f32 %v485, %v487
  %v490 = vmax.f32 %v486, %v488
  %v491 = vsel %vm398, %v490, 0.0
  %v492 = vadd.f32 %v489, %v491
  %v493 = vrot.slane %v492, 4
  %v494 = vadd.f32 %v492, %v493
  %v495 = vrot.slane %v494, 2
  %v496 = vadd.f32 %v494, %v495
  %v497 = vrot.slane %v496, 1
  %v498 = vadd.f32 %v496, %v497
  %v499 = vadd.f32 %v468, %v498
  %v500 = vld [vmem:[%s82] sm:$0xff]
  %v501 = vld [vmem:[%s82 + $0x8] sm:$0xff]
  %v502 = vld [vmem:[%s106] sm:$0xff]
  %v503 = vld [vmem:[%s106 + $0x8] sm:$0xff]
  %v504 = vmax.f32 %v500, %v502
  %v505 = vmax.f32 %v501, %v503
  %v506 = vld [vmem:[%s130] sm:$0xff]
  %v507 = vld [vmem:[%s130 + $0x8] sm:$0xff]
  %v508 = vmax.f32 %v504, %v506
  %v509 = vmax.f32 %v505, %v507
  %510 = vst [vmem:[#allocation2] sm:$0xff] %v508
  %511 = vst [vmem:[#allocation2 + $0x8] sm:$0xff] %v509
  %v512 = vld [vmem:[#allocation2] sm:$0xff]
  %v513 = vld [vmem:[#allocation2 + $0x8] sm:$0x3f]
  %v514 = vld [vmem:[#allocation2 + $0x1] sm:$0xff]
  %v515 = vld [vmem:[#allocation2 + $0x9] sm:$0x3f]
  %v516 = vmax.f32 %v512, %v514
  %v517 = vmax.f32 %v513, %v515
  %v518 = vld [vmem:[#allocation2 + $0x2] sm:$0xff]
  %v519 = vld [vmem:[#allocation2 + $0xa] sm:$0x3f]
  %v520 = vmax.f32 %v516, %v518
  %v521 = vmax.f32 %v517, %v519
  %v522 = vsel %vm398, %v521, 0.0
  %v523 = vadd.f32 %v520, %v522
  %v524 = vrot.slane %v523, 4
  %v525 = vadd.f32 %v523, %v524
  %v526 = vrot.slane %v525, 2
  %v527 = vadd.f32 %v525, %v526
  %v528 = vrot.slane %v527, 1
  %v529 = vadd.f32 %v527, %v528
  %v530 = vadd.f32 %v499, %v529
  %v531 = vld [vmem:[%s106] sm:$0xff]
  %v532 = vld [vmem:[%s106 + $0x8] sm:$0xff]
  %v533 = vld [vmem:[%s130] sm:$0xff]
  %v534 = vld [vmem:[%s130 + $0x8] sm:$0xff]
  %v535 = vmax.f32 %v531, %v533
  %v536 = vmax.f32 %v532, %v534
  %v537 = vld [vmem:[%s154] sm:$0xff]
  %v538 = vld [vmem:[%s154 + $0x8] sm:$0xff]
  %v539 = vmax.f32 %v535, %v537
  %v540 = vmax.f32 %v536, %v538
  %541 = vst [vmem:[#allocation2] sm:$0xff] %v539
  %542 = vst [vmem:[#allocation2 + $0x8] sm:$0xff] %v540
  %v543 = vld [vmem:[#allocation2] sm:$0xff]
  %v544 = vld [vmem:[#allocation2 + $0x8] sm:$0x3f]
  %v545 = vld [vmem:[#allocation2 + $0x1] sm:$0xff]
  %v546 = vld [vmem:[#allocation2 + $0x9] sm:$0x3f]
  %v547 = vmax.f32 %v543, %v545
  %v548 = vmax.f32 %v544, %v546
  %v549 = vld [vmem:[#allocation2 + $0x2] sm:$0xff]
  %v550 = vld [vmem:[#allocation2 + $0xa] sm:$0x3f]
  %v551 = vmax.f32 %v547, %v549
  %v552 = vmax.f32 %v548, %v550
  %v553 = vsel %vm398, %v552, 0.0
  %v554 = vadd.f32 %v551, %v553
  %v555 = vrot.slane %v554, 4
  %v556 = vadd.f32 %v554, %v555
  %v557 = vrot.slane %v556, 2
  %v558 = vadd.f32 %v556, %v557
  %v559 = vrot.slane %v558, 1
  %v560 = vadd.f32 %v558, %v559
  %v561 = vadd.f32 %v530, %v560
  %v562 = vld [vmem:[%s130] sm:$0xff]
  %v563 = vld [vmem:[%s130 + $0x8] sm:$0xff]
  %v564 = vld [vmem:[%s154] sm:$0xff]
  %v565 = vld [vmem:[%s154 + $0x8] sm:$0xff]
  %v566 = vmax.f32 %v562, %v564
  %v567 = vmax.f32 %v563, %v565
  %v568 = vld [vmem:[%s178] sm:$0xff]
  %v569 = vld [vmem:[%s178 + $0x8] sm:$0xff]
  %v570 = vmax.f32 %v566, %v568
  %v571 = vmax.f32 %v567, %v569
  %572 = vst [vmem:[#allocation2] sm:$0xff] %v570
  %573 = vst [vmem:[#allocation2 + $0x8] sm:$0xff] %v571
  %v574 = vld [vmem:[#allocation2] sm:$0xff]
  %v575 = vld [vmem:[#allocation2 + $0x8] sm:$0x3f]
  %v576 = vld [vmem:[#allocation2 + $0x1] sm:$0xff]
  %v577 = vld [vmem:[#allocation2 + $0x9] sm:$0x3f]
  %v578 = vmax.f32 %v574, %v576
  %v579 = vmax.f32 %v575, %v577
  %v580 = vld [vmem:[#allocation2 + $0x2] sm:$0xff]
  %v581 = vld [vmem:[#allocation2 + $0xa] sm:$0x3f]
  %v582 = vmax.f32 %v578, %v580
  %v583 = vmax.f32 %v579, %v581
  %v584 = vsel %vm398, %v583, 0.0
  %v585 = vadd.f32 %v582, %v584
  %v586 = vrot.slane %v585, 4
  %v587 = vadd.f32 %v585, %v586
  %v588 = vrot.slane %v587, 2
  %v589 = vadd.f32 %v587, %v588
  %v590 = vrot.slane %v589, 1
  %v591 = vadd.f32 %v589, %v590
  %v592 = vadd.f32 %v561, %v591
  %v593 = vld [vmem:[%s154] sm:$0xff]
  %v594 = vld [vmem:[%s154 + $0x8] sm:$0xff]
  %v595 = vld [vmem:[%s178] sm:$0xff]
  %v596 = vld [vmem:[%s178 + $0x8] sm:$0xff]
  %v597 = vmax.f32 %v593, %v595
  %v598 = vmax.f32 %v594, %v596
  %v599 = vld [vmem:[%s202] sm:$0xff]
  %v600 = vld [vmem:[%s202 + $0x8] sm:$0xff]
  %v601 = vmax.f32 %v597, %v599
  %v602 = vmax.f32 %v598, %v600
  %603 = vst [vmem:[#allocation2] sm:$0xff] %v601
  %604 = vst [vmem:[#allocation2 + $0x8] sm:$0xff] %v602
  %v605 = vld [vmem:[#allocation2] sm:$0xff]
  %v606 = vld [vmem:[#allocation2 + $0x8] sm:$0x3f]
  %v607 = vld [vmem:[#allocation2 + $0x1] sm:$0xff]
  %v608 = vld [vmem:[#allocation2 + $0x9] sm:$0x3f]
  %v609 = vmax.f32 %v605, %v607
  %v610 = vmax.f32 %v606, %v608
  %v611 = vld [vmem:[#allocation2 + $0x2] sm:$0xff]
  %v612 = vld [vmem:[#allocation2 + $0xa] sm:$0x3f]
  %v613 = vmax.f32 %v609, %v611
  %v614 = vmax.f32 %v610, %v612
  %v615 = vsel %vm398, %v614, 0.0
  %v616 = vadd.f32 %v613, %v615
  %v617 = vrot.slane %v616, 4
  %v618 = vadd.f32 %v616, %v617
  %v619 = vrot.slane %v618, 2
  %v620 = vadd.f32 %v618, %v619
  %v621 = vrot.slane %v620, 1
  %v622 = vadd.f32 %v620, %v621
  %v623 = vadd.f32 %v592, %v622
  %v624 = vld [vmem:[%s178] sm:$0xff]
  %v625 = vld [vmem:[%s178 + $0x8] sm:$0xff]
  %v626 = vld [vmem:[%s202] sm:$0xff]
  %v627 = vld [vmem:[%s202 + $0x8] sm:$0xff]
  %v628 = vmax.f32 %v624, %v626
  %v629 = vmax.f32 %v625, %v627
  %v630 = vld [vmem:[%s226] sm:$0xff]
  %v631 = vld [vmem:[%s226 + $0x8] sm:$0xff]
  %v632 = vmax.f32 %v628, %v630
  %v633 = vmax.f32 %v629, %v631
  %634 = vst [vmem:[#allocation2] sm:$0xff] %v632
  %635 = vst [vmem:[#allocation2 + $0x8] sm:$0xff] %v633
  %v636 = vld [vmem:[#allocation2] sm:$0xff]
  %v637 = vld [vmem:[#allocation2 + $0x8] sm:$0x3f]
  %v638 = vld [vmem:[#allocation2 + $0x1] sm:$0xff]
  %v639 = vld [vmem:[#allocation2 + $0x9] sm:$0x3f]
  %v640 = vmax.f32 %v636, %v638
  %v641 = vmax.f32 %v637, %v639
  %v642 = vld [vmem:[#allocation2 + $0x2] sm:$0xff]
  %v643 = vld [vmem:[#allocation2 + $0xa] sm:$0x3f]
  %v644 = vmax.f32 %v640, %v642
  %v645 = vmax.f32 %v641, %v643
  %v646 = vsel %vm398, %v645, 0.0
  %v647 = vadd.f32 %v644, %v646
  %v648 = vrot.slane %v647, 4
  %v649 = vadd.f32 %v647, %v648
  %v650 = vrot.slane %v649, 2
  %v651 = vadd.f32 %v649, %v650
  %v652 = vrot.slane %v651, 1
  %v653 = vadd.f32 %v651, %v652
  %v654 = vadd.f32 %v623, %v653
  %v655 = vld [vmem:[%s202] sm:$0xff]
  %v656 = vld [vmem:[%s202 + $0x8] sm:$0xff]
  %v657 = vld [vmem:[%s226] sm:$0xff]
  %v658 = vld [vmem:[%s226 + $0x8] sm:$0xff]
  %v659 = vmax.f32 %v655, %v657
  %v660 = vmax.f32 %v656, %v658
  %v661 = vld [vmem:[%s250] sm:$0xff]
  %v662 = vld [vmem:[%s250 + $0x8] sm:$0xff]
  %v663 = vmax.f32 %v659, %v661
  %v664 = vmax.f32 %v660, %v662
  %665 = vst [vmem:[#allocation2] sm:$0xff] %v663
  %666 = vst [vmem:[#allocation2 + $0x8] sm:$0xff] %v664
  %v667 = vld [vmem:[#allocation2] sm:$0xff]
  %v668 = vld [vmem:[#allocation2 + $0x8] sm:$0x3f]
  %v669 = vld [vmem:[#allocation2 + $0x1] sm:$0xff]
  %v670 = vld [vmem:[#allocation2 + $0x9] sm:$0x3f]
  %v671 = vmax.f32 %v667, %v669
  %v672 = vmax.f32 %v668, %v670
  %v673 = vld [vmem:[#allocation2 + $0x2] sm:$0xff]
  %v674 = vld [vmem:[#allocation2 + $0xa] sm:$0x3f]
  %v675 = vmax.f32 %v671, %v673
  %v676 = vmax.f32 %v672, %v674
  %v677 = vsel %vm398, %v676, 0.0
  %v678 = vadd.f32 %v675, %v677
  %v679 = vrot.slane %v678, 4
  %v680 = vadd.f32 %v678, %v679
  %v681 = vrot.slane %v680, 2
  %v682 = vadd.f32 %v680, %v681
  %v683 = vrot.slane %v682, 1
  %v684 = vadd.f32 %v682, %v683
  %v685 = vadd.f32 %v654, %v684
  %v686 = vld [vmem:[%s226] sm:$0xff]
  %v687 = vld [vmem:[%s226 + $0x8] sm:$0xff]
  %v688 = vld [vmem:[%s250] sm:$0xff]
  %v689 = vld [vmem:[%s250 + $0x8] sm:$0xff]
  %v690 = vmax.f32 %v686, %v688
  %v691 = vmax.f32 %v687, %v689
  %v692 = vld [vmem:[%s274] sm:$0xff]
  %v693 = vld [vmem:[%s274 + $0x8] sm:$0xff]
  %v694 = vmax.f32 %v690, %v692
  %v695 = vmax.f32 %v691, %v693
  %696 = vst [vmem:[#allocation2] sm:$0xff] %v694
  %697 = vst [vmem:[#allocation2 + $0x8] sm:$0xff] %v695
  %v698 = vld [vmem:[#allocation2] sm:$0xff]
  %v699 = vld [vmem:[#allocation2 + $0x8] sm:$0x3f]
  %v700 = vld [vmem:[#allocation2 + $0x1] sm:$0xff]
  %v701 = vld [vmem:[#allocation2 + $0x9] sm:$0x3f]
  %v702 = vmax.f32 %v698, %v700
  %v703 = vmax.f32 %v699, %v701
  %v704 = vld [vmem:[#allocation2 + $0x2] sm:$0xff]
  %v705 = vld [vmem:[#allocation2 + $0xa] sm:$0x3f]
  %v706 = vmax.f32 %v702, %v704
  %v707 = vmax.f32 %v703, %v705
  %v708 = vsel %vm398, %v707, 0.0
  %v709 = vadd.f32 %v706, %v708
  %v710 = vrot.slane %v709, 4
  %v711 = vadd.f32 %v709, %v710
  %v712 = vrot.slane %v711, 2
  %v713 = vadd.f32 %v711, %v712
  %v714 = vrot.slane %v713, 1
  %v715 = vadd.f32 %v713, %v714
  %v716 = vadd.f32 %v685, %v715
  %v717 = vld [vmem:[%s250] sm:$0xff]
  %v718 = vld [vmem:[%s250 + $0x8] sm:$0xff]
  %v719 = vld [vmem:[%s274] sm:$0xff]
  %v720 = vld [vmem:[%s274 + $0x8] sm:$0xff]
  %v721 = vmax.f32 %v717, %v719
  %v722 = vmax.f32 %v718, %v720
  %v723 = vld [vmem:[%s298] sm:$0xff]
  %v724 = vld [vmem:[%s298 + $0x8] sm:$0xff]
  %v725 = vmax.f32 %v721, %v723
  %v726 = vmax.f32 %v722, %v724
  %727 = vst [vmem:[#allocation2] sm:$0xff] %v725
  %728 = vst [vmem:[#allocation2 + $0x8] sm:$0xff] %v726
  %v729 = vld [vmem:[#allocation2] sm:$0xff]
  %v730 = vld [vmem:[#allocation2 + $0x8] sm:$0x3f]
  %v731 = vld [vmem:[#allocation2 + $0x1] sm:$0xff]
  %v732 = vld [vmem:[#allocation2 + $0x9] sm:$0x3f]
  %v733 = vmax.f32 %v729, %v731
  %v734 = vmax.f32 %v730, %v732
  %v735 = vld [vmem:[#allocation2 + $0x2] sm:$0xff]
  %v736 = vld [vmem:[#allocation2 + $0xa] sm:$0x3f]
  %v737 = vmax.f32 %v733, %v735
  %v738 = vmax.f32 %v734, %v736
  %v739 = vsel %vm398, %v738, 0.0
  %v740 = vadd.f32 %v737, %v739
  %v741 = vrot.slane %v740, 4
  %v742 = vadd.f32 %v740, %v741
  %v743 = vrot.slane %v742, 2
  %v744 = vadd.f32 %v742, %v743
  %v745 = vrot.slane %v744, 1
  %v746 = vadd.f32 %v744, %v745
  %v747 = vadd.f32 %v716, %v746
  %v748 = vld [vmem:[%s274] sm:$0xff]
  %v749 = vld [vmem:[%s274 + $0x8] sm:$0xff]
  %v750 = vld [vmem:[%s298] sm:$0xff]
  %v751 = vld [vmem:[%s298 + $0x8] sm:$0xff]
  %v752 = vmax.f32 %v748, %v750
  %v753 = vmax.f32 %v749, %v751
  %v754 = vld [vmem:[%s322] sm:$0xff]
  %v755 = vld [vmem:[%s322 + $0x8] sm:$0xff]
  %v756 = vmax.f32 %v752, %v754
  %v757 = vmax.f32 %v753, %v755
  %758 = vst [vmem:[#allocation2] sm:$0xff] %v756
  %759 = vst [vmem:[#allocation2 + $0x8] sm:$0xff] %v757
  %v760 = vld [vmem:[#allocation2] sm:$0xff]
  %v761 = vld [vmem:[#allocation2 + $0x8] sm:$0x3f]
  %v762 = vld [vmem:[#allocation2 + $0x1] sm:$0xff]
  %v763 = vld [vmem:[#allocation2 + $0x9] sm:$0x3f]
  %v764 = vmax.f32 %v760, %v762
  %v765 = vmax.f32 %v761, %v763
  %v766 = vld [vmem:[#allocation2 + $0x2] sm:$0xff]
  %v767 = vld [vmem:[#allocation2 + $0xa] sm:$0x3f]
  %v768 = vmax.f32 %v764, %v766
  %v769 = vmax.f32 %v765, %v767
  %v770 = vsel %vm398, %v769, 0.0
  %v771 = vadd.f32 %v768, %v770
  %v772 = vrot.slane %v771, 4
  %v773 = vadd.f32 %v771, %v772
  %v774 = vrot.slane %v773, 2
  %v775 = vadd.f32 %v773, %v774
  %v776 = vrot.slane %v775, 1
  %v777 = vadd.f32 %v775, %v776
  %v778 = vadd.f32 %v747, %v777
  %v779 = vld [vmem:[%s298] sm:$0xff]
  %v780 = vld [vmem:[%s298 + $0x8] sm:$0xff]
  %v781 = vld [vmem:[%s322] sm:$0xff]
  %v782 = vld [vmem:[%s322 + $0x8] sm:$0xff]
  %v783 = vmax.f32 %v779, %v781
  %v784 = vmax.f32 %v780, %v782
  %v785 = vld [vmem:[%s346] sm:$0xff]
  %v786 = vld [vmem:[%s346 + $0x8] sm:$0xff]
  %v787 = vmax.f32 %v783, %v785
  %v788 = vmax.f32 %v784, %v786
  %789 = vst [vmem:[#allocation2] sm:$0xff] %v787
  %790 = vst [vmem:[#allocation2 + $0x8] sm:$0xff] %v788
  %v791 = vld [vmem:[#allocation2] sm:$0xff]
  %v792 = vld [vmem:[#allocation2 + $0x8] sm:$0x3f]
  %v793 = vld [vmem:[#allocation2 + $0x1] sm:$0xff]
  %v794 = vld [vmem:[#allocation2 + $0x9] sm:$0x3f]
  %v795 = vmax.f32 %v791, %v793
  %v796 = vmax.f32 %v792, %v794
  %v797 = vld [vmem:[#allocation2 + $0x2] sm:$0xff]
  %v798 = vld [vmem:[#allocation2 + $0xa] sm:$0x3f]
  %v799 = vmax.f32 %v795, %v797
  %v800 = vmax.f32 %v796, %v798
  %v801 = vsel %vm398, %v800, 0.0
  %v802 = vadd.f32 %v799, %v801
  %v803 = vrot.slane %v802, 4
  %v804 = vadd.f32 %v802, %v803
  %v805 = vrot.slane %v804, 2
  %v806 = vadd.f32 %v804, %v805
  %v807 = vrot.slane %v806, 1
  %v808 = vadd.f32 %v806, %v807
  %v809 = vadd.f32 %v778, %v808
  %v810 = vmax.f32 %v809, 0.0
  %v811 = vadd.f32 %v810, 1.0
  %v812 = vlog2.pop %v811
  %v813 = vmul.f32 %v812, 0.6931472
  %v814 = vmul.f32 %v813, %v372
  %v815 = vmul.f32 %v814, 0.20007767
  %v816 = vadd.f32 %v375, %v815
  %v817 = vld [vmem:[%s0] sm:$0xff]
  %v818 = vld [vmem:[%s0 + $0x8] sm:$0xff]
  %v819 = vld [vmem:[%s10] sm:$0xff]
  %v820 = vld [vmem:[%s10 + $0x8] sm:$0xff]
  %v821 = vmax.f32 %v817, %v819
  %v822 = vmax.f32 %v818, %v820
  %v823 = vld [vmem:[%s34] sm:$0xff]
  %v824 = vld [vmem:[%s34 + $0x8] sm:$0xff]
  %v825 = vmax.f32 %v821, %v823
  %v826 = vmax.f32 %v822, %v824
  %v827 = vld [vmem:[%s58] sm:$0xff]
  %v828 = vld [vmem:[%s58 + $0x8] sm:$0xff]
  %v829 = vmax.f32 %v825, %v827
  %v830 = vmax.f32 %v826, %v828
  %831 = vst [vmem:[#allocation2] sm:$0xff] %v829
  %832 = vst [vmem:[#allocation2 + $0x8] sm:$0xff] %v830
  %v833 = vld [vmem:[#allocation2] ss:$2 sm:$0x7f]
  %s834 = scalar_lea.vmem [#allocation2], 1
  %v835 = vld [vmem:[%s834] ss:$2 sm:$0x7f]
  %v836 = vmax.f32 %v833, %v835
  %s837 = scalar_lea.vmem [#allocation2], 2
  %v838 = vld [vmem:[%s837] ss:$2 sm:$0x7f]
  %v839 = vmax.f32 %v836, %v838
  %s840 = scalar_lea.vmem [#allocation2], 3
  %v841 = vld [vmem:[%s840] ss:$2 sm:$0x7f]
  %v842 = vmax.f32 %v839, %v841
  %v843 = vsel %vm23, %v842, 0.0
  %v844 = vrot.slane %v843, 4
  %v845 = vadd.f32 %v843, %v844
  %v846 = vrot.slane %v845, 2
  %v847 = vadd.f32 %v845, %v846
  %v848 = vrot.slane %v847, 1
  %v849 = vadd.f32 %v847, %v848
  %v850 = vld [vmem:[%s34] sm:$0xff]
  %v851 = vld [vmem:[%s34 + $0x8] sm:$0xff]
  %v852 = vld [vmem:[%s58] sm:$0xff]
  %v853 = vld [vmem:[%s58 + $0x8] sm:$0xff]
  %v854 = vmax.f32 %v850, %v852
  %v855 = vmax.f32 %v851, %v853
  %v856 = vld [vmem:[%s82] sm:$0xff]
  %v857 = vld [vmem:[%s82 + $0x8] sm:$0xff]
  %v858 = vmax.f32 %v854, %v856
  %v859 = vmax.f32 %v855, %v857
  %v860 = vld [vmem:[%s106] sm:$0xff]
  %v861 = vld [vmem:[%s106 + $0x8] sm:$0xff]
  %v862 = vmax.f32 %v858, %v860
  %v863 = vmax.f32 %v859, %v861
  %864 = vst [vmem:[#allocation2] sm:$0xff] %v862
  %865 = vst [vmem:[#allocation2 + $0x8] sm:$0xff] %v863
  %v866 = vld [vmem:[#allocation2] ss:$2 sm:$0x7f]
  %v867 = vld [vmem:[%s834] ss:$2 sm:$0x7f]
  %v868 = vmax.f32 %v866, %v867
  %v869 = vld [vmem:[%s837] ss:$2 sm:$0x7f]
  %v870 = vmax.f32 %v868, %v869
  %v871 = vld [vmem:[%s840] ss:$2 sm:$0x7f]
  %v872 = vmax.f32 %v870, %v871
  %v873 = vsel %vm23, %v872, 0.0
  %v874 = vrot.slane %v873, 4
  %v875 = vadd.f32 %v873, %v874
  %v876 = vrot.slane %v875, 2
  %v877 = vadd.f32 %v875, %v876
  %v878 = vrot.slane %v877, 1
  %v879 = vadd.f32 %v877, %v878
  %v880 = vadd.f32 %v849, %v879
  %v881 = vld [vmem:[%s82] sm:$0xff]
  %v882 = vld [vmem:[%s82 + $0x8] sm:$0xff]
  %v883 = vld [vmem:[%s106] sm:$0xff]
  %v884 = vld [vmem:[%s106 + $0x8] sm:$0xff]
  %v885 = vmax.f32 %v881, %v883
  %v886 = vmax.f32 %v882, %v884
  %v887 = vld [vmem:[%s130] sm:$0xff]
  %v888 = vld [vmem:[%s130 + $0x8] sm:$0xff]
  %v889 = vmax.f32 %v885, %v887
  %v890 = vmax.f32 %v886, %v888
  %v891 = vld [vmem:[%s154] sm:$0xff]
  %v892 = vld [vmem:[%s154 + $0x8] sm:$0xff]
  %v893 = vmax.f32 %v889, %v891
  %v894 = vmax.f32 %v890, %v892
  %895 = vst [vmem:[#allocation2] sm:$0xff] %v893
  %896 = vst [vmem:[#allocation2 + $0x8] sm:$0xff] %v894
  %v897 = vld [vmem:[#allocation2] ss:$2 sm:$0x7f]
  %v898 = vld [vmem:[%s834] ss:$2 sm:$0x7f]
  %v899 = vmax.f32 %v897, %v898
  %v900 = vld [vmem:[%s837] ss:$2 sm:$0x7f]
  %v901 = vmax.f32 %v899, %v900
  %v902 = vld [vmem:[%s840] ss:$2 sm:$0x7f]
  %v903 = vmax.f32 %v901, %v902
  %v904 = vsel %vm23, %v903, 0.0
  %v905 = vrot.slane %v904, 4
  %v906 = vadd.f32 %v904, %v905
  %v907 = vrot.slane %v906, 2
  %v908 = vadd.f32 %v906, %v907
  %v909 = vrot.slane %v908, 1
  %v910 = vadd.f32 %v908, %v909
  %v911 = vadd.f32 %v880, %v910
  %v912 = vld [vmem:[%s130] sm:$0xff]
  %v913 = vld [vmem:[%s130 + $0x8] sm:$0xff]
  %v914 = vld [vmem:[%s154] sm:$0xff]
  %v915 = vld [vmem:[%s154 + $0x8] sm:$0xff]
  %v916 = vmax.f32 %v912, %v914
  %v917 = vmax.f32 %v913, %v915
  %v918 = vld [vmem:[%s178] sm:$0xff]
  %v919 = vld [vmem:[%s178 + $0x8] sm:$0xff]
  %v920 = vmax.f32 %v916, %v918
  %v921 = vmax.f32 %v917, %v919
  %v922 = vld [vmem:[%s202] sm:$0xff]
  %v923 = vld [vmem:[%s202 + $0x8] sm:$0xff]
  %v924 = vmax.f32 %v920, %v922
  %v925 = vmax.f32 %v921, %v923
  %926 = vst [vmem:[#allocation2] sm:$0xff] %v924
  %927 = vst [vmem:[#allocation2 + $0x8] sm:$0xff] %v925
  %v928 = vld [vmem:[#allocation2] ss:$2 sm:$0x7f]
  %v929 = vld [vmem:[%s834] ss:$2 sm:$0x7f]
  %v930 = vmax.f32 %v928, %v929
  %v931 = vld [vmem:[%s837] ss:$2 sm:$0x7f]
  %v932 = vmax.f32 %v930, %v931
  %v933 = vld [vmem:[%s840] ss:$2 sm:$0x7f]
  %v934 = vmax.f32 %v932, %v933
  %v935 = vsel %vm23, %v934, 0.0
  %v936 = vrot.slane %v935, 4
  %v937 = vadd.f32 %v935, %v936
  %v938 = vrot.slane %v937, 2
  %v939 = vadd.f32 %v937, %v938
  %v940 = vrot.slane %v939, 1
  %v941 = vadd.f32 %v939, %v940
  %v942 = vadd.f32 %v911, %v941
  %v943 = vld [vmem:[%s178] sm:$0xff]
  %v944 = vld [vmem:[%s178 + $0x8] sm:$0xff]
  %v945 = vld [vmem:[%s202] sm:$0xff]
  %v946 = vld [vmem:[%s202 + $0x8] sm:$0xff]
  %v947 = vmax.f32 %v943, %v945
  %v948 = vmax.f32 %v944, %v946
  %v949 = vld [vmem:[%s226] sm:$0xff]
  %v950 = vld [vmem:[%s226 + $0x8] sm:$0xff]
  %v951 = vmax.f32 %v947, %v949
  %v952 = vmax.f32 %v948, %v950
  %v953 = vld [vmem:[%s250] sm:$0xff]
  %v954 = vld [vmem:[%s250 + $0x8] sm:$0xff]
  %v955 = vmax.f32 %v951, %v953
  %v956 = vmax.f32 %v952, %v954
  %957 = vst [vmem:[#allocation2] sm:$0xff] %v955
  %958 = vst [vmem:[#allocation2 + $0x8] sm:$0xff] %v956
  %v959 = vld [vmem:[#allocation2] ss:$2 sm:$0x7f]
  %v960 = vld [vmem:[%s834] ss:$2 sm:$0x7f]
  %v961 = vmax.f32 %v959, %v960
  %v962 = vld [vmem:[%s837] ss:$2 sm:$0x7f]
  %v963 = vmax.f32 %v961, %v962
  %v964 = vld [vmem:[%s840] ss:$2 sm:$0x7f]
  %v965 = vmax.f32 %v963, %v964
  %v966 = vsel %vm23, %v965, 0.0
  %v967 = vrot.slane %v966, 4
  %v968 = vadd.f32 %v966, %v967
  %v969 = vrot.slane %v968, 2
  %v970 = vadd.f32 %v968, %v969
  %v971 = vrot.slane %v970, 1
  %v972 = vadd.f32 %v970, %v971
  %v973 = vadd.f32 %v942, %v972
  %v974 = vld [vmem:[%s226] sm:$0xff]
  %v975 = vld [vmem:[%s226 + $0x8] sm:$0xff]
  %v976 = vld [vmem:[%s250] sm:$0xff]
  %v977 = vld [vmem:[%s250 + $0x8] sm:$0xff]
  %v978 = vmax.f32 %v974, %v976
  %v979 = vmax.f32 %v975, %v977
  %v980 = vld [vmem:[%s274] sm:$0xff]
  %v981 = vld [vmem:[%s274 + $0x8] sm:$0xff]
  %v982 = vmax.f32 %v978, %v980
  %v983 = vmax.f32 %v979, %v981
  %v984 = vld [vmem:[%s298] sm:$0xff]
  %v985 = vld [vmem:[%s298 + $0x8] sm:$0xff]
  %v986 = vmax.f32 %v982, %v984
  %v987 = vmax.f32 %v983, %v985
  %988 = vst [vmem:[#allocation2] sm:$0xff] %v986
  %989 = vst [vmem:[#allocation2 + $0x8] sm:$0xff] %v987
  %v990 = vld [vmem:[#allocation2] ss:$2 sm:$0x7f]
  %v991 = vld [vmem:[%s834] ss:$2 sm:$0x7f]
  %v992 = vmax.f32 %v990, %v991
  %v993 = vld [vmem:[%s837] ss:$2 sm:$0x7f]
  %v994 = vmax.f32 %v992, %v993
  %v995 = vld [vmem:[%s840] ss:$2 sm:$0x7f]
  %v996 = vmax.f32 %v994, %v995
  %v997 = vsel %vm23, %v996, 0.0
  %v998 = vrot.slane %v997, 4
  %v999 = vadd.f32 %v997, %v998
  %v1000 = vrot.slane %v999, 2
  %v1001 = vadd.f32 %v999, %v1000
  %v1002 = vrot.slane %v1001, 1
  %v1003 = vadd.f32 %v1001, %v1002
  %v1004 = vadd.f32 %v973, %v1003
  %v1005 = vld [vmem:[%s274] sm:$0xff]
  %v1006 = vld [vmem:[%s274 + $0x8] sm:$0xff]
  %v1007 = vld [vmem:[%s298] sm:$0xff]
  %v1008 = vld [vmem:[%s298 + $0x8] sm:$0xff]
  %v1009 = vmax.f32 %v1005, %v1007
  %v1010 = vmax.f32 %v1006, %v1008
  %v1011 = vld [vmem:[%s322] sm:$0xff]
  %v1012 = vld [vmem:[%s322 + $0x8] sm:$0xff]
  %v1013 = vmax.f32 %v1009, %v1011
  %v1014 = vmax.f32 %v1010, %v1012
  %v1015 = vld [vmem:[%s346] sm:$0xff]
  %v1016 = vld [vmem:[%s346 + $0x8] sm:$0xff]
  %v1017 = vmax.f32 %v1013, %v1015
  %v1018 = vmax.f32 %v1014, %v1016
  %1019 = vst [vmem:[#allocation2] sm:$0xff] %v1017
  %1020 = vst [vmem:[#allocation2 + $0x8] sm:$0xff] %v1018
  %v1021 = vld [vmem:[#allocation2] ss:$2 sm:$0x7f]
  %v1022 = vld [vmem:[%s834] ss:$2 sm:$0x7f]
  %v1023 = vmax.f32 %v1021, %v1022
  %v1024 = vld [vmem:[%s837] ss:$2 sm:$0x7f]
  %v1025 = vmax.f32 %v1023, %v1024
  %v1026 = vld [vmem:[%s840] ss:$2 sm:$0x7f]
  %v1027 = vmax.f32 %v1025, %v1026
  %v1028 = vsel %vm23, %v1027, 0.0
  %v1029 = vrot.slane %v1028, 4
  %v1030 = vadd.f32 %v1028, %v1029
  %v1031 = vrot.slane %v1030, 2
  %v1032 = vadd.f32 %v1030, %v1031
  %v1033 = vrot.slane %v1032, 1
  %v1034 = vadd.f32 %v1032, %v1033
  %v1035 = vadd.f32 %v1004, %v1034
  %v1036 = vmax.f32 %v1035, 0.0
  %v1037 = vadd.f32 %v1036, 1.0
  %v1038 = vlog2.pop %v1037
  %v1039 = vmul.f32 %v1038, 0.6931472
  %v1040 = vmul.f32 %v1039, %v372
  %v1041 = vmul.f32 %v1040, -0.06487952
  %v1042 = vadd.f32 %v816, %v1041
  %v1043 = vld [vmem:[%s0] sm:$0xff]
  %v1044 = vld [vmem:[%s0 + $0x8] sm:$0xff]
  %v1045 = vld [vmem:[%s10] sm:$0xff]
  %v1046 = vld [vmem:[%s10 + $0x8] sm:$0xff]
  %v1047 = vmax.f32 %v1043, %v1045
  %v1048 = vmax.f32 %v1044, %v1046
  %v1049 = vld [vmem:[%s34] sm:$0xff]
  %v1050 = vld [vmem:[%s34 + $0x8] sm:$0xff]
  %v1051 = vmax.f32 %v1047, %v1049
  %v1052 = vmax.f32 %v1048, %v1050
  %v1053 = vld [vmem:[%s58] sm:$0xff]
  %v1054 = vld [vmem:[%s58 + $0x8] sm:$0xff]
  %v1055 = vmax.f32 %v1051, %v1053
  %v1056 = vmax.f32 %v1052, %v1054
  %v1057 = vld [vmem:[%s82] sm:$0xff]
  %v1058 = vld [vmem:[%s82 + $0x8] sm:$0xff]
  %v1059 = vmax.f32 %v1055, %v1057
  %v1060 = vmax.f32 %v1056, %v1058
  %1061 = vst [vmem:[#allocation2] sm:$0xff] %v1059
  %1062 = vst [vmem:[#allocation2 + $0x8] sm:$0xff] %v1060
  %v1063 = vld [vmem:[#allocation2] ss:$2 sm:$0x3f]
  %v1064 = vld [vmem:[%s834] ss:$2 sm:$0x3f]
  %v1065 = vmax.f32 %v1063, %v1064
  %s1066 = scalar_lea.vmem [#allocation2], 2
  %v1067 = vld [vmem:[%s1066] ss:$2 sm:$0x3f]
  %v1068 = vmax.f32 %v1065, %v1067
  %v1069 = vld [vmem:[%s840] ss:$2 sm:$0x3f]
  %v1070 = vmax.f32 %v1068, %v1069
  %s1071 = scalar_lea.vmem [#allocation2], 4
  %v1072 = vld [vmem:[%s1071] ss:$2 sm:$0x3f]
  %v1073 = vmax.f32 %v1070, %v1072
  %v1074 = vsel %vm398, %v1073, 0.0
  %v1075 = vrot.slane %v1074, 4
  %v1076 = vadd.f32 %v1074, %v1075
  %v1077 = vrot.slane %v1076, 2
  %v1078 = vadd.f32 %v1076, %v1077
  %v1079 = vrot.slane %v1078, 1
  %v1080 = vadd.f32 %v1078, %v1079
  %v1081 = vld [vmem:[%s34] sm:$0xff]
  %v1082 = vld [vmem:[%s34 + $0x8] sm:$0xff]
  %v1083 = vld [vmem:[%s58] sm:$0xff]
  %v1084 = vld [vmem:[%s58 + $0x8] sm:$0xff]
  %v1085 = vmax.f32 %v1081, %v1083
  %v1086 = vmax.f32 %v1082, %v1084
  %v1087 = vld [vmem:[%s82] sm:$0xff]
  %v1088 = vld [vmem:[%s82 + $0x8] sm:$0xff]
  %v1089 = vmax.f32 %v1085, %v1087
  %v1090 = vmax.f32 %v1086, %v1088
  %v1091 = vld [vmem:[%s106] sm:$0xff]
  %v1092 = vld [vmem:[%s106 + $0x8] sm:$0xff]
  %v1093 = vmax.f32 %v1089, %v1091
  %v1094 = vmax.f32 %v1090, %v1092
  %v1095 = vld [vmem:[%s130] sm:$0xff]
  %v1096 = vld [vmem:[%s130 + $0x8] sm:$0xff]
  %v1097 = vmax.f32 %v1093, %v1095
  %v1098 = vmax.f32 %v1094, %v1096
  %1099 = vst [vmem:[#allocation2] sm:$0xff] %v1097
  %1100 = vst [vmem:[#allocation2 + $0x8] sm:$0xff] %v1098
  %v1101 = vld [vmem:[#allocation2] ss:$2 sm:$0x3f]
  %v1102 = vld [vmem:[%s834] ss:$2 sm:$0x3f]
  %v1103 = vmax.f32 %v1101, %v1102
  %v1104 = vld [vmem:[%s1066] ss:$2 sm:$0x3f]
  %v1105 = vmax.f32 %v1103, %v1104
  %v1106 = vld [vmem:[%s840] ss:$2 sm:$0x3f]
  %v1107 = vmax.f32 %v1105, %v1106
  %v1108 = vld [vmem:[%s1071] ss:$2 sm:$0x3f]
  %v1109 = vmax.f32 %v1107, %v1108
  %v1110 = vsel %vm398, %v1109, 0.0
  %v1111 = vrot.slane %v1110, 4
  %v1112 = vadd.f32 %v1110, %v1111
  %v1113 = vrot.slane %v1112, 2
  %v1114 = vadd.f32 %v1112, %v1113
  %v1115 = vrot.slane %v1114, 1
  %v1116 = vadd.f32 %v1114, %v1115
  %v1117 = vadd.f32 %v1080, %v1116
  %v1118 = vld [vmem:[%s82] sm:$0xff]
  %v1119 = vld [vmem:[%s82 + $0x8] sm:$0xff]
  %v1120 = vld [vmem:[%s106] sm:$0xff]
  %v1121 = vld [vmem:[%s106 + $0x8] sm:$0xff]
  %v1122 = vmax.f32 %v1118, %v1120
  %v1123 = vmax.f32 %v1119, %v1121
  %v1124 = vld [vmem:[%s130] sm:$0xff]
  %v1125 = vld [vmem:[%s130 + $0x8] sm:$0xff]
  %v1126 = vmax.f32 %v1122, %v1124
  %v1127 = vmax.f32 %v1123, %v1125
  %v1128 = vld [vmem:[%s154] sm:$0xff]
  %v1129 = vld [vmem:[%s154 + $0x8] sm:$0xff]
  %v1130 = vmax.f32 %v1126, %v1128
  %v1131 = vmax.f32 %v1127, %v1129
  %v1132 = vld [vmem:[%s178] sm:$0xff]
  %v1133 = vld [vmem:[%s178 + $0x8] sm:$0xff]
  %v1134 = vmax.f32 %v1130, %v1132
  %v1135 = vmax.f32 %v1131, %v1133
  %1136 = vst [vmem:[#allocation2] sm:$0xff] %v1134
  %1137 = vst [vmem:[#allocation2 + $0x8] sm:$0xff] %v1135
  %v1138 = vld [vmem:[#allocation2] ss:$2 sm:$0x3f]
  %v1139 = vld [vmem:[%s834] ss:$2 sm:$0x3f]
  %v1140 = vmax.f32 %v1138, %v1139
  %v1141 = vld [vmem:[%s1066] ss:$2 sm:$0x3f]
  %v1142 = vmax.f32 %v1140, %v1141
  %v1143 = vld [vmem:[%s840] ss:$2 sm:$0x3f]
  %v1144 = vmax.f32 %v1142, %v1143
  %v1145 = vld [vmem:[%s1071] ss:$2 sm:$0x3f]
  %v1146 = vmax.f32 %v1144, %v1145
  %v1147 = vsel %vm398, %v1146, 0.0
  %v1148 = vrot.slane %v1147, 4
  %v1149 = vadd.f32 %v1147, %v1148
  %v1150 = vrot.slane %v1149, 2
  %v1151 = vadd.f32 %v1149, %v1150
  %v1152 = vrot.slane %v1151, 1
  %v1153 = vadd.f32 %v1151, %v1152
  %v1154 = vadd.f32 %v1117, %v1153
  %v1155 = vld [vmem:[%s130] sm:$0xff]
  %v1156 = vld [vmem:[%s130 + $0x8] sm:$0xff]
  %v1157 = vld [vmem:[%s154] sm:$0xff]
  %v1158 = vld [vmem:[%s154 + $0x8] sm:$0xff]
  %v1159 = vmax.f32 %v1155, %v1157
  %v1160 = vmax.f32 %v1156, %v1158
  %v1161 = vld [vmem:[%s178] sm:$0xff]
  %v1162 = vld [vmem:[%s178 + $0x8] sm:$0xff]
  %v1163 = vmax.f32 %v1159, %v1161
  %v1164 = vmax.f32 %v1160, %v1162
  %v1165 = vld [vmem:[%s202] sm:$0xff]
  %v1166 = vld [vmem:[%s202 + $0x8] sm:$0xff]
  %v1167 = vmax.f32 %v1163, %v1165
  %v1168 = vmax.f32 %v1164, %v1166
  %v1169 = vld [vmem:[%s226] sm:$0xff]
  %v1170 = vld [vmem:[%s226 + $0x8] sm:$0xff]
  %v1171 = vmax.f32 %v1167, %v1169
  %v1172 = vmax.f32 %v1168, %v1170
  %1173 = vst [vmem:[#allocation2] sm:$0xff] %v1171
  %1174 = vst [vmem:[#allocation2 + $0x8] sm:$0xff] %v1172
  %v1175 = vld [vmem:[#allocation2] ss:$2 sm:$0x3f]
  %v1176 = vld [vmem:[%s834] ss:$2 sm:$0x3f]
  %v1177 = vmax.f32 %v1175, %v1176
  %v1178 = vld [vmem:[%s1066] ss:$2 sm:$0x3f]
  %v1179 = vmax.f32 %v1177, %v1178
  %v1180 = vld [vmem:[%s840] ss:$2 sm:$0x3f]
  %v1181 = vmax.f32 %v1179, %v1180
  %v1182 = vld [vmem:[%s1071] ss:$2 sm:$0x3f]
  %v1183 = vmax.f32 %v1181, %v1182
  %v1184 = vsel %vm398, %v1183, 0.0
  %v1185 = vrot.slane %v1184, 4
  %v1186 = vadd.f32 %v1184, %v1185
  %v1187 = vrot.slane %v1186, 2
  %v1188 = vadd.f32 %v1186, %v1187
  %v1189 = vrot.slane %v1188, 1
  %v1190 = vadd.f32 %v1188, %v1189
  %v1191 = vadd.f32 %v1154, %v1190
  %v1192 = vld [vmem:[%s178] sm:$0xff]
  %v1193 = vld [vmem:[%s178 + $0x8] sm:$0xff]
  %v1194 = vld [vmem:[%s202] sm:$0xff]
  %v1195 = vld [vmem:[%s202 + $0x8] sm:$0xff]
  %v1196 = vmax.f32 %v1192, %v1194
  %v1197 = vmax.f32 %v1193, %v1195
  %v1198 = vld [vmem:[%s226] sm:$0xff]
  %v1199 = vld [vmem:[%s226 + $0x8] sm:$0xff]
  %v1200 = vmax.f32 %v1196, %v1198
  %v1201 = vmax.f32 %v1197, %v1199
  %v1202 = vld [vmem:[%s250] sm:$0xff]
  %v1203 = vld [vmem:[%s250 + $0x8] sm:$0xff]
  %v1204 = vmax.f32 %v1200, %v1202
  %v1205 = vmax.f32 %v1201, %v1203
  %v1206 = vld [vmem:[%s274] sm:$0xff]
  %v1207 = vld [vmem:[%s274 + $0x8] sm:$0xff]
  %v1208 = vmax.f32 %v1204, %v1206
  %v1209 = vmax.f32 %v1205, %v1207
  %1210 = vst [vmem:[#allocation2] sm:$0xff] %v1208
  %1211 = vst [vmem:[#allocation2 + $0x8] sm:$0xff] %v1209
  %v1212 = vld [vmem:[#allocation2] ss:$2 sm:$0x3f]
  %v1213 = vld [vmem:[%s834] ss:$2 sm:$0x3f]
  %v1214 = vmax.f32 %v1212, %v1213
  %v1215 = vld [vmem:[%s1066] ss:$2 sm:$0x3f]
  %v1216 = vmax.f32 %v1214, %v1215
  %v1217 = vld [vmem:[%s840] ss:$2 sm:$0x3f]
  %v1218 = vmax.f32 %v1216, %v1217
  %v1219 = vld [vmem:[%s1071] ss:$2 sm:$0x3f]
  %v1220 = vmax.f32 %v1218, %v1219
  %v1221 = vsel %vm398, %v1220, 0.0
  %v1222 = vrot.slane %v1221, 4
  %v1223 = vadd.f32 %v1221, %v1222
  %v1224 = vrot.slane %v1223, 2
  %v1225 = vadd.f32 %v1223, %v1224
  %v1226 = vrot.slane %v1225, 1
  %v1227 = vadd.f32 %v1225, %v1226
  %v1228 = vadd.f32 %v1191, %v1227
  %v1229 = vld [vmem:[%s226] sm:$0xff]
  %v1230 = vld [vmem:[%s226 + $0x8] sm:$0xff]
  %v1231 = vld [vmem:[%s250] sm:$0xff]
  %v1232 = vld [vmem:[%s250 + $0x8] sm:$0xff]
  %v1233 = vmax.f32 %v1229, %v1231
  %v1234 = vmax.f32 %v1230, %v1232
  %v1235 = vld [vmem:[%s274] sm:$0xff]
  %v1236 = vld [vmem:[%s274 + $0x8] sm:$0xff]
  %v1237 = vmax.f32 %v1233, %v1235
  %v1238 = vmax.f32 %v1234, %v1236
  %v1239 = vld [vmem:[%s298] sm:$0xff]
  %v1240 = vld [vmem:[%s298 + $0x8] sm:$0xff]
  %v1241 = vmax.f32 %v1237, %v1239
  %v1242 = vmax.f32 %v1238, %v1240
  %v1243 = vld [vmem:[%s322] sm:$0xff]
  %v1244 = vld [vmem:[%s322 + $0x8] sm:$0xff]
  %v1245 = vmax.f32 %v1241, %v1243
  %v1246 = vmax.f32 %v1242, %v1244
  %1247 = vst [vmem:[#allocation2] sm:$0xff] %v1245
  %1248 = vst [vmem:[#allocation2 + $0x8] sm:$0xff] %v1246
  %v1249 = vld [vmem:[#allocation2] ss:$2 sm:$0x3f]
  %v1250 = vld [vmem:[%s834] ss:$2 sm:$0x3f]
  %v1251 = vmax.f32 %v1249, %v1250
  %v1252 = vld [vmem:[%s1066] ss:$2 sm:$0x3f]
  %v1253 = vmax.f32 %v1251, %v1252
  %v1254 = vld [vmem:[%s840] ss:$2 sm:$0x3f]
  %v1255 = vmax.f32 %v1253, %v1254
  %v1256 = vld [vmem:[%s1071] ss:$2 sm:$0x3f]
  %v1257 = vmax.f32 %v1255, %v1256
  %v1258 = vsel %vm398, %v1257, 0.0
  %v1259 = vrot.slane %v1258, 4
  %v1260 = vadd.f32 %v1258, %v1259
  %v1261 = vrot.slane %v1260, 2
  %v1262 = vadd.f32 %v1260, %v1261
  %v1263 = vrot.slane %v1262, 1
  %v1264 = vadd.f32 %v1262, %v1263
  %v1265 = vadd.f32 %v1228, %v1264
  %v1266 = vmax.f32 %v1265, 0.0
  %v1267 = vadd.f32 %v1266, 1.0
  %v1268 = vlog2.pop %v1267
  %v1269 = vmul.f32 %v1268, 0.6931472
  %v1270 = vmul.f32 %v1269, %v372
  %v1271 = vmul.f32 %v1270, -0.2703963
  %v1272 = vadd.f32 %v1042, %v1271
  %v1273 = vld [vmem:[%s0] sm:$0xff]
  %v1274 = vld [vmem:[%s0 + $0x8] sm:$0xff]
  %v1275 = vld [vmem:[%s10] sm:$0xff]
  %v1276 = vld [vmem:[%s10 + $0x8] sm:$0xff]
  %v1277 = vmax.f32 %v1273, %v1275
  %v1278 = vmax.f32 %v1274, %v1276
  %v1279 = vld [vmem:[%s34] sm:$0xff]
  %v1280 = vld [vmem:[%s34 + $0x8] sm:$0xff]
  %v1281 = vmax.f32 %v1277, %v1279
  %v1282 = vmax.f32 %v1278, %v1280
  %v1283 = vld [vmem:[%s58] sm:$0xff]
  %v1284 = vld [vmem:[%s58 + $0x8] sm:$0xff]
  %v1285 = vmax.f32 %v1281, %v1283
  %v1286 = vmax.f32 %v1282, %v1284
  %v1287 = vld [vmem:[%s82] sm:$0xff]
  %v1288 = vld [vmem:[%s82 + $0x8] sm:$0xff]
  %v1289 = vmax.f32 %v1285, %v1287
  %v1290 = vmax.f32 %v1286, %v1288
  %v1291 = vld [vmem:[%s106] sm:$0xff]
  %v1292 = vld [vmem:[%s106 + $0x8] sm:$0xff]
  %v1293 = vmax.f32 %v1289, %v1291
  %v1294 = vmax.f32 %v1290, %v1292
  %1295 = vst [vmem:[#allocation2] sm:$0xff] %v1293
  %1296 = vst [vmem:[#allocation2 + $0x8] sm:$0xff] %v1294
  %v1297 = vld [vmem:[#allocation2] ss:$3 sm:$0xf]
  %v1298 = vld [vmem:[%s834] ss:$3 sm:$0xf]
  %v1299 = vmax.f32 %v1297, %v1298
  %v1300 = vld [vmem:[%s1066] ss:$3 sm:$0xf]
  %v1301 = vmax.f32 %v1299, %v1300
  %v1302 = vld [vmem:[%s840] ss:$3 sm:$0xf]
  %v1303 = vmax.f32 %v1301, %v1302
  %v1304 = vld [vmem:[%s1071] ss:$3 sm:$0xf]
  %v1305 = vmax.f32 %v1303, %v1304
  %s1306 = scalar_lea.vmem [#allocation2], 5
  %v1307 = vld [vmem:[%s1306] ss:$3 sm:$0xf]
  %v1308 = vmax.f32 %v1305, %v1307
  %vm1309 = vcmask 1043456
  %v1310 = vsel %vm1309, %v1308, 0.0
  %v1311 = vrot.slane %v1310, 4
  %v1312 = vadd.f32 %v1310, %v1311
  %v1313 = vrot.slane %v1312, 2
  %v1314 = vadd.f32 %v1312, %v1313
  %v1315 = vrot.slane %v1314, 1
  %v1316 = vadd.f32 %v1314, %v1315
  %v1317 = vld [vmem:[%s58] sm:$0xff]
  %v1318 = vld [vmem:[%s58 + $0x8] sm:$0xff]
  %v1319 = vld [vmem:[%s82] sm:$0xff]
  %v1320 = vld [vmem:[%s82 + $0x8] sm:$0xff]
  %v1321 = vmax.f32 %v1317, %v1319
  %v1322 = vmax.f32 %v1318, %v1320
  %v1323 = vld [vmem:[%s106] sm:$0xff]
  %v1324 = vld [vmem:[%s106 + $0x8] sm:$0xff]
  %v1325 = vmax.f32 %v1321, %v1323
  %v1326 = vmax.f32 %v1322, %v1324
  %v1327 = vld [vmem:[%s130] sm:$0xff]
  %v1328 = vld [vmem:[%s130 + $0x8] sm:$0xff]
  %v1329 = vmax.f32 %v1325, %v1327
  %v1330 = vmax.f32 %v1326, %v1328
  %v1331 = vld [vmem:[%s154] sm:$0xff]
  %v1332 = vld [vmem:[%s154 + $0x8] sm:$0xff]
  %v1333 = vmax.f32 %v1329, %v1331
  %v1334 = vmax.f32 %v1330, %v1332
  %v1335 = vld [vmem:[%s178] sm:$0xff]
  %v1336 = vld [vmem:[%s178 + $0x8] sm:$0xff]
  %v1337 = vmax.f32 %v1333, %v1335
  %v1338 = vmax.f32 %v1334, %v1336
  %1339 = vst [vmem:[#allocation2] sm:$0xff] %v1337
  %1340 = vst [vmem:[#allocation2 + $0x8] sm:$0xff] %v1338
  %v1341 = vld [vmem:[#allocation2] ss:$3 sm:$0xf]
  %v1342 = vld [vmem:[%s834] ss:$3 sm:$0xf]
  %v1343 = vmax.f32 %v1341, %v1342
  %v1344 = vld [vmem:[%s1066] ss:$3 sm:$0xf]
  %v1345 = vmax.f32 %v1343, %v1344
  %v1346 = vld [vmem:[%s840] ss:$3 sm:$0xf]
  %v1347 = vmax.f32 %v1345, %v1346
  %v1348 = vld [vmem:[%s1071] ss:$3 sm:$0xf]
  %v1349 = vmax.f32 %v1347, %v1348
  %v1350 = vld [vmem:[%s1306] ss:$3 sm:$0xf]
  %v1351 = vmax.f32 %v1349, %v1350
  %v1352 = vsel %vm1309, %v1351, 0.0
  %v1353 = vrot.slane %v1352, 4
  %v1354 = vadd.f32 %v1352, %v1353
  %v1355 = vrot.slane %v1354, 2
  %v1356 = vadd.f32 %v1354, %v1355
  %v1357 = vrot.slane %v1356, 1
  %v1358 = vadd.f32 %v1356, %v1357
  %v1359 = vadd.f32 %v1316, %v1358
  %v1360 = vld [vmem:[%s130] sm:$0xff]
  %v1361 = vld [vmem:[%s130 + $0x8] sm:$0xff]
  %v1362 = vld [vmem:[%s154] sm:$0xff]
  %v1363 = vld [vmem:[%s154 + $0x8] sm:$0xff]
  %v1364 = vmax.f32 %v1360, %v1362
  %v1365 = vmax.f32 %v1361, %v1363
  %v1366 = vld [vmem:[%s178] sm:$0xff]
  %v1367 = vld [vmem:[%s178 + $0x8] sm:$0xff]
  %v1368 = vmax.f32 %v1364, %v1366
  %v1369 = vmax.f32 %v1365, %v1367
  %v1370 = vld [vmem:[%s202] sm:$0xff]
  %v1371 = vld [vmem:[%s202 + $0x8] sm:$0xff]
  %v1372 = vmax.f32 %v1368, %v1370
  %v1373 = vmax.f32 %v1369, %v1371
  %v1374 = vld [vmem:[%s226] sm:$0xff]
  %v1375 = vld [vmem:[%s226 + $0x8] sm:$0xff]
  %v1376 = vmax.f32 %v1372, %v1374
  %v1377 = vmax.f32 %v1373, %v1375
  %v1378 = vld [vmem:[%s250] sm:$0xff]
  %v1379 = vld [vmem:[%s250 + $0x8] sm:$0xff]
  %v1380 = vmax.f32 %v1376, %v1378
  %v1381 = vmax.f32 %v1377, %v1379
  %1382 = vst [vmem:[#allocation2] sm:$0xff] %v1380
  %1383 = vst [vmem:[#allocation2 + $0x8] sm:$0xff] %v1381
  %v1384 = vld [vmem:[#allocation2] ss:$3 sm:$0xf]
  %v1385 = vld [vmem:[%s834] ss:$3 sm:$0xf]
  %v1386 = vmax.f32 %v1384, %v1385
  %v1387 = vld [vmem:[%s1066] ss:$3 sm:$0xf]
  %v1388 = vmax.f32 %v1386, %v1387
  %v1389 = vld [vmem:[%s840] ss:$3 sm:$0xf]
  %v1390 = vmax.f32 %v1388, %v1389
  %v1391 = vld [vmem:[%s1071] ss:$3 sm:$0xf]
  %v1392 = vmax.f32 %v1390, %v1391
  %v1393 = vld [vmem:[%s1306] ss:$3 sm:$0xf]
  %v1394 = vmax.f32 %v1392, %v1393
  %v1395 = vsel %vm1309, %v1394, 0.0
  %v1396 = vrot.slane %v1395, 4
  %v1397 = vadd.f32 %v1395, %v1396
  %v1398 = vrot.slane %v1397, 2
  %v1399 = vadd.f32 %v1397, %v1398
  %v1400 = vrot.slane %v1399, 1
  %v1401 = vadd.f32 %v1399, %v1400
  %v1402 = vadd.f32 %v1359, %v1401
  %v1403 = vld [vmem:[%s202] sm:$0xff]
  %v1404 = vld [vmem:[%s202 + $0x8] sm:$0xff]
  %v1405 = vld [vmem:[%s226] sm:$0xff]
  %v1406 = vld [vmem:[%s226 + $0x8] sm:$0xff]
  %v1407 = vmax.f32 %v1403, %v1405
  %v1408 = vmax.f32 %v1404, %v1406
  %v1409 = vld [vmem:[%s250] sm:$0xff]
  %v1410 = vld [vmem:[%s250 + $0x8] sm:$0xff]
  %v1411 = vmax.f32 %v1407, %v1409
  %v1412 = vmax.f32 %v1408, %v1410
  %v1413 = vld [vmem:[%s274] sm:$0xff]
  %v1414 = vld [vmem:[%s274 + $0x8] sm:$0xff]
  %v1415 = vmax.f32 %v1411, %v1413
  %v1416 = vmax.f32 %v1412, %v1414
  %v1417 = vld [vmem:[%s298] sm:$0xff]
  %v1418 = vld [vmem:[%s298 + $0x8] sm:$0xff]
  %v1419 = vmax.f32 %v1415, %v1417
  %v1420 = vmax.f32 %v1416, %v1418
  %v1421 = vld [vmem:[%s322] sm:$0xff]
  %v1422 = vld [vmem:[%s322 + $0x8] sm:$0xff]
  %v1423 = vmax.f32 %v1419, %v1421
  %v1424 = vmax.f32 %v1420, %v1422
  %1425 = vst [vmem:[#allocation2] sm:$0xff] %v1423
  %1426 = vst [vmem:[#allocation2 + $0x8] sm:$0xff] %v1424
  %v1427 = vld [vmem:[#allocation2] ss:$3 sm:$0xf]
  %v1428 = vld [vmem:[%s834] ss:$3 sm:$0xf]
  %v1429 = vmax.f32 %v1427, %v1428
  %v1430 = vld [vmem:[%s1066] ss:$3 sm:$0xf]
  %v1431 = vmax.f32 %v1429, %v1430
  %v1432 = vld [vmem:[%s840] ss:$3 sm:$0xf]
  %v1433 = vmax.f32 %v1431, %v1432
  %v1434 = vld [vmem:[%s1071] ss:$3 sm:$0xf]
  %v1435 = vmax.f32 %v1433, %v1434
  %v1436 = vld [vmem:[%s1306] ss:$3 sm:$0xf]
  %v1437 = vmax.f32 %v1435, %v1436
  %v1438 = vsel %vm1309, %v1437, 0.0
  %v1439 = vrot.slane %v1438, 4
  %v1440 = vadd.f32 %v1438, %v1439
  %v1441 = vrot.slane %v1440, 2
  %v1442 = vadd.f32 %v1440, %v1441
  %v1443 = vrot.slane %v1442, 1
  %v1444 = vadd.f32 %v1442, %v1443
  %v1445 = vadd.f32 %v1402, %v1444
  %v1446 = vmax.f32 %v1445, 0.0
  %v1447 = vadd.f32 %v1446, 1.0
  %v1448 = vlog2.pop %v1447
  %v1449 = vmul.f32 %v1448, 0.6931472
  %v1450 = vmul.f32 %v1449, %v372
  %v1451 = vmul.f32 %v1450, -0.43831572
  %v1452 = vadd.f32 %v1272, %v1451
  %1453 = vst [vmem:[%s1] sm:$0x1] %v1452
  // Predicated region
  $region6: #{gdcb_forward.1} parent=0 // pred_check
    _
  $region7: #{gdcb_forward.1} parent=0 // pred_check_branch
    %1455 = sbr.rel (0) target = $region9
  $region8: #{gdcb_forward.1} parent=0 // pred_region
    _
  $region9: #{gdcb_forward.1} parent=0 // pred_fallthru
    _
  // Predicated region
  $region10: #{gdcb_forward.1} parent=0 // pred_check
    _
  $region11: #{gdcb_forward.1} parent=0 // pred_check_branch
    %1457 = sbr.rel (0) target = $region13
  $region12: #{gdcb_forward.1} parent=0 // pred_region
    _
  $region13: #{gdcb_forward.1} parent=0 // pred_fallthru
    _

</llo_original>
